<compile_context>
chip_gen: v7x
topology: tpu7x:2x2x1
jax: 0.10.0
libtpu: 0.0.40
codegen_flags: <defaults>
</compile_context>

<pallas_src>
import math

import jax
import jax.numpy as jnp
from jax.experimental import pallas as pl
from jax.experimental.pallas import tpu as pltpu

# ---------------- configuration (small, consistent with the module) ---------
HIDDEN = 32          # cfg.hidden_size
NUM_HEADS = 4        # head_dim = 8
HEAD_DIM = HIDDEN // NUM_HEADS
INTER = 4 * HIDDEN   # FFN intermediate size
NUM_LAYERS = 2       # num_layers
VOCAB = 512
MAX_POS = 64
TYPE_VOCAB = 2
CLS = 101            # BERT [CLS] id
PAD = 0              # BERT pad id
LN_EPS = 1e-12       # HF BertLayerNorm eps

PARAM_ORDER = ('eg', 'eb',
               'wq', 'bq', 'wk', 'bk', 'wv', 'bv', 'wo', 'bo',
               'ln1g', 'ln1b', 'w1', 'b1', 'w2', 'b2', 'ln2g', 'ln2b',
               'wt', 'bt', 'tg', 'tb', 'wl', 'bl')


# ---------------- helpers used inside the kernel (f32 elementwise) -----------
def _ln(x, g, b):
    mu = jnp.mean(x, axis=-1, keepdims=True)
    var = jnp.mean((x - mu) * (x - mu), axis=-1, keepdims=True)
    return (x - mu) * jax.lax.rsqrt(var + LN_EPS) * g + b


def _gelu(x):
    # TODO(synk): HF BERT default is the exact erf GELU; tanh approximation is
    # used for robust Mosaic lowering (EUP tanh), numerically very close.
    return 0.5 * x * (1.0 + jnp.tanh(0.7978845608028654 * (x + 0.044715 * x * x * x)))


# ---------------- the single fused Pallas kernel -----------------------------
def fused_kernel(emb_ref, mask_ref,
                 eg_r, eb_r,
                 wq_r, bq_r, wk_r, bk_r, wv_r, bv_r, wo_r, bo_r,
                 ln1g_r, ln1b_r, w1_r, b1_r, w2_r, b2_r, ln2g_r, ln2b_r,
                 wt_r, bt_r, tg_r, tb_r, wl_r, bl_r,
                 out_ref):
    S, H = emb_ref.shape[1], emb_ref.shape[2]
    bf16, f32 = jnp.bfloat16, jnp.float32

    # embedding LayerNorm (dropout = eval no-op)
    h = _ln(emb_ref[0], eg_r[...], eb_r[...])          # (S, H) f32
    m = mask_ref[0]                                    # (1, S) additive mask

    for l in range(NUM_LAYERS):                        # static loop, weights resident
        hb = h.astype(bf16)
        acc = jnp.zeros((S, H), f32)
        for hd in range(NUM_HEADS):                    # static head loop, no lane slicing
            i = l * NUM_HEADS + hd
            # attention scale is already folded into wq/bq at pack time
            qh = jnp.dot(hb, wq_r[i], preferred_element_type=f32) + bq_r[i]   # (S, dh)
            kh = jnp.dot(hb, wk_r[i], preferred_element_type=f32) + bk_r[i]
            vh = jnp.dot(hb, wv_r[i], preferred_element_type=f32) + bv_r[i]
            s = jax.lax.dot_general(qh.astype(bf16), kh.astype(bf16),
                                    (((1,), (1,)), ((), ())),
                                    preferred_element_type=f32)               # (S, S)
            s = s + m
            s = s - jnp.max(s, axis=-1, keepdims=True)
            p = jnp.exp(s)
            p = p * pl.reciprocal(jnp.sum(p, axis=-1, keepdims=True), approx=True)
            ctx = jnp.dot(p.astype(bf16), vh.astype(bf16),
                          preferred_element_type=f32)                         # (S, dh)
            acc = acc + jnp.dot(ctx.astype(bf16), wo_r[i],
                                preferred_element_type=f32)                   # (S, H)
        h1 = _ln(acc + bo_r[l] + h, ln1g_r[l], ln1b_r[l])                     # add & LN

        inter = _gelu(jnp.dot(h1.astype(bf16), w1_r[l],
                              preferred_element_type=f32) + b1_r[l])          # (S, INTER)
        ffn = jnp.dot(inter.astype(bf16), w2_r[l],
                      preferred_element_type=f32) + b2_r[l]
        h = _ln(ffn + h1, ln2g_r[l], ln2b_r[l])                               # add & LN

    # BertPredictionHeadTransform + mode_linear on the [CLS] row
    cls = h[0:1, :]
    t = _gelu(jnp.dot(cls.astype(bf16), wt_r[...],
                      preferred_element_type=f32) + bt_r[...])
    t = _ln(t, tg_r[...], tb_r[...])
    out_ref[0] = jnp.dot(t.astype(bf16), wl_r[...],
                         preferred_element_type=f32) + bl_r[...]


# ---------------- parameter init (deterministic, synthetic) ------------------
def init_params(key):
    keys = jax.random.split(key, 8 + NUM_LAYERS)

    def nrm(k, shape):
        return (0.02 * jax.random.normal(k, shape)).astype(jnp.float32)

    ones = lambda n: jnp.ones((1, n), jnp.float32)
    zeros = lambda n: jnp.zeros((1, n), jnp.float32)

    params = dict(
        word_emb=nrm(keys[0], (VOCAB, HIDDEN)),
        pos_emb=nrm(keys[1], (MAX_POS, HIDDEN)),
        type_emb=nrm(keys[2], (TYPE_VOCAB, HIDDEN)),
        emb_ln_g=ones(HIDDEN), emb_ln_b=zeros(HIDDEN),
        # BertPredictionHeadTransform
        wt=nrm(keys[3], (HIDDEN, HIDDEN)), bt=zeros(HIDDEN),
        t_ln_g=ones(HIDDEN), t_ln_b=zeros(HIDDEN),
        # mode_linear
        wl=nrm(keys[4], (HIDDEN, HIDDEN)), bl=zeros(HIDDEN),
        layers=[],
    )
    for l in range(NUM_LAYERS):
        lk = jax.random.split(keys[8 + l], 6)
        params['layers'].append(dict(
            wq=nrm(lk[0], (HIDDEN, HIDDEN)), bq=zeros(HIDDEN),
            wk=nrm(lk[1], (HIDDEN, HIDDEN)), bk=zeros(HIDDEN),
            wv=nrm(lk[2], (HIDDEN, HIDDEN)), bv=zeros(HIDDEN),
            wo=nrm(lk[3], (HIDDEN, HIDDEN)), bo=zeros(HIDDEN),
            ln1_g=ones(HIDDEN), ln1_b=zeros(HIDDEN),
            w1=nrm(lk[4], (HIDDEN, INTER)), b1=zeros(INTER),
            w2=nrm(lk[5], (INTER, HIDDEN)), b2=zeros(HIDDEN),
            ln2_g=ones(HIDDEN), ln2_b=zeros(HIDDEN),
        ))
    return params


# ---------------- one-time parameter packing for the fused kernel ------------
def pack_params(params):
    dh = HEAD_DIM
    scale = 1.0 / math.sqrt(dh)
    LNH = NUM_LAYERS * NUM_HEADS

    def stack(name):                       # per-layer stack -> (L, ...)
        return jnp.stack([lp[name] for lp in params['layers']], axis=0)

    def heads_in(w):                       # (L,H,H) -> (L*NH, H, dh)   output-column split
        return (w.reshape(NUM_LAYERS, HIDDEN, NUM_HEADS, dh)
                 .transpose(0, 2, 1, 3).reshape(LNH, HIDDEN, dh))

    def heads_bias(b):                     # (L,1,H) -> (L*NH, 1, dh)
        return (b.reshape(NUM_LAYERS, 1, NUM_HEADS, dh)
                 .transpose(0, 2, 1, 3).reshape(LNH, 1, dh))

    def heads_out(w):                      # (L,H,H) -> (L*NH, dh, H)   input-row split
        return w.reshape(NUM_LAYERS, NUM_HEADS, dh, HIDDEN).reshape(LNH, dh, HIDDEN)

    bf = lambda x: x.astype(jnp.bfloat16)  # matmul operands -> bf16, f32 accumulate

    return dict(
        word_emb=params['word_emb'], pos_emb=params['pos_emb'],
        type_emb=params['type_emb'],
        eg=params['emb_ln_g'], eb=params['emb_ln_b'],
        # attention scale folded into Q weights/bias here (zero in-kernel cost)
        wq=bf(heads_in(stack('wq')) * scale), bq=heads_bias(stack('bq')) * scale,
        wk=bf(heads_in(stack('wk'))), bk=heads_bias(stack('bk')),
        wv=bf(heads_in(stack('wv'))), bv=heads_bias(stack('bv')),
        wo=bf(heads_out(stack('wo'))), bo=stack('bo'),
        ln1g=stack('ln1_g'), ln1b=stack('ln1_b'),
        w1=bf(stack('w1')), b1=stack('b1'),
        w2=bf(stack('w2')), b2=stack('b2'),
        ln2g=stack('ln2_g'), ln2b=stack('ln2_b'),
        wt=bf(params['wt']), bt=params['bt'],
        tg=params['t_ln_g'], tb=params['t_ln_b'],
        wl=bf(params['wl']), bl=params['bl'],
    )


def _const_spec(shape):
    nd = len(shape)
    return pl.BlockSpec(shape, lambda i, _nd=nd: (0,) * _nd)


# ---------------- forward (wrapper = gather glue, kernel = everything else) --
def mode_encoder(token_ids, packed):
    B, S0 = token_ids.shape
    ids = jnp.concatenate(
        [jnp.full((B, 1), CLS, token_ids.dtype), token_ids], axis=1)   # prepend [CLS]
    S = S0 + 1
    # pad sequence to a sublane-aligned length with PAD tokens; their attention
    # weight is exactly 0 (exp(-10000+...) underflows), so results are identical.
    S_pad = ((S + 7) // 8) * 8
    if S_pad > S:
        ids = jnp.concatenate(
            [ids, jnp.full((B, S_pad - S), PAD, ids.dtype)], axis=1)

    # BertEmbeddings gathers (plain-JAX glue); LayerNorm runs inside the kernel.
    emb = (packed['word_emb'][ids]
           + packed['pos_emb'][:S_pad][None, :, :]
           + packed['type_emb'][0][None, None, :]).astype(jnp.float32)
    add_mask = ((ids == PAD).astype(jnp.float32) * -10000.0)[:, None, :]  # (B,1,S_pad)

    plist = [packed[k] for k in PARAM_ORDER]
    args = [emb, add_mask] + plist

    in_specs = ([pl.BlockSpec((1, S_pad, HIDDEN), lambda i: (i, 0, 0)),
                 pl.BlockSpec((1, 1, S_pad), lambda i: (i, 0, 0))]
                + [_const_spec(p.shape) for p in plist])
    out_spec = pl.BlockSpec((1, 1, HIDDEN), lambda i: (i, 0, 0))

    # advisory cost estimate so XLA can overlap the call with the gathers
    L, H, I, NH = NUM_LAYERS, HIDDEN, INTER, NUM_HEADS
    flops = B * (L * (8 * S_pad * H * H + 4 * S_pad * S_pad * H
                      + 4 * S_pad * H * I) + 4 * H * H)
    trans = B * (L * (NH * S_pad * S_pad + S_pad * I) + H)
    bytes_accessed = (sum(int(a.size) * a.dtype.itemsize for a in args)
                      + B * H * 4)

    out = pl.pallas_call(
        fused_kernel,
        out_shape=jax.ShapeDtypeStruct((B, 1, HIDDEN), jnp.float32),
        grid=(B,),
        in_specs=in_specs,
        out_specs=out_spec,
        compiler_params=pltpu.CompilerParams(
            dimension_semantics=("parallel",)),      # both TCs on v7x megacore
        cost_estimate=pl.CostEstimate(
            flops=flops, transcendentals=trans, bytes_accessed=bytes_accessed),
    )(*args)
    return out.reshape(B, HIDDEN)


# ---------------- main --------------------------------------------------------
if __name__ == "__main__":
    key = jax.random.PRNGKey(0)
    pkey, dkey = jax.random.split(key)
    params = init_params(pkey)
    packed = pack_params(params)

    B, S0 = 2, 8
    token_ids = jax.random.randint(dkey, (B, S0), 5, 400, dtype=jnp.int32)
    token_ids = token_ids.at[1, 5:].set(PAD)   # exercise the PAD attention mask

    fwd = jax.jit(mode_encoder)
    out = fwd(token_ids, packed)
    out = jax.block_until_ready(out)

    assert out.shape == (B, HIDDEN), out.shape
    assert bool(jnp.all(jnp.isfinite(out)))
    print("KERNEL_OK")
</pallas_src>

<mosaic_0001>
module attributes {stable_mosaic.version = 11 : i64} {
  func.func @fused_kernel(%arg0: i32, %arg1: memref<1x16x32xf32, #tpu.memory_space<vmem>>, %arg2: memref<1x1x16xf32, #tpu.memory_space<vmem>>, %arg3: memref<1x32xf32, #tpu.memory_space<vmem>>, %arg4: memref<1x32xf32, #tpu.memory_space<vmem>>, %arg5: memref<8x32x8xbf16, #tpu.memory_space<vmem>>, %arg6: memref<8x1x8xf32, #tpu.memory_space<vmem>>, %arg7: memref<8x32x8xbf16, #tpu.memory_space<vmem>>, %arg8: memref<8x1x8xf32, #tpu.memory_space<vmem>>, %arg9: memref<8x32x8xbf16, #tpu.memory_space<vmem>>, %arg10: memref<8x1x8xf32, #tpu.memory_space<vmem>>, %arg11: memref<8x8x32xbf16, #tpu.memory_space<vmem>>, %arg12: memref<2x1x32xf32, #tpu.memory_space<vmem>>, %arg13: memref<2x1x32xf32, #tpu.memory_space<vmem>>, %arg14: memref<2x1x32xf32, #tpu.memory_space<vmem>>, %arg15: memref<2x32x128xbf16, #tpu.memory_space<vmem>>, %arg16: memref<2x1x128xf32, #tpu.memory_space<vmem>>, %arg17: memref<2x128x32xbf16, #tpu.memory_space<vmem>>, %arg18: memref<2x1x32xf32, #tpu.memory_space<vmem>>, %arg19: memref<2x1x32xf32, #tpu.memory_space<vmem>>, %arg20: memref<2x1x32xf32, #tpu.memory_space<vmem>>, %arg21: memref<32x32xbf16, #tpu.memory_space<vmem>>, %arg22: memref<1x32xf32, #tpu.memory_space<vmem>>, %arg23: memref<1x32xf32, #tpu.memory_space<vmem>>, %arg24: memref<1x32xf32, #tpu.memory_space<vmem>>, %arg25: memref<32x32xbf16, #tpu.memory_space<vmem>>, %arg26: memref<1x32xf32, #tpu.memory_space<vmem>>, %arg27: memref<1x1x32xf32, #tpu.memory_space<vmem>>) attributes {dimension_semantics = [#tpu.dimension_semantics<parallel>], iteration_bounds = array<i64: 2>, scalar_prefetch = 0 : i64, scratch_operands = 0 : i64, tpu.core_type = #tpu.core_type<tc>, window_params = [{transform_indices = @transform_0, window_bounds = array<i64: 1, 16, 32>}, {transform_indices = @transform_1, window_bounds = array<i64: 1, 1, 16>}, {pipeline_mode = #tpu.pipeline_mode<synchronous>, transform_indices = @transform_2, window_bounds = array<i64: 1, 32>}, {pipeline_mode = #tpu.pipeline_mode<synchronous>, transform_indices = @transform_3, window_bounds = array<i64: 1, 32>}, {pipeline_mode = #tpu.pipeline_mode<synchronous>, transform_indices = @transform_4, window_bounds = array<i64: 8, 32, 8>}, {pipeline_mode = #tpu.pipeline_mode<synchronous>, transform_indices = @transform_5, window_bounds = array<i64: 8, 1, 8>}, {pipeline_mode = #tpu.pipeline_mode<synchronous>, transform_indices = @transform_6, window_bounds = array<i64: 8, 32, 8>}, {pipeline_mode = #tpu.pipeline_mode<synchronous>, transform_indices = @transform_7, window_bounds = array<i64: 8, 1, 8>}, {pipeline_mode = #tpu.pipeline_mode<synchronous>, transform_indices = @transform_8, window_bounds = array<i64: 8, 32, 8>}, {pipeline_mode = #tpu.pipeline_mode<synchronous>, transform_indices = @transform_9, window_bounds = array<i64: 8, 1, 8>}, {pipeline_mode = #tpu.pipeline_mode<synchronous>, transform_indices = @transform_10, window_bounds = array<i64: 8, 8, 32>}, {pipeline_mode = #tpu.pipeline_mode<synchronous>, transform_indices = @transform_11, window_bounds = array<i64: 2, 1, 32>}, {pipeline_mode = #tpu.pipeline_mode<synchronous>, transform_indices = @transform_12, window_bounds = array<i64: 2, 1, 32>}, {pipeline_mode = #tpu.pipeline_mode<synchronous>, transform_indices = @transform_13, window_bounds = array<i64: 2, 1, 32>}, {pipeline_mode = #tpu.pipeline_mode<synchronous>, transform_indices = @transform_14, window_bounds = array<i64: 2, 32, 128>}, {pipeline_mode = #tpu.pipeline_mode<synchronous>, transform_indices = @transform_15, window_bounds = array<i64: 2, 1, 128>}, {pipeline_mode = #tpu.pipeline_mode<synchronous>, transform_indices = @transform_16, window_bounds = array<i64: 2, 128, 32>}, {pipeline_mode = #tpu.pipeline_mode<synchronous>, transform_indices = @transform_17, window_bounds = array<i64: 2, 1, 32>}, {pipeline_mode = #tpu.pipeline_mode<synchronous>, transform_indices = @transform_18, window_bounds = array<i64: 2, 1, 32>}, {pipeline_mode = #tpu.pipeline_mode<synchronous>, transform_indices = @transform_19, window_bounds = array<i64: 2, 1, 32>}, {pipeline_mode = #tpu.pipeline_mode<synchronous>, transform_indices = @transform_20, window_bounds = array<i64: 32, 32>}, {pipeline_mode = #tpu.pipeline_mode<synchronous>, transform_indices = @transform_21, window_bounds = array<i64: 1, 32>}, {pipeline_mode = #tpu.pipeline_mode<synchronous>, transform_indices = @transform_22, window_bounds = array<i64: 1, 32>}, {pipeline_mode = #tpu.pipeline_mode<synchronous>, transform_indices = @transform_23, window_bounds = array<i64: 1, 32>}, {pipeline_mode = #tpu.pipeline_mode<synchronous>, transform_indices = @transform_24, window_bounds = array<i64: 32, 32>}, {pipeline_mode = #tpu.pipeline_mode<synchronous>, transform_indices = @transform_25, window_bounds = array<i64: 1, 32>}, {transform_indices = @transform_26, window_bounds = array<i64: 1, 1, 32>}]} {
    %c0 = arith.constant 0 : index
    %c0_0 = arith.constant 0 : index
    %c0_1 = arith.constant 0 : index
    %0 = vector.load %arg1[%c0, %c0_0, %c0_1] : memref<1x16x32xf32, #tpu.memory_space<vmem>>, vector<1x16x32xf32>
    %1 = vector.shape_cast %0 : vector<1x16x32xf32> to vector<16x32xf32>
    %c0_2 = arith.constant 0 : index
    %c0_3 = arith.constant 0 : index
    %2 = vector.load %arg3[%c0_2, %c0_3] : memref<1x32xf32, #tpu.memory_space<vmem>>, vector<1x32xf32>
    %c0_4 = arith.constant 0 : index
    %c0_5 = arith.constant 0 : index
    %3 = vector.load %arg4[%c0_4, %c0_5] : memref<1x32xf32, #tpu.memory_space<vmem>>, vector<1x32xf32>
    %cst = arith.constant dense<0.000000e+00> : vector<16xf32>
    %4 = vector.multi_reduction <add>, %1, %cst [1] : vector<16x32xf32> to vector<16xf32>
    %5 = vector.shape_cast %4 : vector<16xf32> to vector<16x1xf32>
    %cst_6 = arith.constant 3.200000e+01 : f32
    %6 = vector.broadcast %cst_6 : f32 to vector<16x1xf32>
    %7 = arith.divf %5, %6 : vector<16x1xf32>
    %8 = vector.broadcast %7 : vector<16x1xf32> to vector<16x32xf32>
    %9 = arith.subf %1, %8 : vector<16x32xf32>
    %10 = vector.broadcast %7 : vector<16x1xf32> to vector<16x32xf32>
    %11 = arith.subf %1, %10 : vector<16x32xf32>
    %12 = arith.mulf %9, %11 : vector<16x32xf32>
    %cst_7 = arith.constant dense<0.000000e+00> : vector<16xf32>
    %13 = vector.multi_reduction <add>, %12, %cst_7 [1] : vector<16x32xf32> to vector<16xf32>
    %14 = vector.shape_cast %13 : vector<16xf32> to vector<16x1xf32>
    %cst_8 = arith.constant 3.200000e+01 : f32
    %15 = vector.broadcast %cst_8 : f32 to vector<16x1xf32>
    %16 = arith.divf %14, %15 : vector<16x1xf32>
    %17 = vector.broadcast %7 : vector<16x1xf32> to vector<16x32xf32>
    %18 = arith.subf %1, %17 : vector<16x32xf32>
    %cst_9 = arith.constant 9.99999996E-13 : f32
    %19 = vector.broadcast %cst_9 : f32 to vector<16x1xf32>
    %20 = arith.addf %16, %19 : vector<16x1xf32>
    %21 = math.rsqrt %20 : vector<16x1xf32>
    %22 = vector.broadcast %21 : vector<16x1xf32> to vector<16x32xf32>
    %23 = arith.mulf %18, %22 : vector<16x32xf32>
    %24 = vector.broadcast %2 : vector<1x32xf32> to vector<16x32xf32>
    %25 = arith.mulf %23, %24 : vector<16x32xf32>
    %26 = vector.broadcast %3 : vector<1x32xf32> to vector<16x32xf32>
    %27 = arith.addf %25, %26 : vector<16x32xf32>
    %c0_10 = arith.constant 0 : index
    %c0_11 = arith.constant 0 : index
    %c0_12 = arith.constant 0 : index
    %28 = vector.load %arg2[%c0_10, %c0_11, %c0_12] : memref<1x1x16xf32, #tpu.memory_space<vmem>>, vector<1x1x16xf32>
    %29 = vector.shape_cast %28 : vector<1x1x16xf32> to vector<1x16xf32>
    %30 = arith.truncf %27 : vector<16x32xf32> to vector<16x32xbf16>
    %cst_13 = arith.constant 0.000000e+00 : f32
    %31 = vector.broadcast %cst_13 : f32 to vector<16x32xf32>
    %c0_14 = arith.constant 0 : index
    %c0_15 = arith.constant 0 : index
    %c0_16 = arith.constant 0 : index
    %32 = vector.load %arg5[%c0_14, %c0_15, %c0_16] : memref<8x32x8xbf16, #tpu.memory_space<vmem>>, vector<1x32x8xbf16>
    %33 = vector.shape_cast %32 : vector<1x32x8xbf16> to vector<32x8xbf16>
    %cst_17 = arith.constant dense<0.000000e+00> : vector<16x8xf32>
    %34 = tpu.matmul %30, %33, %cst_17 {dimension_numbers = #tpu.dot_dimension_numbers<[1], [0], [0], [1], [0, 0, 1, 1], [], []>} : vector<16x32xbf16>, vector<32x8xbf16>, vector<16x8xf32> -> vector<16x8xf32>
    %c0_18 = arith.constant 0 : index
    %c0_19 = arith.constant 0 : index
    %c0_20 = arith.constant 0 : index
    %35 = vector.load %arg6[%c0_18, %c0_19, %c0_20] : memref<8x1x8xf32, #tpu.memory_space<vmem>>, vector<1x1x8xf32>
    %36 = vector.shape_cast %35 : vector<1x1x8xf32> to vector<1x8xf32>
    %37 = vector.broadcast %36 : vector<1x8xf32> to vector<16x8xf32>
    %38 = arith.addf %34, %37 : vector<16x8xf32>
    %c0_21 = arith.constant 0 : index
    %c0_22 = arith.constant 0 : index
    %c0_23 = arith.constant 0 : index
    %39 = vector.load %arg7[%c0_21, %c0_22, %c0_23] : memref<8x32x8xbf16, #tpu.memory_space<vmem>>, vector<1x32x8xbf16>
    %40 = vector.shape_cast %39 : vector<1x32x8xbf16> to vector<32x8xbf16>
    %cst_24 = arith.constant dense<0.000000e+00> : vector<16x8xf32>
    %41 = tpu.matmul %30, %40, %cst_24 {dimension_numbers = #tpu.dot_dimension_numbers<[1], [0], [0], [1], [0, 0, 1, 1], [], []>} : vector<16x32xbf16>, vector<32x8xbf16>, vector<16x8xf32> -> vector<16x8xf32>
    %c0_25 = arith.constant 0 : index
    %c0_26 = arith.constant 0 : index
    %c0_27 = arith.constant 0 : index
    %42 = vector.load %arg8[%c0_25, %c0_26, %c0_27] : memref<8x1x8xf32, #tpu.memory_space<vmem>>, vector<1x1x8xf32>
    %43 = vector.shape_cast %42 : vector<1x1x8xf32> to vector<1x8xf32>
    %44 = vector.broadcast %43 : vector<1x8xf32> to vector<16x8xf32>
    %45 = arith.addf %41, %44 : vector<16x8xf32>
    %c0_28 = arith.constant 0 : index
    %c0_29 = arith.constant 0 : index
    %c0_30 = arith.constant 0 : index
    %46 = vector.load %arg9[%c0_28, %c0_29, %c0_30] : memref<8x32x8xbf16, #tpu.memory_space<vmem>>, vector<1x32x8xbf16>
    %47 = vector.shape_cast %46 : vector<1x32x8xbf16> to vector<32x8xbf16>
    %cst_31 = arith.constant dense<0.000000e+00> : vector<16x8xf32>
    %48 = tpu.matmul %30, %47, %cst_31 {dimension_numbers = #tpu.dot_dimension_numbers<[1], [0], [0], [1], [0, 0, 1, 1], [], []>} : vector<16x32xbf16>, vector<32x8xbf16>, vector<16x8xf32> -> vector<16x8xf32>
    %c0_32 = arith.constant 0 : index
    %c0_33 = arith.constant 0 : index
    %c0_34 = arith.constant 0 : index
    %49 = vector.load %arg10[%c0_32, %c0_33, %c0_34] : memref<8x1x8xf32, #tpu.memory_space<vmem>>, vector<1x1x8xf32>
    %50 = vector.shape_cast %49 : vector<1x1x8xf32> to vector<1x8xf32>
    %51 = vector.broadcast %50 : vector<1x8xf32> to vector<16x8xf32>
    %52 = arith.addf %48, %51 : vector<16x8xf32>
    %53 = arith.truncf %38 : vector<16x8xf32> to vector<16x8xbf16>
    %54 = arith.truncf %45 : vector<16x8xf32> to vector<16x8xbf16>
    %cst_35 = arith.constant dense<0.000000e+00> : vector<16x16xf32>
    %55 = tpu.matmul %53, %54, %cst_35 {dimension_numbers = #tpu.dot_dimension_numbers<[1], [1], [0], [0], [0, 0, 1, 0], [], []>} : vector<16x8xbf16>, vector<16x8xbf16>, vector<16x16xf32> -> vector<16x16xf32>
    %56 = vector.broadcast %29 : vector<1x16xf32> to vector<16x16xf32>
    %57 = arith.addf %55, %56 : vector<16x16xf32>
    %cst_36 = arith.constant dense<0xFF800000> : vector<16xf32>
    %58 = vector.multi_reduction <maximumf>, %57, %cst_36 [1] : vector<16x16xf32> to vector<16xf32>
    %59 = vector.shape_cast %58 : vector<16xf32> to vector<16x1xf32>
    %60 = vector.broadcast %59 : vector<16x1xf32> to vector<16x16xf32>
    %61 = arith.subf %57, %60 : vector<16x16xf32>
    %62 = math.exp %61 : vector<16x16xf32>
    %cst_37 = arith.constant dense<0.000000e+00> : vector<16xf32>
    %63 = vector.multi_reduction <add>, %62, %cst_37 [1] : vector<16x16xf32> to vector<16xf32>
    %64 = vector.shape_cast %63 : vector<16xf32> to vector<16x1xf32>
    %65 = tpu.reciprocal %64 {approx = true} : vector<16x1xf32> -> vector<16x1xf32>
    %66 = vector.broadcast %65 : vector<16x1xf32> to vector<16x16xf32>
    %67 = arith.mulf %62, %66 : vector<16x16xf32>
    %68 = arith.truncf %67 : vector<16x16xf32> to vector<16x16xbf16>
    %69 = arith.truncf %52 : vector<16x8xf32> to vector<16x8xbf16>
    %cst_38 = arith.constant dense<0.000000e+00> : vector<16x8xf32>
    %70 = tpu.matmul %68, %69, %cst_38 {dimension_numbers = #tpu.dot_dimension_numbers<[1], [0], [0], [1], [0, 0, 1, 1], [], []>} : vector<16x16xbf16>, vector<16x8xbf16>, vector<16x8xf32> -> vector<16x8xf32>
    %71 = arith.truncf %70 : vector<16x8xf32> to vector<16x8xbf16>
    %c0_39 = arith.constant 0 : index
    %c0_40 = arith.constant 0 : index
    %c0_41 = arith.constant 0 : index
    %72 = vector.load %arg11[%c0_39, %c0_40, %c0_41] : memref<8x8x32xbf16, #tpu.memory_space<vmem>>, vector<1x8x32xbf16>
    %73 = vector.shape_cast %72 : vector<1x8x32xbf16> to vector<8x32xbf16>
    %cst_42 = arith.constant dense<0.000000e+00> : vector<16x32xf32>
    %74 = tpu.matmul %71, %73, %cst_42 {dimension_numbers = #tpu.dot_dimension_numbers<[1], [0], [0], [1], [0, 0, 1, 1], [], []>} : vector<16x8xbf16>, vector<8x32xbf16>, vector<16x32xf32> -> vector<16x32xf32>
    %75 = arith.addf %31, %74 : vector<16x32xf32>
    %c1 = arith.constant 1 : index
    %c0_43 = arith.constant 0 : index
    %c0_44 = arith.constant 0 : index
    %76 = vector.load %arg5[%c1, %c0_43, %c0_44] : memref<8x32x8xbf16, #tpu.memory_space<vmem>>, vector<1x32x8xbf16>
    %77 = vector.shape_cast %76 : vector<1x32x8xbf16> to vector<32x8xbf16>
    %cst_45 = arith.constant dense<0.000000e+00> : vector<16x8xf32>
    %78 = tpu.matmul %30, %77, %cst_45 {dimension_numbers = #tpu.dot_dimension_numbers<[1], [0], [0], [1], [0, 0, 1, 1], [], []>} : vector<16x32xbf16>, vector<32x8xbf16>, vector<16x8xf32> -> vector<16x8xf32>
    %c1_46 = arith.constant 1 : index
    %c0_47 = arith.constant 0 : index
    %c0_48 = arith.constant 0 : index
    %79 = vector.load %arg6[%c1_46, %c0_47, %c0_48] : memref<8x1x8xf32, #tpu.memory_space<vmem>>, vector<1x1x8xf32>
    %80 = vector.shape_cast %79 : vector<1x1x8xf32> to vector<1x8xf32>
    %81 = vector.broadcast %80 : vector<1x8xf32> to vector<16x8xf32>
    %82 = arith.addf %78, %81 : vector<16x8xf32>
    %c1_49 = arith.constant 1 : index
    %c0_50 = arith.constant 0 : index
    %c0_51 = arith.constant 0 : index
    %83 = vector.load %arg7[%c1_49, %c0_50, %c0_51] : memref<8x32x8xbf16, #tpu.memory_space<vmem>>, vector<1x32x8xbf16>
    %84 = vector.shape_cast %83 : vector<1x32x8xbf16> to vector<32x8xbf16>
    %cst_52 = arith.constant dense<0.000000e+00> : vector<16x8xf32>
    %85 = tpu.matmul %30, %84, %cst_52 {dimension_numbers = #tpu.dot_dimension_numbers<[1], [0], [0], [1], [0, 0, 1, 1], [], []>} : vector<16x32xbf16>, vector<32x8xbf16>, vector<16x8xf32> -> vector<16x8xf32>
    %c1_53 = arith.constant 1 : index
    %c0_54 = arith.constant 0 : index
    %c0_55 = arith.constant 0 : index
    %86 = vector.load %arg8[%c1_53, %c0_54, %c0_55] : memref<8x1x8xf32, #tpu.memory_space<vmem>>, vector<1x1x8xf32>
    %87 = vector.shape_cast %86 : vector<1x1x8xf32> to vector<1x8xf32>
    %88 = vector.broadcast %87 : vector<1x8xf32> to vector<16x8xf32>
    %89 = arith.addf %85, %88 : vector<16x8xf32>
    %c1_56 = arith.constant 1 : index
    %c0_57 = arith.constant 0 : index
    %c0_58 = arith.constant 0 : index
    %90 = vector.load %arg9[%c1_56, %c0_57, %c0_58] : memref<8x32x8xbf16, #tpu.memory_space<vmem>>, vector<1x32x8xbf16>
    %91 = vector.shape_cast %90 : vector<1x32x8xbf16> to vector<32x8xbf16>
    %cst_59 = arith.constant dense<0.000000e+00> : vector<16x8xf32>
    %92 = tpu.matmul %30, %91, %cst_59 {dimension_numbers = #tpu.dot_dimension_numbers<[1], [0], [0], [1], [0, 0, 1, 1], [], []>} : vector<16x32xbf16>, vector<32x8xbf16>, vector<16x8xf32> -> vector<16x8xf32>
    %c1_60 = arith.constant 1 : index
    %c0_61 = arith.constant 0 : index
    %c0_62 = arith.constant 0 : index
    %93 = vector.load %arg10[%c1_60, %c0_61, %c0_62] : memref<8x1x8xf32, #tpu.memory_space<vmem>>, vector<1x1x8xf32>
    %94 = vector.shape_cast %93 : vector<1x1x8xf32> to vector<1x8xf32>
    %95 = vector.broadcast %94 : vector<1x8xf32> to vector<16x8xf32>
    %96 = arith.addf %92, %95 : vector<16x8xf32>
    %97 = arith.truncf %82 : vector<16x8xf32> to vector<16x8xbf16>
    %98 = arith.truncf %89 : vector<16x8xf32> to vector<16x8xbf16>
    %cst_63 = arith.constant dense<0.000000e+00> : vector<16x16xf32>
    %99 = tpu.matmul %97, %98, %cst_63 {dimension_numbers = #tpu.dot_dimension_numbers<[1], [1], [0], [0], [0, 0, 1, 0], [], []>} : vector<16x8xbf16>, vector<16x8xbf16>, vector<16x16xf32> -> vector<16x16xf32>
    %100 = vector.broadcast %29 : vector<1x16xf32> to vector<16x16xf32>
    %101 = arith.addf %99, %100 : vector<16x16xf32>
    %cst_64 = arith.constant dense<0xFF800000> : vector<16xf32>
    %102 = vector.multi_reduction <maximumf>, %101, %cst_64 [1] : vector<16x16xf32> to vector<16xf32>
    %103 = vector.shape_cast %102 : vector<16xf32> to vector<16x1xf32>
    %104 = vector.broadcast %103 : vector<16x1xf32> to vector<16x16xf32>
    %105 = arith.subf %101, %104 : vector<16x16xf32>
    %106 = math.exp %105 : vector<16x16xf32>
    %cst_65 = arith.constant dense<0.000000e+00> : vector<16xf32>
    %107 = vector.multi_reduction <add>, %106, %cst_65 [1] : vector<16x16xf32> to vector<16xf32>
    %108 = vector.shape_cast %107 : vector<16xf32> to vector<16x1xf32>
    %109 = tpu.reciprocal %108 {approx = true} : vector<16x1xf32> -> vector<16x1xf32>
    %110 = vector.broadcast %109 : vector<16x1xf32> to vector<16x16xf32>
    %111 = arith.mulf %106, %110 : vector<16x16xf32>
    %112 = arith.truncf %111 : vector<16x16xf32> to vector<16x16xbf16>
    %113 = arith.truncf %96 : vector<16x8xf32> to vector<16x8xbf16>
    %cst_66 = arith.constant dense<0.000000e+00> : vector<16x8xf32>
    %114 = tpu.matmul %112, %113, %cst_66 {dimension_numbers = #tpu.dot_dimension_numbers<[1], [0], [0], [1], [0, 0, 1, 1], [], []>} : vector<16x16xbf16>, vector<16x8xbf16>, vector<16x8xf32> -> vector<16x8xf32>
    %115 = arith.truncf %114 : vector<16x8xf32> to vector<16x8xbf16>
    %c1_67 = arith.constant 1 : index
    %c0_68 = arith.constant 0 : index
    %c0_69 = arith.constant 0 : index
    %116 = vector.load %arg11[%c1_67, %c0_68, %c0_69] : memref<8x8x32xbf16, #tpu.memory_space<vmem>>, vector<1x8x32xbf16>
    %117 = vector.shape_cast %116 : vector<1x8x32xbf16> to vector<8x32xbf16>
    %cst_70 = arith.constant dense<0.000000e+00> : vector<16x32xf32>
    %118 = tpu.matmul %115, %117, %cst_70 {dimension_numbers = #tpu.dot_dimension_numbers<[1], [0], [0], [1], [0, 0, 1, 1], [], []>} : vector<16x8xbf16>, vector<8x32xbf16>, vector<16x32xf32> -> vector<16x32xf32>
    %119 = arith.addf %75, %118 : vector<16x32xf32>
    %c2 = arith.constant 2 : index
    %c0_71 = arith.constant 0 : index
    %c0_72 = arith.constant 0 : index
    %120 = vector.load %arg5[%c2, %c0_71, %c0_72] : memref<8x32x8xbf16, #tpu.memory_space<vmem>>, vector<1x32x8xbf16>
    %121 = vector.shape_cast %120 : vector<1x32x8xbf16> to vector<32x8xbf16>
    %cst_73 = arith.constant dense<0.000000e+00> : vector<16x8xf32>
    %122 = tpu.matmul %30, %121, %cst_73 {dimension_numbers = #tpu.dot_dimension_numbers<[1], [0], [0], [1], [0, 0, 1, 1], [], []>} : vector<16x32xbf16>, vector<32x8xbf16>, vector<16x8xf32> -> vector<16x8xf32>
    %c2_74 = arith.constant 2 : index
    %c0_75 = arith.constant 0 : index
    %c0_76 = arith.constant 0 : index
    %123 = vector.load %arg6[%c2_74, %c0_75, %c0_76] : memref<8x1x8xf32, #tpu.memory_space<vmem>>, vector<1x1x8xf32>
    %124 = vector.shape_cast %123 : vector<1x1x8xf32> to vector<1x8xf32>
    %125 = vector.broadcast %124 : vector<1x8xf32> to vector<16x8xf32>
    %126 = arith.addf %122, %125 : vector<16x8xf32>
    %c2_77 = arith.constant 2 : index
    %c0_78 = arith.constant 0 : index
    %c0_79 = arith.constant 0 : index
    %127 = vector.load %arg7[%c2_77, %c0_78, %c0_79] : memref<8x32x8xbf16, #tpu.memory_space<vmem>>, vector<1x32x8xbf16>
    %128 = vector.shape_cast %127 : vector<1x32x8xbf16> to vector<32x8xbf16>
    %cst_80 = arith.constant dense<0.000000e+00> : vector<16x8xf32>
    %129 = tpu.matmul %30, %128, %cst_80 {dimension_numbers = #tpu.dot_dimension_numbers<[1], [0], [0], [1], [0, 0, 1, 1], [], []>} : vector<16x32xbf16>, vector<32x8xbf16>, vector<16x8xf32> -> vector<16x8xf32>
    %c2_81 = arith.constant 2 : index
    %c0_82 = arith.constant 0 : index
    %c0_83 = arith.constant 0 : index
    %130 = vector.load %arg8[%c2_81, %c0_82, %c0_83] : memref<8x1x8xf32, #tpu.memory_space<vmem>>, vector<1x1x8xf32>
    %131 = vector.shape_cast %130 : vector<1x1x8xf32> to vector<1x8xf32>
    %132 = vector.broadcast %131 : vector<1x8xf32> to vector<16x8xf32>
    %133 = arith.addf %129, %132 : vector<16x8xf32>
    %c2_84 = arith.constant 2 : index
    %c0_85 = arith.constant 0 : index
    %c0_86 = arith.constant 0 : index
    %134 = vector.load %arg9[%c2_84, %c0_85, %c0_86] : memref<8x32x8xbf16, #tpu.memory_space<vmem>>, vector<1x32x8xbf16>
    %135 = vector.shape_cast %134 : vector<1x32x8xbf16> to vector<32x8xbf16>
    %cst_87 = arith.constant dense<0.000000e+00> : vector<16x8xf32>
    %136 = tpu.matmul %30, %135, %cst_87 {dimension_numbers = #tpu.dot_dimension_numbers<[1], [0], [0], [1], [0, 0, 1, 1], [], []>} : vector<16x32xbf16>, vector<32x8xbf16>, vector<16x8xf32> -> vector<16x8xf32>
    %c2_88 = arith.constant 2 : index
    %c0_89 = arith.constant 0 : index
    %c0_90 = arith.constant 0 : index
    %137 = vector.load %arg10[%c2_88, %c0_89, %c0_90] : memref<8x1x8xf32, #tpu.memory_space<vmem>>, vector<1x1x8xf32>
    %138 = vector.shape_cast %137 : vector<1x1x8xf32> to vector<1x8xf32>
    %139 = vector.broadcast %138 : vector<1x8xf32> to vector<16x8xf32>
    %140 = arith.addf %136, %139 : vector<16x8xf32>
    %141 = arith.truncf %126 : vector<16x8xf32> to vector<16x8xbf16>
    %142 = arith.truncf %133 : vector<16x8xf32> to vector<16x8xbf16>
    %cst_91 = arith.constant dense<0.000000e+00> : vector<16x16xf32>
    %143 = tpu.matmul %141, %142, %cst_91 {dimension_numbers = #tpu.dot_dimension_numbers<[1], [1], [0], [0], [0, 0, 1, 0], [], []>} : vector<16x8xbf16>, vector<16x8xbf16>, vector<16x16xf32> -> vector<16x16xf32>
    %144 = vector.broadcast %29 : vector<1x16xf32> to vector<16x16xf32>
    %145 = arith.addf %143, %144 : vector<16x16xf32>
    %cst_92 = arith.constant dense<0xFF800000> : vector<16xf32>
    %146 = vector.multi_reduction <maximumf>, %145, %cst_92 [1] : vector<16x16xf32> to vector<16xf32>
    %147 = vector.shape_cast %146 : vector<16xf32> to vector<16x1xf32>
    %148 = vector.broadcast %147 : vector<16x1xf32> to vector<16x16xf32>
    %149 = arith.subf %145, %148 : vector<16x16xf32>
    %150 = math.exp %149 : vector<16x16xf32>
    %cst_93 = arith.constant dense<0.000000e+00> : vector<16xf32>
    %151 = vector.multi_reduction <add>, %150, %cst_93 [1] : vector<16x16xf32> to vector<16xf32>
    %152 = vector.shape_cast %151 : vector<16xf32> to vector<16x1xf32>
    %153 = tpu.reciprocal %152 {approx = true} : vector<16x1xf32> -> vector<16x1xf32>
    %154 = vector.broadcast %153 : vector<16x1xf32> to vector<16x16xf32>
    %155 = arith.mulf %150, %154 : vector<16x16xf32>
    %156 = arith.truncf %155 : vector<16x16xf32> to vector<16x16xbf16>
    %157 = arith.truncf %140 : vector<16x8xf32> to vector<16x8xbf16>
    %cst_94 = arith.constant dense<0.000000e+00> : vector<16x8xf32>
    %158 = tpu.matmul %156, %157, %cst_94 {dimension_numbers = #tpu.dot_dimension_numbers<[1], [0], [0], [1], [0, 0, 1, 1], [], []>} : vector<16x16xbf16>, vector<16x8xbf16>, vector<16x8xf32> -> vector<16x8xf32>
    %159 = arith.truncf %158 : vector<16x8xf32> to vector<16x8xbf16>
    %c2_95 = arith.constant 2 : index
    %c0_96 = arith.constant 0 : index
    %c0_97 = arith.constant 0 : index
    %160 = vector.load %arg11[%c2_95, %c0_96, %c0_97] : memref<8x8x32xbf16, #tpu.memory_space<vmem>>, vector<1x8x32xbf16>
    %161 = vector.shape_cast %160 : vector<1x8x32xbf16> to vector<8x32xbf16>
    %cst_98 = arith.constant dense<0.000000e+00> : vector<16x32xf32>
    %162 = tpu.matmul %159, %161, %cst_98 {dimension_numbers = #tpu.dot_dimension_numbers<[1], [0], [0], [1], [0, 0, 1, 1], [], []>} : vector<16x8xbf16>, vector<8x32xbf16>, vector<16x32xf32> -> vector<16x32xf32>
    %163 = arith.addf %119, %162 : vector<16x32xf32>
    %c3 = arith.constant 3 : index
    %c0_99 = arith.constant 0 : index
    %c0_100 = arith.constant 0 : index
    %164 = vector.load %arg5[%c3, %c0_99, %c0_100] : memref<8x32x8xbf16, #tpu.memory_space<vmem>>, vector<1x32x8xbf16>
    %165 = vector.shape_cast %164 : vector<1x32x8xbf16> to vector<32x8xbf16>
    %cst_101 = arith.constant dense<0.000000e+00> : vector<16x8xf32>
    %166 = tpu.matmul %30, %165, %cst_101 {dimension_numbers = #tpu.dot_dimension_numbers<[1], [0], [0], [1], [0, 0, 1, 1], [], []>} : vector<16x32xbf16>, vector<32x8xbf16>, vector<16x8xf32> -> vector<16x8xf32>
    %c3_102 = arith.constant 3 : index
    %c0_103 = arith.constant 0 : index
    %c0_104 = arith.constant 0 : index
    %167 = vector.load %arg6[%c3_102, %c0_103, %c0_104] : memref<8x1x8xf32, #tpu.memory_space<vmem>>, vector<1x1x8xf32>
    %168 = vector.shape_cast %167 : vector<1x1x8xf32> to vector<1x8xf32>
    %169 = vector.broadcast %168 : vector<1x8xf32> to vector<16x8xf32>
    %170 = arith.addf %166, %169 : vector<16x8xf32>
    %c3_105 = arith.constant 3 : index
    %c0_106 = arith.constant 0 : index
    %c0_107 = arith.constant 0 : index
    %171 = vector.load %arg7[%c3_105, %c0_106, %c0_107] : memref<8x32x8xbf16, #tpu.memory_space<vmem>>, vector<1x32x8xbf16>
    %172 = vector.shape_cast %171 : vector<1x32x8xbf16> to vector<32x8xbf16>
    %cst_108 = arith.constant dense<0.000000e+00> : vector<16x8xf32>
    %173 = tpu.matmul %30, %172, %cst_108 {dimension_numbers = #tpu.dot_dimension_numbers<[1], [0], [0], [1], [0, 0, 1, 1], [], []>} : vector<16x32xbf16>, vector<32x8xbf16>, vector<16x8xf32> -> vector<16x8xf32>
    %c3_109 = arith.constant 3 : index
    %c0_110 = arith.constant 0 : index
    %c0_111 = arith.constant 0 : index
    %174 = vector.load %arg8[%c3_109, %c0_110, %c0_111] : memref<8x1x8xf32, #tpu.memory_space<vmem>>, vector<1x1x8xf32>
    %175 = vector.shape_cast %174 : vector<1x1x8xf32> to vector<1x8xf32>
    %176 = vector.broadcast %175 : vector<1x8xf32> to vector<16x8xf32>
    %177 = arith.addf %173, %176 : vector<16x8xf32>
    %c3_112 = arith.constant 3 : index
    %c0_113 = arith.constant 0 : index
    %c0_114 = arith.constant 0 : index
    %178 = vector.load %arg9[%c3_112, %c0_113, %c0_114] : memref<8x32x8xbf16, #tpu.memory_space<vmem>>, vector<1x32x8xbf16>
    %179 = vector.shape_cast %178 : vector<1x32x8xbf16> to vector<32x8xbf16>
    %cst_115 = arith.constant dense<0.000000e+00> : vector<16x8xf32>
    %180 = tpu.matmul %30, %179, %cst_115 {dimension_numbers = #tpu.dot_dimension_numbers<[1], [0], [0], [1], [0, 0, 1, 1], [], []>} : vector<16x32xbf16>, vector<32x8xbf16>, vector<16x8xf32> -> vector<16x8xf32>
    %c3_116 = arith.constant 3 : index
    %c0_117 = arith.constant 0 : index
    %c0_118 = arith.constant 0 : index
    %181 = vector.load %arg10[%c3_116, %c0_117, %c0_118] : memref<8x1x8xf32, #tpu.memory_space<vmem>>, vector<1x1x8xf32>
    %182 = vector.shape_cast %181 : vector<1x1x8xf32> to vector<1x8xf32>
    %183 = vector.broadcast %182 : vector<1x8xf32> to vector<16x8xf32>
    %184 = arith.addf %180, %183 : vector<16x8xf32>
    %185 = arith.truncf %170 : vector<16x8xf32> to vector<16x8xbf16>
    %186 = arith.truncf %177 : vector<16x8xf32> to vector<16x8xbf16>
    %cst_119 = arith.constant dense<0.000000e+00> : vector<16x16xf32>
    %187 = tpu.matmul %185, %186, %cst_119 {dimension_numbers = #tpu.dot_dimension_numbers<[1], [1], [0], [0], [0, 0, 1, 0], [], []>} : vector<16x8xbf16>, vector<16x8xbf16>, vector<16x16xf32> -> vector<16x16xf32>
    %188 = vector.broadcast %29 : vector<1x16xf32> to vector<16x16xf32>
    %189 = arith.addf %187, %188 : vector<16x16xf32>
    %cst_120 = arith.constant dense<0xFF800000> : vector<16xf32>
    %190 = vector.multi_reduction <maximumf>, %189, %cst_120 [1] : vector<16x16xf32> to vector<16xf32>
    %191 = vector.shape_cast %190 : vector<16xf32> to vector<16x1xf32>
    %192 = vector.broadcast %191 : vector<16x1xf32> to vector<16x16xf32>
    %193 = arith.subf %189, %192 : vector<16x16xf32>
    %194 = math.exp %193 : vector<16x16xf32>
    %cst_121 = arith.constant dense<0.000000e+00> : vector<16xf32>
    %195 = vector.multi_reduction <add>, %194, %cst_121 [1] : vector<16x16xf32> to vector<16xf32>
    %196 = vector.shape_cast %195 : vector<16xf32> to vector<16x1xf32>
    %197 = tpu.reciprocal %196 {approx = true} : vector<16x1xf32> -> vector<16x1xf32>
    %198 = vector.broadcast %197 : vector<16x1xf32> to vector<16x16xf32>
    %199 = arith.mulf %194, %198 : vector<16x16xf32>
    %200 = arith.truncf %199 : vector<16x16xf32> to vector<16x16xbf16>
    %201 = arith.truncf %184 : vector<16x8xf32> to vector<16x8xbf16>
    %cst_122 = arith.constant dense<0.000000e+00> : vector<16x8xf32>
    %202 = tpu.matmul %200, %201, %cst_122 {dimension_numbers = #tpu.dot_dimension_numbers<[1], [0], [0], [1], [0, 0, 1, 1], [], []>} : vector<16x16xbf16>, vector<16x8xbf16>, vector<16x8xf32> -> vector<16x8xf32>
    %203 = arith.truncf %202 : vector<16x8xf32> to vector<16x8xbf16>
    %c3_123 = arith.constant 3 : index
    %c0_124 = arith.constant 0 : index
    %c0_125 = arith.constant 0 : index
    %204 = vector.load %arg11[%c3_123, %c0_124, %c0_125] : memref<8x8x32xbf16, #tpu.memory_space<vmem>>, vector<1x8x32xbf16>
    %205 = vector.shape_cast %204 : vector<1x8x32xbf16> to vector<8x32xbf16>
    %cst_126 = arith.constant dense<0.000000e+00> : vector<16x32xf32>
    %206 = tpu.matmul %203, %205, %cst_126 {dimension_numbers = #tpu.dot_dimension_numbers<[1], [0], [0], [1], [0, 0, 1, 1], [], []>} : vector<16x8xbf16>, vector<8x32xbf16>, vector<16x32xf32> -> vector<16x32xf32>
    %207 = arith.addf %163, %206 : vector<16x32xf32>
    %c0_127 = arith.constant 0 : index
    %c0_128 = arith.constant 0 : index
    %c0_129 = arith.constant 0 : index
    %208 = vector.load %arg12[%c0_127, %c0_128, %c0_129] : memref<2x1x32xf32, #tpu.memory_space<vmem>>, vector<1x1x32xf32>
    %209 = vector.shape_cast %208 : vector<1x1x32xf32> to vector<1x32xf32>
    %210 = vector.broadcast %209 : vector<1x32xf32> to vector<16x32xf32>
    %211 = arith.addf %207, %210 : vector<16x32xf32>
    %212 = arith.addf %211, %27 : vector<16x32xf32>
    %c0_130 = arith.constant 0 : index
    %c0_131 = arith.constant 0 : index
    %c0_132 = arith.constant 0 : index
    %213 = vector.load %arg13[%c0_130, %c0_131, %c0_132] : memref<2x1x32xf32, #tpu.memory_space<vmem>>, vector<1x1x32xf32>
    %214 = vector.shape_cast %213 : vector<1x1x32xf32> to vector<1x32xf32>
    %c0_133 = arith.constant 0 : index
    %c0_134 = arith.constant 0 : index
    %c0_135 = arith.constant 0 : index
    %215 = vector.load %arg14[%c0_133, %c0_134, %c0_135] : memref<2x1x32xf32, #tpu.memory_space<vmem>>, vector<1x1x32xf32>
    %216 = vector.shape_cast %215 : vector<1x1x32xf32> to vector<1x32xf32>
    %cst_136 = arith.constant dense<0.000000e+00> : vector<16xf32>
    %217 = vector.multi_reduction <add>, %212, %cst_136 [1] : vector<16x32xf32> to vector<16xf32>
    %218 = vector.shape_cast %217 : vector<16xf32> to vector<16x1xf32>
    %cst_137 = arith.constant 3.200000e+01 : f32
    %219 = vector.broadcast %cst_137 : f32 to vector<16x1xf32>
    %220 = arith.divf %218, %219 : vector<16x1xf32>
    %221 = vector.broadcast %220 : vector<16x1xf32> to vector<16x32xf32>
    %222 = arith.subf %212, %221 : vector<16x32xf32>
    %223 = vector.broadcast %220 : vector<16x1xf32> to vector<16x32xf32>
    %224 = arith.subf %212, %223 : vector<16x32xf32>
    %225 = arith.mulf %222, %224 : vector<16x32xf32>
    %cst_138 = arith.constant dense<0.000000e+00> : vector<16xf32>
    %226 = vector.multi_reduction <add>, %225, %cst_138 [1] : vector<16x32xf32> to vector<16xf32>
    %227 = vector.shape_cast %226 : vector<16xf32> to vector<16x1xf32>
    %cst_139 = arith.constant 3.200000e+01 : f32
    %228 = vector.broadcast %cst_139 : f32 to vector<16x1xf32>
    %229 = arith.divf %227, %228 : vector<16x1xf32>
    %230 = vector.broadcast %220 : vector<16x1xf32> to vector<16x32xf32>
    %231 = arith.subf %212, %230 : vector<16x32xf32>
    %cst_140 = arith.constant 9.99999996E-13 : f32
    %232 = vector.broadcast %cst_140 : f32 to vector<16x1xf32>
    %233 = arith.addf %229, %232 : vector<16x1xf32>
    %234 = math.rsqrt %233 : vector<16x1xf32>
    %235 = vector.broadcast %234 : vector<16x1xf32> to vector<16x32xf32>
    %236 = arith.mulf %231, %235 : vector<16x32xf32>
    %237 = vector.broadcast %214 : vector<1x32xf32> to vector<16x32xf32>
    %238 = arith.mulf %236, %237 : vector<16x32xf32>
    %239 = vector.broadcast %216 : vector<1x32xf32> to vector<16x32xf32>
    %240 = arith.addf %238, %239 : vector<16x32xf32>
    %241 = arith.truncf %240 : vector<16x32xf32> to vector<16x32xbf16>
    %c0_141 = arith.constant 0 : index
    %c0_142 = arith.constant 0 : index
    %c0_143 = arith.constant 0 : index
    %242 = vector.load %arg15[%c0_141, %c0_142, %c0_143] : memref<2x32x128xbf16, #tpu.memory_space<vmem>>, vector<1x32x128xbf16>
    %243 = vector.shape_cast %242 : vector<1x32x128xbf16> to vector<32x128xbf16>
    %cst_144 = arith.constant dense<0.000000e+00> : vector<16x128xf32>
    %244 = tpu.matmul %241, %243, %cst_144 {dimension_numbers = #tpu.dot_dimension_numbers<[1], [0], [0], [1], [0, 0, 1, 1], [], []>} : vector<16x32xbf16>, vector<32x128xbf16>, vector<16x128xf32> -> vector<16x128xf32>
    %c0_145 = arith.constant 0 : index
    %c0_146 = arith.constant 0 : index
    %c0_147 = arith.constant 0 : index
    %245 = vector.load %arg16[%c0_145, %c0_146, %c0_147] : memref<2x1x128xf32, #tpu.memory_space<vmem>>, vector<1x1x128xf32>
    %246 = vector.shape_cast %245 : vector<1x1x128xf32> to vector<1x128xf32>
    %247 = vector.broadcast %246 : vector<1x128xf32> to vector<16x128xf32>
    %248 = arith.addf %244, %247 : vector<16x128xf32>
    %cst_148 = arith.constant 5.000000e-01 : f32
    %249 = vector.broadcast %cst_148 : f32 to vector<16x128xf32>
    %250 = arith.mulf %249, %248 : vector<16x128xf32>
    %cst_149 = arith.constant 4.471500e-02 : f32
    %251 = vector.broadcast %cst_149 : f32 to vector<16x128xf32>
    %252 = arith.mulf %251, %248 : vector<16x128xf32>
    %253 = arith.mulf %252, %248 : vector<16x128xf32>
    %254 = arith.mulf %253, %248 : vector<16x128xf32>
    %255 = arith.addf %248, %254 : vector<16x128xf32>
    %cst_150 = arith.constant 0.797884583 : f32
    %256 = vector.broadcast %cst_150 : f32 to vector<16x128xf32>
    %257 = arith.mulf %256, %255 : vector<16x128xf32>
    %258 = math.tanh %257 : vector<16x128xf32>
    %cst_151 = arith.constant 1.000000e+00 : f32
    %259 = vector.broadcast %cst_151 : f32 to vector<16x128xf32>
    %260 = arith.addf %259, %258 : vector<16x128xf32>
    %261 = arith.mulf %250, %260 : vector<16x128xf32>
    %262 = arith.truncf %261 : vector<16x128xf32> to vector<16x128xbf16>
    %c0_152 = arith.constant 0 : index
    %c0_153 = arith.constant 0 : index
    %c0_154 = arith.constant 0 : index
    %263 = vector.load %arg17[%c0_152, %c0_153, %c0_154] : memref<2x128x32xbf16, #tpu.memory_space<vmem>>, vector<1x128x32xbf16>
    %264 = vector.shape_cast %263 : vector<1x128x32xbf16> to vector<128x32xbf16>
    %cst_155 = arith.constant dense<0.000000e+00> : vector<16x32xf32>
    %265 = tpu.matmul %262, %264, %cst_155 {dimension_numbers = #tpu.dot_dimension_numbers<[1], [0], [0], [1], [0, 0, 1, 1], [], []>} : vector<16x128xbf16>, vector<128x32xbf16>, vector<16x32xf32> -> vector<16x32xf32>
    %c0_156 = arith.constant 0 : index
    %c0_157 = arith.constant 0 : index
    %c0_158 = arith.constant 0 : index
    %266 = vector.load %arg18[%c0_156, %c0_157, %c0_158] : memref<2x1x32xf32, #tpu.memory_space<vmem>>, vector<1x1x32xf32>
    %267 = vector.shape_cast %266 : vector<1x1x32xf32> to vector<1x32xf32>
    %268 = vector.broadcast %267 : vector<1x32xf32> to vector<16x32xf32>
    %269 = arith.addf %265, %268 : vector<16x32xf32>
    %270 = arith.addf %269, %240 : vector<16x32xf32>
    %c0_159 = arith.constant 0 : index
    %c0_160 = arith.constant 0 : index
    %c0_161 = arith.constant 0 : index
    %271 = vector.load %arg19[%c0_159, %c0_160, %c0_161] : memref<2x1x32xf32, #tpu.memory_space<vmem>>, vector<1x1x32xf32>
    %272 = vector.shape_cast %271 : vector<1x1x32xf32> to vector<1x32xf32>
    %c0_162 = arith.constant 0 : index
    %c0_163 = arith.constant 0 : index
    %c0_164 = arith.constant 0 : index
    %273 = vector.load %arg20[%c0_162, %c0_163, %c0_164] : memref<2x1x32xf32, #tpu.memory_space<vmem>>, vector<1x1x32xf32>
    %274 = vector.shape_cast %273 : vector<1x1x32xf32> to vector<1x32xf32>
    %cst_165 = arith.constant dense<0.000000e+00> : vector<16xf32>
    %275 = vector.multi_reduction <add>, %270, %cst_165 [1] : vector<16x32xf32> to vector<16xf32>
    %276 = vector.shape_cast %275 : vector<16xf32> to vector<16x1xf32>
    %cst_166 = arith.constant 3.200000e+01 : f32
    %277 = vector.broadcast %cst_166 : f32 to vector<16x1xf32>
    %278 = arith.divf %276, %277 : vector<16x1xf32>
    %279 = vector.broadcast %278 : vector<16x1xf32> to vector<16x32xf32>
    %280 = arith.subf %270, %279 : vector<16x32xf32>
    %281 = vector.broadcast %278 : vector<16x1xf32> to vector<16x32xf32>
    %282 = arith.subf %270, %281 : vector<16x32xf32>
    %283 = arith.mulf %280, %282 : vector<16x32xf32>
    %cst_167 = arith.constant dense<0.000000e+00> : vector<16xf32>
    %284 = vector.multi_reduction <add>, %283, %cst_167 [1] : vector<16x32xf32> to vector<16xf32>
    %285 = vector.shape_cast %284 : vector<16xf32> to vector<16x1xf32>
    %cst_168 = arith.constant 3.200000e+01 : f32
    %286 = vector.broadcast %cst_168 : f32 to vector<16x1xf32>
    %287 = arith.divf %285, %286 : vector<16x1xf32>
    %288 = vector.broadcast %278 : vector<16x1xf32> to vector<16x32xf32>
    %289 = arith.subf %270, %288 : vector<16x32xf32>
    %cst_169 = arith.constant 9.99999996E-13 : f32
    %290 = vector.broadcast %cst_169 : f32 to vector<16x1xf32>
    %291 = arith.addf %287, %290 : vector<16x1xf32>
    %292 = math.rsqrt %291 : vector<16x1xf32>
    %293 = vector.broadcast %292 : vector<16x1xf32> to vector<16x32xf32>
    %294 = arith.mulf %289, %293 : vector<16x32xf32>
    %295 = vector.broadcast %272 : vector<1x32xf32> to vector<16x32xf32>
    %296 = arith.mulf %294, %295 : vector<16x32xf32>
    %297 = vector.broadcast %274 : vector<1x32xf32> to vector<16x32xf32>
    %298 = arith.addf %296, %297 : vector<16x32xf32>
    %299 = arith.truncf %298 : vector<16x32xf32> to vector<16x32xbf16>
    %cst_170 = arith.constant 0.000000e+00 : f32
    %300 = vector.broadcast %cst_170 : f32 to vector<16x32xf32>
    %c4 = arith.constant 4 : index
    %c0_171 = arith.constant 0 : index
    %c0_172 = arith.constant 0 : index
    %301 = vector.load %arg5[%c4, %c0_171, %c0_172] : memref<8x32x8xbf16, #tpu.memory_space<vmem>>, vector<1x32x8xbf16>
    %302 = vector.shape_cast %301 : vector<1x32x8xbf16> to vector<32x8xbf16>
    %cst_173 = arith.constant dense<0.000000e+00> : vector<16x8xf32>
    %303 = tpu.matmul %299, %302, %cst_173 {dimension_numbers = #tpu.dot_dimension_numbers<[1], [0], [0], [1], [0, 0, 1, 1], [], []>} : vector<16x32xbf16>, vector<32x8xbf16>, vector<16x8xf32> -> vector<16x8xf32>
    %c4_174 = arith.constant 4 : index
    %c0_175 = arith.constant 0 : index
    %c0_176 = arith.constant 0 : index
    %304 = vector.load %arg6[%c4_174, %c0_175, %c0_176] : memref<8x1x8xf32, #tpu.memory_space<vmem>>, vector<1x1x8xf32>
    %305 = vector.shape_cast %304 : vector<1x1x8xf32> to vector<1x8xf32>
    %306 = vector.broadcast %305 : vector<1x8xf32> to vector<16x8xf32>
    %307 = arith.addf %303, %306 : vector<16x8xf32>
    %c4_177 = arith.constant 4 : index
    %c0_178 = arith.constant 0 : index
    %c0_179 = arith.constant 0 : index
    %308 = vector.load %arg7[%c4_177, %c0_178, %c0_179] : memref<8x32x8xbf16, #tpu.memory_space<vmem>>, vector<1x32x8xbf16>
    %309 = vector.shape_cast %308 : vector<1x32x8xbf16> to vector<32x8xbf16>
    %cst_180 = arith.constant dense<0.000000e+00> : vector<16x8xf32>
    %310 = tpu.matmul %299, %309, %cst_180 {dimension_numbers = #tpu.dot_dimension_numbers<[1], [0], [0], [1], [0, 0, 1, 1], [], []>} : vector<16x32xbf16>, vector<32x8xbf16>, vector<16x8xf32> -> vector<16x8xf32>
    %c4_181 = arith.constant 4 : index
    %c0_182 = arith.constant 0 : index
    %c0_183 = arith.constant 0 : index
    %311 = vector.load %arg8[%c4_181, %c0_182, %c0_183] : memref<8x1x8xf32, #tpu.memory_space<vmem>>, vector<1x1x8xf32>
    %312 = vector.shape_cast %311 : vector<1x1x8xf32> to vector<1x8xf32>
    %313 = vector.broadcast %312 : vector<1x8xf32> to vector<16x8xf32>
    %314 = arith.addf %310, %313 : vector<16x8xf32>
    %c4_184 = arith.constant 4 : index
    %c0_185 = arith.constant 0 : index
    %c0_186 = arith.constant 0 : index
    %315 = vector.load %arg9[%c4_184, %c0_185, %c0_186] : memref<8x32x8xbf16, #tpu.memory_space<vmem>>, vector<1x32x8xbf16>
    %316 = vector.shape_cast %315 : vector<1x32x8xbf16> to vector<32x8xbf16>
    %cst_187 = arith.constant dense<0.000000e+00> : vector<16x8xf32>
    %317 = tpu.matmul %299, %316, %cst_187 {dimension_numbers = #tpu.dot_dimension_numbers<[1], [0], [0], [1], [0, 0, 1, 1], [], []>} : vector<16x32xbf16>, vector<32x8xbf16>, vector<16x8xf32> -> vector<16x8xf32>
    %c4_188 = arith.constant 4 : index
    %c0_189 = arith.constant 0 : index
    %c0_190 = arith.constant 0 : index
    %318 = vector.load %arg10[%c4_188, %c0_189, %c0_190] : memref<8x1x8xf32, #tpu.memory_space<vmem>>, vector<1x1x8xf32>
    %319 = vector.shape_cast %318 : vector<1x1x8xf32> to vector<1x8xf32>
    %320 = vector.broadcast %319 : vector<1x8xf32> to vector<16x8xf32>
    %321 = arith.addf %317, %320 : vector<16x8xf32>
    %322 = arith.truncf %307 : vector<16x8xf32> to vector<16x8xbf16>
    %323 = arith.truncf %314 : vector<16x8xf32> to vector<16x8xbf16>
    %cst_191 = arith.constant dense<0.000000e+00> : vector<16x16xf32>
    %324 = tpu.matmul %322, %323, %cst_191 {dimension_numbers = #tpu.dot_dimension_numbers<[1], [1], [0], [0], [0, 0, 1, 0], [], []>} : vector<16x8xbf16>, vector<16x8xbf16>, vector<16x16xf32> -> vector<16x16xf32>
    %325 = vector.broadcast %29 : vector<1x16xf32> to vector<16x16xf32>
    %326 = arith.addf %324, %325 : vector<16x16xf32>
    %cst_192 = arith.constant dense<0xFF800000> : vector<16xf32>
    %327 = vector.multi_reduction <maximumf>, %326, %cst_192 [1] : vector<16x16xf32> to vector<16xf32>
    %328 = vector.shape_cast %327 : vector<16xf32> to vector<16x1xf32>
    %329 = vector.broadcast %328 : vector<16x1xf32> to vector<16x16xf32>
    %330 = arith.subf %326, %329 : vector<16x16xf32>
    %331 = math.exp %330 : vector<16x16xf32>
    %cst_193 = arith.constant dense<0.000000e+00> : vector<16xf32>
    %332 = vector.multi_reduction <add>, %331, %cst_193 [1] : vector<16x16xf32> to vector<16xf32>
    %333 = vector.shape_cast %332 : vector<16xf32> to vector<16x1xf32>
    %334 = tpu.reciprocal %333 {approx = true} : vector<16x1xf32> -> vector<16x1xf32>
    %335 = vector.broadcast %334 : vector<16x1xf32> to vector<16x16xf32>
    %336 = arith.mulf %331, %335 : vector<16x16xf32>
    %337 = arith.truncf %336 : vector<16x16xf32> to vector<16x16xbf16>
    %338 = arith.truncf %321 : vector<16x8xf32> to vector<16x8xbf16>
    %cst_194 = arith.constant dense<0.000000e+00> : vector<16x8xf32>
    %339 = tpu.matmul %337, %338, %cst_194 {dimension_numbers = #tpu.dot_dimension_numbers<[1], [0], [0], [1], [0, 0, 1, 1], [], []>} : vector<16x16xbf16>, vector<16x8xbf16>, vector<16x8xf32> -> vector<16x8xf32>
    %340 = arith.truncf %339 : vector<16x8xf32> to vector<16x8xbf16>
    %c4_195 = arith.constant 4 : index
    %c0_196 = arith.constant 0 : index
    %c0_197 = arith.constant 0 : index
    %341 = vector.load %arg11[%c4_195, %c0_196, %c0_197] : memref<8x8x32xbf16, #tpu.memory_space<vmem>>, vector<1x8x32xbf16>
    %342 = vector.shape_cast %341 : vector<1x8x32xbf16> to vector<8x32xbf16>
    %cst_198 = arith.constant dense<0.000000e+00> : vector<16x32xf32>
    %343 = tpu.matmul %340, %342, %cst_198 {dimension_numbers = #tpu.dot_dimension_numbers<[1], [0], [0], [1], [0, 0, 1, 1], [], []>} : vector<16x8xbf16>, vector<8x32xbf16>, vector<16x32xf32> -> vector<16x32xf32>
    %344 = arith.addf %300, %343 : vector<16x32xf32>
    %c5 = arith.constant 5 : index
    %c0_199 = arith.constant 0 : index
    %c0_200 = arith.constant 0 : index
    %345 = vector.load %arg5[%c5, %c0_199, %c0_200] : memref<8x32x8xbf16, #tpu.memory_space<vmem>>, vector<1x32x8xbf16>
    %346 = vector.shape_cast %345 : vector<1x32x8xbf16> to vector<32x8xbf16>
    %cst_201 = arith.constant dense<0.000000e+00> : vector<16x8xf32>
    %347 = tpu.matmul %299, %346, %cst_201 {dimension_numbers = #tpu.dot_dimension_numbers<[1], [0], [0], [1], [0, 0, 1, 1], [], []>} : vector<16x32xbf16>, vector<32x8xbf16>, vector<16x8xf32> -> vector<16x8xf32>
    %c5_202 = arith.constant 5 : index
    %c0_203 = arith.constant 0 : index
    %c0_204 = arith.constant 0 : index
    %348 = vector.load %arg6[%c5_202, %c0_203, %c0_204] : memref<8x1x8xf32, #tpu.memory_space<vmem>>, vector<1x1x8xf32>
    %349 = vector.shape_cast %348 : vector<1x1x8xf32> to vector<1x8xf32>
    %350 = vector.broadcast %349 : vector<1x8xf32> to vector<16x8xf32>
    %351 = arith.addf %347, %350 : vector<16x8xf32>
    %c5_205 = arith.constant 5 : index
    %c0_206 = arith.constant 0 : index
    %c0_207 = arith.constant 0 : index
    %352 = vector.load %arg7[%c5_205, %c0_206, %c0_207] : memref<8x32x8xbf16, #tpu.memory_space<vmem>>, vector<1x32x8xbf16>
    %353 = vector.shape_cast %352 : vector<1x32x8xbf16> to vector<32x8xbf16>
    %cst_208 = arith.constant dense<0.000000e+00> : vector<16x8xf32>
    %354 = tpu.matmul %299, %353, %cst_208 {dimension_numbers = #tpu.dot_dimension_numbers<[1], [0], [0], [1], [0, 0, 1, 1], [], []>} : vector<16x32xbf16>, vector<32x8xbf16>, vector<16x8xf32> -> vector<16x8xf32>
    %c5_209 = arith.constant 5 : index
    %c0_210 = arith.constant 0 : index
    %c0_211 = arith.constant 0 : index
    %355 = vector.load %arg8[%c5_209, %c0_210, %c0_211] : memref<8x1x8xf32, #tpu.memory_space<vmem>>, vector<1x1x8xf32>
    %356 = vector.shape_cast %355 : vector<1x1x8xf32> to vector<1x8xf32>
    %357 = vector.broadcast %356 : vector<1x8xf32> to vector<16x8xf32>
    %358 = arith.addf %354, %357 : vector<16x8xf32>
    %c5_212 = arith.constant 5 : index
    %c0_213 = arith.constant 0 : index
    %c0_214 = arith.constant 0 : index
    %359 = vector.load %arg9[%c5_212, %c0_213, %c0_214] : memref<8x32x8xbf16, #tpu.memory_space<vmem>>, vector<1x32x8xbf16>
    %360 = vector.shape_cast %359 : vector<1x32x8xbf16> to vector<32x8xbf16>
    %cst_215 = arith.constant dense<0.000000e+00> : vector<16x8xf32>
    %361 = tpu.matmul %299, %360, %cst_215 {dimension_numbers = #tpu.dot_dimension_numbers<[1], [0], [0], [1], [0, 0, 1, 1], [], []>} : vector<16x32xbf16>, vector<32x8xbf16>, vector<16x8xf32> -> vector<16x8xf32>
    %c5_216 = arith.constant 5 : index
    %c0_217 = arith.constant 0 : index
    %c0_218 = arith.constant 0 : index
    %362 = vector.load %arg10[%c5_216, %c0_217, %c0_218] : memref<8x1x8xf32, #tpu.memory_space<vmem>>, vector<1x1x8xf32>
    %363 = vector.shape_cast %362 : vector<1x1x8xf32> to vector<1x8xf32>
    %364 = vector.broadcast %363 : vector<1x8xf32> to vector<16x8xf32>
    %365 = arith.addf %361, %364 : vector<16x8xf32>
    %366 = arith.truncf %351 : vector<16x8xf32> to vector<16x8xbf16>
    %367 = arith.truncf %358 : vector<16x8xf32> to vector<16x8xbf16>
    %cst_219 = arith.constant dense<0.000000e+00> : vector<16x16xf32>
    %368 = tpu.matmul %366, %367, %cst_219 {dimension_numbers = #tpu.dot_dimension_numbers<[1], [1], [0], [0], [0, 0, 1, 0], [], []>} : vector<16x8xbf16>, vector<16x8xbf16>, vector<16x16xf32> -> vector<16x16xf32>
    %369 = vector.broadcast %29 : vector<1x16xf32> to vector<16x16xf32>
    %370 = arith.addf %368, %369 : vector<16x16xf32>
    %cst_220 = arith.constant dense<0xFF800000> : vector<16xf32>
    %371 = vector.multi_reduction <maximumf>, %370, %cst_220 [1] : vector<16x16xf32> to vector<16xf32>
    %372 = vector.shape_cast %371 : vector<16xf32> to vector<16x1xf32>
    %373 = vector.broadcast %372 : vector<16x1xf32> to vector<16x16xf32>
    %374 = arith.subf %370, %373 : vector<16x16xf32>
    %375 = math.exp %374 : vector<16x16xf32>
    %cst_221 = arith.constant dense<0.000000e+00> : vector<16xf32>
    %376 = vector.multi_reduction <add>, %375, %cst_221 [1] : vector<16x16xf32> to vector<16xf32>
    %377 = vector.shape_cast %376 : vector<16xf32> to vector<16x1xf32>
    %378 = tpu.reciprocal %377 {approx = true} : vector<16x1xf32> -> vector<16x1xf32>
    %379 = vector.broadcast %378 : vector<16x1xf32> to vector<16x16xf32>
    %380 = arith.mulf %375, %379 : vector<16x16xf32>
    %381 = arith.truncf %380 : vector<16x16xf32> to vector<16x16xbf16>
    %382 = arith.truncf %365 : vector<16x8xf32> to vector<16x8xbf16>
    %cst_222 = arith.constant dense<0.000000e+00> : vector<16x8xf32>
    %383 = tpu.matmul %381, %382, %cst_222 {dimension_numbers = #tpu.dot_dimension_numbers<[1], [0], [0], [1], [0, 0, 1, 1], [], []>} : vector<16x16xbf16>, vector<16x8xbf16>, vector<16x8xf32> -> vector<16x8xf32>
    %384 = arith.truncf %383 : vector<16x8xf32> to vector<16x8xbf16>
    %c5_223 = arith.constant 5 : index
    %c0_224 = arith.constant 0 : index
    %c0_225 = arith.constant 0 : index
    %385 = vector.load %arg11[%c5_223, %c0_224, %c0_225] : memref<8x8x32xbf16, #tpu.memory_space<vmem>>, vector<1x8x32xbf16>
    %386 = vector.shape_cast %385 : vector<1x8x32xbf16> to vector<8x32xbf16>
    %cst_226 = arith.constant dense<0.000000e+00> : vector<16x32xf32>
    %387 = tpu.matmul %384, %386, %cst_226 {dimension_numbers = #tpu.dot_dimension_numbers<[1], [0], [0], [1], [0, 0, 1, 1], [], []>} : vector<16x8xbf16>, vector<8x32xbf16>, vector<16x32xf32> -> vector<16x32xf32>
    %388 = arith.addf %344, %387 : vector<16x32xf32>
    %c6 = arith.constant 6 : index
    %c0_227 = arith.constant 0 : index
    %c0_228 = arith.constant 0 : index
    %389 = vector.load %arg5[%c6, %c0_227, %c0_228] : memref<8x32x8xbf16, #tpu.memory_space<vmem>>, vector<1x32x8xbf16>
    %390 = vector.shape_cast %389 : vector<1x32x8xbf16> to vector<32x8xbf16>
    %cst_229 = arith.constant dense<0.000000e+00> : vector<16x8xf32>
    %391 = tpu.matmul %299, %390, %cst_229 {dimension_numbers = #tpu.dot_dimension_numbers<[1], [0], [0], [1], [0, 0, 1, 1], [], []>} : vector<16x32xbf16>, vector<32x8xbf16>, vector<16x8xf32> -> vector<16x8xf32>
    %c6_230 = arith.constant 6 : index
    %c0_231 = arith.constant 0 : index
    %c0_232 = arith.constant 0 : index
    %392 = vector.load %arg6[%c6_230, %c0_231, %c0_232] : memref<8x1x8xf32, #tpu.memory_space<vmem>>, vector<1x1x8xf32>
    %393 = vector.shape_cast %392 : vector<1x1x8xf32> to vector<1x8xf32>
    %394 = vector.broadcast %393 : vector<1x8xf32> to vector<16x8xf32>
    %395 = arith.addf %391, %394 : vector<16x8xf32>
    %c6_233 = arith.constant 6 : index
    %c0_234 = arith.constant 0 : index
    %c0_235 = arith.constant 0 : index
    %396 = vector.load %arg7[%c6_233, %c0_234, %c0_235] : memref<8x32x8xbf16, #tpu.memory_space<vmem>>, vector<1x32x8xbf16>
    %397 = vector.shape_cast %396 : vector<1x32x8xbf16> to vector<32x8xbf16>
    %cst_236 = arith.constant dense<0.000000e+00> : vector<16x8xf32>
    %398 = tpu.matmul %299, %397, %cst_236 {dimension_numbers = #tpu.dot_dimension_numbers<[1], [0], [0], [1], [0, 0, 1, 1], [], []>} : vector<16x32xbf16>, vector<32x8xbf16>, vector<16x8xf32> -> vector<16x8xf32>
    %c6_237 = arith.constant 6 : index
    %c0_238 = arith.constant 0 : index
    %c0_239 = arith.constant 0 : index
    %399 = vector.load %arg8[%c6_237, %c0_238, %c0_239] : memref<8x1x8xf32, #tpu.memory_space<vmem>>, vector<1x1x8xf32>
    %400 = vector.shape_cast %399 : vector<1x1x8xf32> to vector<1x8xf32>
    %401 = vector.broadcast %400 : vector<1x8xf32> to vector<16x8xf32>
    %402 = arith.addf %398, %401 : vector<16x8xf32>
    %c6_240 = arith.constant 6 : index
    %c0_241 = arith.constant 0 : index
    %c0_242 = arith.constant 0 : index
    %403 = vector.load %arg9[%c6_240, %c0_241, %c0_242] : memref<8x32x8xbf16, #tpu.memory_space<vmem>>, vector<1x32x8xbf16>
    %404 = vector.shape_cast %403 : vector<1x32x8xbf16> to vector<32x8xbf16>
    %cst_243 = arith.constant dense<0.000000e+00> : vector<16x8xf32>
    %405 = tpu.matmul %299, %404, %cst_243 {dimension_numbers = #tpu.dot_dimension_numbers<[1], [0], [0], [1], [0, 0, 1, 1], [], []>} : vector<16x32xbf16>, vector<32x8xbf16>, vector<16x8xf32> -> vector<16x8xf32>
    %c6_244 = arith.constant 6 : index
    %c0_245 = arith.constant 0 : index
    %c0_246 = arith.constant 0 : index
    %406 = vector.load %arg10[%c6_244, %c0_245, %c0_246] : memref<8x1x8xf32, #tpu.memory_space<vmem>>, vector<1x1x8xf32>
    %407 = vector.shape_cast %406 : vector<1x1x8xf32> to vector<1x8xf32>
    %408 = vector.broadcast %407 : vector<1x8xf32> to vector<16x8xf32>
    %409 = arith.addf %405, %408 : vector<16x8xf32>
    %410 = arith.truncf %395 : vector<16x8xf32> to vector<16x8xbf16>
    %411 = arith.truncf %402 : vector<16x8xf32> to vector<16x8xbf16>
    %cst_247 = arith.constant dense<0.000000e+00> : vector<16x16xf32>
    %412 = tpu.matmul %410, %411, %cst_247 {dimension_numbers = #tpu.dot_dimension_numbers<[1], [1], [0], [0], [0, 0, 1, 0], [], []>} : vector<16x8xbf16>, vector<16x8xbf16>, vector<16x16xf32> -> vector<16x16xf32>
    %413 = vector.broadcast %29 : vector<1x16xf32> to vector<16x16xf32>
    %414 = arith.addf %412, %413 : vector<16x16xf32>
    %cst_248 = arith.constant dense<0xFF800000> : vector<16xf32>
    %415 = vector.multi_reduction <maximumf>, %414, %cst_248 [1] : vector<16x16xf32> to vector<16xf32>
    %416 = vector.shape_cast %415 : vector<16xf32> to vector<16x1xf32>
    %417 = vector.broadcast %416 : vector<16x1xf32> to vector<16x16xf32>
    %418 = arith.subf %414, %417 : vector<16x16xf32>
    %419 = math.exp %418 : vector<16x16xf32>
    %cst_249 = arith.constant dense<0.000000e+00> : vector<16xf32>
    %420 = vector.multi_reduction <add>, %419, %cst_249 [1] : vector<16x16xf32> to vector<16xf32>
    %421 = vector.shape_cast %420 : vector<16xf32> to vector<16x1xf32>
    %422 = tpu.reciprocal %421 {approx = true} : vector<16x1xf32> -> vector<16x1xf32>
    %423 = vector.broadcast %422 : vector<16x1xf32> to vector<16x16xf32>
    %424 = arith.mulf %419, %423 : vector<16x16xf32>
    %425 = arith.truncf %424 : vector<16x16xf32> to vector<16x16xbf16>
    %426 = arith.truncf %409 : vector<16x8xf32> to vector<16x8xbf16>
    %cst_250 = arith.constant dense<0.000000e+00> : vector<16x8xf32>
    %427 = tpu.matmul %425, %426, %cst_250 {dimension_numbers = #tpu.dot_dimension_numbers<[1], [0], [0], [1], [0, 0, 1, 1], [], []>} : vector<16x16xbf16>, vector<16x8xbf16>, vector<16x8xf32> -> vector<16x8xf32>
    %428 = arith.truncf %427 : vector<16x8xf32> to vector<16x8xbf16>
    %c6_251 = arith.constant 6 : index
    %c0_252 = arith.constant 0 : index
    %c0_253 = arith.constant 0 : index
    %429 = vector.load %arg11[%c6_251, %c0_252, %c0_253] : memref<8x8x32xbf16, #tpu.memory_space<vmem>>, vector<1x8x32xbf16>
    %430 = vector.shape_cast %429 : vector<1x8x32xbf16> to vector<8x32xbf16>
    %cst_254 = arith.constant dense<0.000000e+00> : vector<16x32xf32>
    %431 = tpu.matmul %428, %430, %cst_254 {dimension_numbers = #tpu.dot_dimension_numbers<[1], [0], [0], [1], [0, 0, 1, 1], [], []>} : vector<16x8xbf16>, vector<8x32xbf16>, vector<16x32xf32> -> vector<16x32xf32>
    %432 = arith.addf %388, %431 : vector<16x32xf32>
    %c7 = arith.constant 7 : index
    %c0_255 = arith.constant 0 : index
    %c0_256 = arith.constant 0 : index
    %433 = vector.load %arg5[%c7, %c0_255, %c0_256] : memref<8x32x8xbf16, #tpu.memory_space<vmem>>, vector<1x32x8xbf16>
    %434 = vector.shape_cast %433 : vector<1x32x8xbf16> to vector<32x8xbf16>
    %cst_257 = arith.constant dense<0.000000e+00> : vector<16x8xf32>
    %435 = tpu.matmul %299, %434, %cst_257 {dimension_numbers = #tpu.dot_dimension_numbers<[1], [0], [0], [1], [0, 0, 1, 1], [], []>} : vector<16x32xbf16>, vector<32x8xbf16>, vector<16x8xf32> -> vector<16x8xf32>
    %c7_258 = arith.constant 7 : index
    %c0_259 = arith.constant 0 : index
    %c0_260 = arith.constant 0 : index
    %436 = vector.load %arg6[%c7_258, %c0_259, %c0_260] : memref<8x1x8xf32, #tpu.memory_space<vmem>>, vector<1x1x8xf32>
    %437 = vector.shape_cast %436 : vector<1x1x8xf32> to vector<1x8xf32>
    %438 = vector.broadcast %437 : vector<1x8xf32> to vector<16x8xf32>
    %439 = arith.addf %435, %438 : vector<16x8xf32>
    %c7_261 = arith.constant 7 : index
    %c0_262 = arith.constant 0 : index
    %c0_263 = arith.constant 0 : index
    %440 = vector.load %arg7[%c7_261, %c0_262, %c0_263] : memref<8x32x8xbf16, #tpu.memory_space<vmem>>, vector<1x32x8xbf16>
    %441 = vector.shape_cast %440 : vector<1x32x8xbf16> to vector<32x8xbf16>
    %cst_264 = arith.constant dense<0.000000e+00> : vector<16x8xf32>
    %442 = tpu.matmul %299, %441, %cst_264 {dimension_numbers = #tpu.dot_dimension_numbers<[1], [0], [0], [1], [0, 0, 1, 1], [], []>} : vector<16x32xbf16>, vector<32x8xbf16>, vector<16x8xf32> -> vector<16x8xf32>
    %c7_265 = arith.constant 7 : index
    %c0_266 = arith.constant 0 : index
    %c0_267 = arith.constant 0 : index
    %443 = vector.load %arg8[%c7_265, %c0_266, %c0_267] : memref<8x1x8xf32, #tpu.memory_space<vmem>>, vector<1x1x8xf32>
    %444 = vector.shape_cast %443 : vector<1x1x8xf32> to vector<1x8xf32>
    %445 = vector.broadcast %444 : vector<1x8xf32> to vector<16x8xf32>
    %446 = arith.addf %442, %445 : vector<16x8xf32>
    %c7_268 = arith.constant 7 : index
    %c0_269 = arith.constant 0 : index
    %c0_270 = arith.constant 0 : index
    %447 = vector.load %arg9[%c7_268, %c0_269, %c0_270] : memref<8x32x8xbf16, #tpu.memory_space<vmem>>, vector<1x32x8xbf16>
    %448 = vector.shape_cast %447 : vector<1x32x8xbf16> to vector<32x8xbf16>
    %cst_271 = arith.constant dense<0.000000e+00> : vector<16x8xf32>
    %449 = tpu.matmul %299, %448, %cst_271 {dimension_numbers = #tpu.dot_dimension_numbers<[1], [0], [0], [1], [0, 0, 1, 1], [], []>} : vector<16x32xbf16>, vector<32x8xbf16>, vector<16x8xf32> -> vector<16x8xf32>
    %c7_272 = arith.constant 7 : index
    %c0_273 = arith.constant 0 : index
    %c0_274 = arith.constant 0 : index
    %450 = vector.load %arg10[%c7_272, %c0_273, %c0_274] : memref<8x1x8xf32, #tpu.memory_space<vmem>>, vector<1x1x8xf32>
    %451 = vector.shape_cast %450 : vector<1x1x8xf32> to vector<1x8xf32>
    %452 = vector.broadcast %451 : vector<1x8xf32> to vector<16x8xf32>
    %453 = arith.addf %449, %452 : vector<16x8xf32>
    %454 = arith.truncf %439 : vector<16x8xf32> to vector<16x8xbf16>
    %455 = arith.truncf %446 : vector<16x8xf32> to vector<16x8xbf16>
    %cst_275 = arith.constant dense<0.000000e+00> : vector<16x16xf32>
    %456 = tpu.matmul %454, %455, %cst_275 {dimension_numbers = #tpu.dot_dimension_numbers<[1], [1], [0], [0], [0, 0, 1, 0], [], []>} : vector<16x8xbf16>, vector<16x8xbf16>, vector<16x16xf32> -> vector<16x16xf32>
    %457 = vector.broadcast %29 : vector<1x16xf32> to vector<16x16xf32>
    %458 = arith.addf %456, %457 : vector<16x16xf32>
    %cst_276 = arith.constant dense<0xFF800000> : vector<16xf32>
    %459 = vector.multi_reduction <maximumf>, %458, %cst_276 [1] : vector<16x16xf32> to vector<16xf32>
    %460 = vector.shape_cast %459 : vector<16xf32> to vector<16x1xf32>
    %461 = vector.broadcast %460 : vector<16x1xf32> to vector<16x16xf32>
    %462 = arith.subf %458, %461 : vector<16x16xf32>
    %463 = math.exp %462 : vector<16x16xf32>
    %cst_277 = arith.constant dense<0.000000e+00> : vector<16xf32>
    %464 = vector.multi_reduction <add>, %463, %cst_277 [1] : vector<16x16xf32> to vector<16xf32>
    %465 = vector.shape_cast %464 : vector<16xf32> to vector<16x1xf32>
    %466 = tpu.reciprocal %465 {approx = true} : vector<16x1xf32> -> vector<16x1xf32>
    %467 = vector.broadcast %466 : vector<16x1xf32> to vector<16x16xf32>
    %468 = arith.mulf %463, %467 : vector<16x16xf32>
    %469 = arith.truncf %468 : vector<16x16xf32> to vector<16x16xbf16>
    %470 = arith.truncf %453 : vector<16x8xf32> to vector<16x8xbf16>
    %cst_278 = arith.constant dense<0.000000e+00> : vector<16x8xf32>
    %471 = tpu.matmul %469, %470, %cst_278 {dimension_numbers = #tpu.dot_dimension_numbers<[1], [0], [0], [1], [0, 0, 1, 1], [], []>} : vector<16x16xbf16>, vector<16x8xbf16>, vector<16x8xf32> -> vector<16x8xf32>
    %472 = arith.truncf %471 : vector<16x8xf32> to vector<16x8xbf16>
    %c7_279 = arith.constant 7 : index
    %c0_280 = arith.constant 0 : index
    %c0_281 = arith.constant 0 : index
    %473 = vector.load %arg11[%c7_279, %c0_280, %c0_281] : memref<8x8x32xbf16, #tpu.memory_space<vmem>>, vector<1x8x32xbf16>
    %474 = vector.shape_cast %473 : vector<1x8x32xbf16> to vector<8x32xbf16>
    %cst_282 = arith.constant dense<0.000000e+00> : vector<16x32xf32>
    %475 = tpu.matmul %472, %474, %cst_282 {dimension_numbers = #tpu.dot_dimension_numbers<[1], [0], [0], [1], [0, 0, 1, 1], [], []>} : vector<16x8xbf16>, vector<8x32xbf16>, vector<16x32xf32> -> vector<16x32xf32>
    %476 = arith.addf %432, %475 : vector<16x32xf32>
    %c1_283 = arith.constant 1 : index
    %c0_284 = arith.constant 0 : index
    %c0_285 = arith.constant 0 : index
    %477 = vector.load %arg12[%c1_283, %c0_284, %c0_285] : memref<2x1x32xf32, #tpu.memory_space<vmem>>, vector<1x1x32xf32>
    %478 = vector.shape_cast %477 : vector<1x1x32xf32> to vector<1x32xf32>
    %479 = vector.broadcast %478 : vector<1x32xf32> to vector<16x32xf32>
    %480 = arith.addf %476, %479 : vector<16x32xf32>
    %481 = arith.addf %480, %298 : vector<16x32xf32>
    %c1_286 = arith.constant 1 : index
    %c0_287 = arith.constant 0 : index
    %c0_288 = arith.constant 0 : index
    %482 = vector.load %arg13[%c1_286, %c0_287, %c0_288] : memref<2x1x32xf32, #tpu.memory_space<vmem>>, vector<1x1x32xf32>
    %483 = vector.shape_cast %482 : vector<1x1x32xf32> to vector<1x32xf32>
    %c1_289 = arith.constant 1 : index
    %c0_290 = arith.constant 0 : index
    %c0_291 = arith.constant 0 : index
    %484 = vector.load %arg14[%c1_289, %c0_290, %c0_291] : memref<2x1x32xf32, #tpu.memory_space<vmem>>, vector<1x1x32xf32>
    %485 = vector.shape_cast %484 : vector<1x1x32xf32> to vector<1x32xf32>
    %cst_292 = arith.constant dense<0.000000e+00> : vector<16xf32>
    %486 = vector.multi_reduction <add>, %481, %cst_292 [1] : vector<16x32xf32> to vector<16xf32>
    %487 = vector.shape_cast %486 : vector<16xf32> to vector<16x1xf32>
    %cst_293 = arith.constant 3.200000e+01 : f32
    %488 = vector.broadcast %cst_293 : f32 to vector<16x1xf32>
    %489 = arith.divf %487, %488 : vector<16x1xf32>
    %490 = vector.broadcast %489 : vector<16x1xf32> to vector<16x32xf32>
    %491 = arith.subf %481, %490 : vector<16x32xf32>
    %492 = vector.broadcast %489 : vector<16x1xf32> to vector<16x32xf32>
    %493 = arith.subf %481, %492 : vector<16x32xf32>
    %494 = arith.mulf %491, %493 : vector<16x32xf32>
    %cst_294 = arith.constant dense<0.000000e+00> : vector<16xf32>
    %495 = vector.multi_reduction <add>, %494, %cst_294 [1] : vector<16x32xf32> to vector<16xf32>
    %496 = vector.shape_cast %495 : vector<16xf32> to vector<16x1xf32>
    %cst_295 = arith.constant 3.200000e+01 : f32
    %497 = vector.broadcast %cst_295 : f32 to vector<16x1xf32>
    %498 = arith.divf %496, %497 : vector<16x1xf32>
    %499 = vector.broadcast %489 : vector<16x1xf32> to vector<16x32xf32>
    %500 = arith.subf %481, %499 : vector<16x32xf32>
    %cst_296 = arith.constant 9.99999996E-13 : f32
    %501 = vector.broadcast %cst_296 : f32 to vector<16x1xf32>
    %502 = arith.addf %498, %501 : vector<16x1xf32>
    %503 = math.rsqrt %502 : vector<16x1xf32>
    %504 = vector.broadcast %503 : vector<16x1xf32> to vector<16x32xf32>
    %505 = arith.mulf %500, %504 : vector<16x32xf32>
    %506 = vector.broadcast %483 : vector<1x32xf32> to vector<16x32xf32>
    %507 = arith.mulf %505, %506 : vector<16x32xf32>
    %508 = vector.broadcast %485 : vector<1x32xf32> to vector<16x32xf32>
    %509 = arith.addf %507, %508 : vector<16x32xf32>
    %510 = arith.truncf %509 : vector<16x32xf32> to vector<16x32xbf16>
    %c1_297 = arith.constant 1 : index
    %c0_298 = arith.constant 0 : index
    %c0_299 = arith.constant 0 : index
    %511 = vector.load %arg15[%c1_297, %c0_298, %c0_299] : memref<2x32x128xbf16, #tpu.memory_space<vmem>>, vector<1x32x128xbf16>
    %512 = vector.shape_cast %511 : vector<1x32x128xbf16> to vector<32x128xbf16>
    %cst_300 = arith.constant dense<0.000000e+00> : vector<16x128xf32>
    %513 = tpu.matmul %510, %512, %cst_300 {dimension_numbers = #tpu.dot_dimension_numbers<[1], [0], [0], [1], [0, 0, 1, 1], [], []>} : vector<16x32xbf16>, vector<32x128xbf16>, vector<16x128xf32> -> vector<16x128xf32>
    %c1_301 = arith.constant 1 : index
    %c0_302 = arith.constant 0 : index
    %c0_303 = arith.constant 0 : index
    %514 = vector.load %arg16[%c1_301, %c0_302, %c0_303] : memref<2x1x128xf32, #tpu.memory_space<vmem>>, vector<1x1x128xf32>
    %515 = vector.shape_cast %514 : vector<1x1x128xf32> to vector<1x128xf32>
    %516 = vector.broadcast %515 : vector<1x128xf32> to vector<16x128xf32>
    %517 = arith.addf %513, %516 : vector<16x128xf32>
    %cst_304 = arith.constant 5.000000e-01 : f32
    %518 = vector.broadcast %cst_304 : f32 to vector<16x128xf32>
    %519 = arith.mulf %518, %517 : vector<16x128xf32>
    %cst_305 = arith.constant 4.471500e-02 : f32
    %520 = vector.broadcast %cst_305 : f32 to vector<16x128xf32>
    %521 = arith.mulf %520, %517 : vector<16x128xf32>
    %522 = arith.mulf %521, %517 : vector<16x128xf32>
    %523 = arith.mulf %522, %517 : vector<16x128xf32>
    %524 = arith.addf %517, %523 : vector<16x128xf32>
    %cst_306 = arith.constant 0.797884583 : f32
    %525 = vector.broadcast %cst_306 : f32 to vector<16x128xf32>
    %526 = arith.mulf %525, %524 : vector<16x128xf32>
    %527 = math.tanh %526 : vector<16x128xf32>
    %cst_307 = arith.constant 1.000000e+00 : f32
    %528 = vector.broadcast %cst_307 : f32 to vector<16x128xf32>
    %529 = arith.addf %528, %527 : vector<16x128xf32>
    %530 = arith.mulf %519, %529 : vector<16x128xf32>
    %531 = arith.truncf %530 : vector<16x128xf32> to vector<16x128xbf16>
    %c1_308 = arith.constant 1 : index
    %c0_309 = arith.constant 0 : index
    %c0_310 = arith.constant 0 : index
    %532 = vector.load %arg17[%c1_308, %c0_309, %c0_310] : memref<2x128x32xbf16, #tpu.memory_space<vmem>>, vector<1x128x32xbf16>
    %533 = vector.shape_cast %532 : vector<1x128x32xbf16> to vector<128x32xbf16>
    %cst_311 = arith.constant dense<0.000000e+00> : vector<16x32xf32>
    %534 = tpu.matmul %531, %533, %cst_311 {dimension_numbers = #tpu.dot_dimension_numbers<[1], [0], [0], [1], [0, 0, 1, 1], [], []>} : vector<16x128xbf16>, vector<128x32xbf16>, vector<16x32xf32> -> vector<16x32xf32>
    %c1_312 = arith.constant 1 : index
    %c0_313 = arith.constant 0 : index
    %c0_314 = arith.constant 0 : index
    %535 = vector.load %arg18[%c1_312, %c0_313, %c0_314] : memref<2x1x32xf32, #tpu.memory_space<vmem>>, vector<1x1x32xf32>
    %536 = vector.shape_cast %535 : vector<1x1x32xf32> to vector<1x32xf32>
    %537 = vector.broadcast %536 : vector<1x32xf32> to vector<16x32xf32>
    %538 = arith.addf %534, %537 : vector<16x32xf32>
    %539 = arith.addf %538, %509 : vector<16x32xf32>
    %c1_315 = arith.constant 1 : index
    %c0_316 = arith.constant 0 : index
    %c0_317 = arith.constant 0 : index
    %540 = vector.load %arg19[%c1_315, %c0_316, %c0_317] : memref<2x1x32xf32, #tpu.memory_space<vmem>>, vector<1x1x32xf32>
    %541 = vector.shape_cast %540 : vector<1x1x32xf32> to vector<1x32xf32>
    %c1_318 = arith.constant 1 : index
    %c0_319 = arith.constant 0 : index
    %c0_320 = arith.constant 0 : index
    %542 = vector.load %arg20[%c1_318, %c0_319, %c0_320] : memref<2x1x32xf32, #tpu.memory_space<vmem>>, vector<1x1x32xf32>
    %543 = vector.shape_cast %542 : vector<1x1x32xf32> to vector<1x32xf32>
    %cst_321 = arith.constant dense<0.000000e+00> : vector<16xf32>
    %544 = vector.multi_reduction <add>, %539, %cst_321 [1] : vector<16x32xf32> to vector<16xf32>
    %545 = vector.shape_cast %544 : vector<16xf32> to vector<16x1xf32>
    %cst_322 = arith.constant 3.200000e+01 : f32
    %546 = vector.broadcast %cst_322 : f32 to vector<16x1xf32>
    %547 = arith.divf %545, %546 : vector<16x1xf32>
    %548 = vector.broadcast %547 : vector<16x1xf32> to vector<16x32xf32>
    %549 = arith.subf %539, %548 : vector<16x32xf32>
    %550 = vector.broadcast %547 : vector<16x1xf32> to vector<16x32xf32>
    %551 = arith.subf %539, %550 : vector<16x32xf32>
    %552 = arith.mulf %549, %551 : vector<16x32xf32>
    %cst_323 = arith.constant dense<0.000000e+00> : vector<16xf32>
    %553 = vector.multi_reduction <add>, %552, %cst_323 [1] : vector<16x32xf32> to vector<16xf32>
    %554 = vector.shape_cast %553 : vector<16xf32> to vector<16x1xf32>
    %cst_324 = arith.constant 3.200000e+01 : f32
    %555 = vector.broadcast %cst_324 : f32 to vector<16x1xf32>
    %556 = arith.divf %554, %555 : vector<16x1xf32>
    %557 = vector.broadcast %547 : vector<16x1xf32> to vector<16x32xf32>
    %558 = arith.subf %539, %557 : vector<16x32xf32>
    %cst_325 = arith.constant 9.99999996E-13 : f32
    %559 = vector.broadcast %cst_325 : f32 to vector<16x1xf32>
    %560 = arith.addf %556, %559 : vector<16x1xf32>
    %561 = math.rsqrt %560 : vector<16x1xf32>
    %562 = vector.broadcast %561 : vector<16x1xf32> to vector<16x32xf32>
    %563 = arith.mulf %558, %562 : vector<16x32xf32>
    %564 = vector.broadcast %541 : vector<1x32xf32> to vector<16x32xf32>
    %565 = arith.mulf %563, %564 : vector<16x32xf32>
    %566 = vector.broadcast %543 : vector<1x32xf32> to vector<16x32xf32>
    %567 = arith.addf %565, %566 : vector<16x32xf32>
    %568 = vector.extract_strided_slice %567 {offsets = [0, 0], sizes = [1, 32], strides = [1, 1]} : vector<16x32xf32> to vector<1x32xf32>
    %569 = arith.truncf %568 : vector<1x32xf32> to vector<1x32xbf16>
    %c0_326 = arith.constant 0 : index
    %c0_327 = arith.constant 0 : index
    %570 = vector.load %arg21[%c0_326, %c0_327] : memref<32x32xbf16, #tpu.memory_space<vmem>>, vector<32x32xbf16>
    %cst_328 = arith.constant dense<0.000000e+00> : vector<1x32xf32>
    %571 = tpu.matmul %569, %570, %cst_328 {dimension_numbers = #tpu.dot_dimension_numbers<[1], [0], [0], [1], [0, 0, 1, 1], [], []>} : vector<1x32xbf16>, vector<32x32xbf16>, vector<1x32xf32> -> vector<1x32xf32>
    %c0_329 = arith.constant 0 : index
    %c0_330 = arith.constant 0 : index
    %572 = vector.load %arg22[%c0_329, %c0_330] : memref<1x32xf32, #tpu.memory_space<vmem>>, vector<1x32xf32>
    %573 = arith.addf %571, %572 : vector<1x32xf32>
    %cst_331 = arith.constant 5.000000e-01 : f32
    %574 = vector.broadcast %cst_331 : f32 to vector<1x32xf32>
    %575 = arith.mulf %574, %573 : vector<1x32xf32>
    %cst_332 = arith.constant 4.471500e-02 : f32
    %576 = vector.broadcast %cst_332 : f32 to vector<1x32xf32>
    %577 = arith.mulf %576, %573 : vector<1x32xf32>
    %578 = arith.mulf %577, %573 : vector<1x32xf32>
    %579 = arith.mulf %578, %573 : vector<1x32xf32>
    %580 = arith.addf %573, %579 : vector<1x32xf32>
    %cst_333 = arith.constant 0.797884583 : f32
    %581 = vector.broadcast %cst_333 : f32 to vector<1x32xf32>
    %582 = arith.mulf %581, %580 : vector<1x32xf32>
    %583 = math.tanh %582 : vector<1x32xf32>
    %cst_334 = arith.constant 1.000000e+00 : f32
    %584 = vector.broadcast %cst_334 : f32 to vector<1x32xf32>
    %585 = arith.addf %584, %583 : vector<1x32xf32>
    %586 = arith.mulf %575, %585 : vector<1x32xf32>
    %c0_335 = arith.constant 0 : index
    %c0_336 = arith.constant 0 : index
    %587 = vector.load %arg23[%c0_335, %c0_336] : memref<1x32xf32, #tpu.memory_space<vmem>>, vector<1x32xf32>
    %c0_337 = arith.constant 0 : index
    %c0_338 = arith.constant 0 : index
    %588 = vector.load %arg24[%c0_337, %c0_338] : memref<1x32xf32, #tpu.memory_space<vmem>>, vector<1x32xf32>
    %cst_339 = arith.constant dense<0.000000e+00> : vector<1xf32>
    %589 = vector.multi_reduction <add>, %586, %cst_339 [1] : vector<1x32xf32> to vector<1xf32>
    %590 = vector.shape_cast %589 : vector<1xf32> to vector<1x1xf32>
    %cst_340 = arith.constant 3.200000e+01 : f32
    %591 = vector.broadcast %cst_340 : f32 to vector<1x1xf32>
    %592 = arith.divf %590, %591 : vector<1x1xf32>
    %593 = vector.broadcast %592 : vector<1x1xf32> to vector<1x32xf32>
    %594 = arith.subf %586, %593 : vector<1x32xf32>
    %595 = vector.broadcast %592 : vector<1x1xf32> to vector<1x32xf32>
    %596 = arith.subf %586, %595 : vector<1x32xf32>
    %597 = arith.mulf %594, %596 : vector<1x32xf32>
    %cst_341 = arith.constant dense<0.000000e+00> : vector<1xf32>
    %598 = vector.multi_reduction <add>, %597, %cst_341 [1] : vector<1x32xf32> to vector<1xf32>
    %599 = vector.shape_cast %598 : vector<1xf32> to vector<1x1xf32>
    %cst_342 = arith.constant 3.200000e+01 : f32
    %600 = vector.broadcast %cst_342 : f32 to vector<1x1xf32>
    %601 = arith.divf %599, %600 : vector<1x1xf32>
    %602 = vector.broadcast %592 : vector<1x1xf32> to vector<1x32xf32>
    %603 = arith.subf %586, %602 : vector<1x32xf32>
    %cst_343 = arith.constant 9.99999996E-13 : f32
    %604 = vector.broadcast %cst_343 : f32 to vector<1x1xf32>
    %605 = arith.addf %601, %604 : vector<1x1xf32>
    %606 = math.rsqrt %605 : vector<1x1xf32>
    %607 = vector.broadcast %606 : vector<1x1xf32> to vector<1x32xf32>
    %608 = arith.mulf %603, %607 : vector<1x32xf32>
    %609 = arith.mulf %608, %587 : vector<1x32xf32>
    %610 = arith.addf %609, %588 : vector<1x32xf32>
    %611 = arith.truncf %610 : vector<1x32xf32> to vector<1x32xbf16>
    %c0_344 = arith.constant 0 : index
    %c0_345 = arith.constant 0 : index
    %612 = vector.load %arg25[%c0_344, %c0_345] : memref<32x32xbf16, #tpu.memory_space<vmem>>, vector<32x32xbf16>
    %cst_346 = arith.constant dense<0.000000e+00> : vector<1x32xf32>
    %613 = tpu.matmul %611, %612, %cst_346 {dimension_numbers = #tpu.dot_dimension_numbers<[1], [0], [0], [1], [0, 0, 1, 1], [], []>} : vector<1x32xbf16>, vector<32x32xbf16>, vector<1x32xf32> -> vector<1x32xf32>
    %c0_347 = arith.constant 0 : index
    %c0_348 = arith.constant 0 : index
    %614 = vector.load %arg26[%c0_347, %c0_348] : memref<1x32xf32, #tpu.memory_space<vmem>>, vector<1x32xf32>
    %615 = arith.addf %613, %614 : vector<1x32xf32>
    %c0_349 = arith.constant 0 : index
    %c0_350 = arith.constant 0 : index
    %c0_351 = arith.constant 0 : index
    %616 = vector.load %arg27[%c0_349, %c0_350, %c0_351] : memref<1x1x32xf32, #tpu.memory_space<vmem>>, vector<1x1x32xf32>
    %617 = vector.shape_cast %616 : vector<1x1x32xf32> to vector<1x32xf32>
    %618 = vector.shape_cast %615 : vector<1x32xf32> to vector<1x1x32xf32>
    tpu.vector_store %arg27[%c0_349, %c0_350, %c0_351], %618 {strides = array<i32>} : memref<1x1x32xf32, #tpu.memory_space<vmem>>, vector<1x1x32xf32>,
    return
  }
  func.func @transform_0(%arg0: i32) -> (i32, i32, i32) {
    %c0_i32 = arith.constant 0 : i32
    %c0_i32_0 = arith.constant 0 : i32
    %c0_i32_1 = arith.constant 0 : i32
    return %arg0, %c0_i32, %c0_i32_0 : i32, i32, i32
  }
  func.func @transform_1(%arg0: i32) -> (i32, i32, i32) {
    %c0_i32 = arith.constant 0 : i32
    %c0_i32_0 = arith.constant 0 : i32
    %c0_i32_1 = arith.constant 0 : i32
    return %arg0, %c0_i32, %c0_i32_0 : i32, i32, i32
  }
  func.func @transform_2(%arg0: i32) -> (i32, i32) {
    %c0_i32 = arith.constant 0 : i32
    %c0_i32_0 = arith.constant 0 : i32
    %c0_i32_1 = arith.constant 0 : i32
    return %c0_i32, %c0_i32_0 : i32, i32
  }
  func.func @transform_3(%arg0: i32) -> (i32, i32) {
    %c0_i32 = arith.constant 0 : i32
    %c0_i32_0 = arith.constant 0 : i32
    %c0_i32_1 = arith.constant 0 : i32
    return %c0_i32, %c0_i32_0 : i32, i32
  }
  func.func @transform_4(%arg0: i32) -> (i32, i32, i32) {
    %c0_i32 = arith.constant 0 : i32
    %c0_i32_0 = arith.constant 0 : i32
    %c0_i32_1 = arith.constant 0 : i32
    %c0_i32_2 = arith.constant 0 : i32
    return %c0_i32, %c0_i32_0, %c0_i32_1 : i32, i32, i32
  }
  func.func @transform_5(%arg0: i32) -> (i32, i32, i32) {
    %c0_i32 = arith.constant 0 : i32
    %c0_i32_0 = arith.constant 0 : i32
    %c0_i32_1 = arith.constant 0 : i32
    %c0_i32_2 = arith.constant 0 : i32
    return %c0_i32, %c0_i32_0, %c0_i32_1 : i32, i32, i32
  }
  func.func @transform_6(%arg0: i32) -> (i32, i32, i32) {
    %c0_i32 = arith.constant 0 : i32
    %c0_i32_0 = arith.constant 0 : i32
    %c0_i32_1 = arith.constant 0 : i32
    %c0_i32_2 = arith.constant 0 : i32
    return %c0_i32, %c0_i32_0, %c0_i32_1 : i32, i32, i32
  }
  func.func @transform_7(%arg0: i32) -> (i32, i32, i32) {
    %c0_i32 = arith.constant 0 : i32
    %c0_i32_0 = arith.constant 0 : i32
    %c0_i32_1 = arith.constant 0 : i32
    %c0_i32_2 = arith.constant 0 : i32
    return %c0_i32, %c0_i32_0, %c0_i32_1 : i32, i32, i32
  }
  func.func @transform_8(%arg0: i32) -> (i32, i32, i32) {
    %c0_i32 = arith.constant 0 : i32
    %c0_i32_0 = arith.constant 0 : i32
    %c0_i32_1 = arith.constant 0 : i32
    %c0_i32_2 = arith.constant 0 : i32
    return %c0_i32, %c0_i32_0, %c0_i32_1 : i32, i32, i32
  }
  func.func @transform_9(%arg0: i32) -> (i32, i32, i32) {
    %c0_i32 = arith.constant 0 : i32
    %c0_i32_0 = arith.constant 0 : i32
    %c0_i32_1 = arith.constant 0 : i32
    %c0_i32_2 = arith.constant 0 : i32
    return %c0_i32, %c0_i32_0, %c0_i32_1 : i32, i32, i32
  }
  func.func @transform_10(%arg0: i32) -> (i32, i32, i32) {
    %c0_i32 = arith.constant 0 : i32
    %c0_i32_0 = arith.constant 0 : i32
    %c0_i32_1 = arith.constant 0 : i32
    %c0_i32_2 = arith.constant 0 : i32
    return %c0_i32, %c0_i32_0, %c0_i32_1 : i32, i32, i32
  }
  func.func @transform_11(%arg0: i32) -> (i32, i32, i32) {
    %c0_i32 = arith.constant 0 : i32
    %c0_i32_0 = arith.constant 0 : i32
    %c0_i32_1 = arith.constant 0 : i32
    %c0_i32_2 = arith.constant 0 : i32
    return %c0_i32, %c0_i32_0, %c0_i32_1 : i32, i32, i32
  }
  func.func @transform_12(%arg0: i32) -> (i32, i32, i32) {
    %c0_i32 = arith.constant 0 : i32
    %c0_i32_0 = arith.constant 0 : i32
    %c0_i32_1 = arith.constant 0 : i32
    %c0_i32_2 = arith.constant 0 : i32
    return %c0_i32, %c0_i32_0, %c0_i32_1 : i32, i32, i32
  }
  func.func @transform_13(%arg0: i32) -> (i32, i32, i32) {
    %c0_i32 = arith.constant 0 : i32
    %c0_i32_0 = arith.constant 0 : i32
    %c0_i32_1 = arith.constant 0 : i32
    %c0_i32_2 = arith.constant 0 : i32
    return %c0_i32, %c0_i32_0, %c0_i32_1 : i32, i32, i32
  }
  func.func @transform_14(%arg0: i32) -> (i32, i32, i32) {
    %c0_i32 = arith.constant 0 : i32
    %c0_i32_0 = arith.constant 0 : i32
    %c0_i32_1 = arith.constant 0 : i32
    %c0_i32_2 = arith.constant 0 : i32
    return %c0_i32, %c0_i32_0, %c0_i32_1 : i32, i32, i32
  }
  func.func @transform_15(%arg0: i32) -> (i32, i32, i32) {
    %c0_i32 = arith.constant 0 : i32
    %c0_i32_0 = arith.constant 0 : i32
    %c0_i32_1 = arith.constant 0 : i32
    %c0_i32_2 = arith.constant 0 : i32
    return %c0_i32, %c0_i32_0, %c0_i32_1 : i32, i32, i32
  }
  func.func @transform_16(%arg0: i32) -> (i32, i32, i32) {
    %c0_i32 = arith.constant 0 : i32
    %c0_i32_0 = arith.constant 0 : i32
    %c0_i32_1 = arith.constant 0 : i32
    %c0_i32_2 = arith.constant 0 : i32
    return %c0_i32, %c0_i32_0, %c0_i32_1 : i32, i32, i32
  }
  func.func @transform_17(%arg0: i32) -> (i32, i32, i32) {
    %c0_i32 = arith.constant 0 : i32
    %c0_i32_0 = arith.constant 0 : i32
    %c0_i32_1 = arith.constant 0 : i32
    %c0_i32_2 = arith.constant 0 : i32
    return %c0_i32, %c0_i32_0, %c0_i32_1 : i32, i32, i32
  }
  func.func @transform_18(%arg0: i32) -> (i32, i32, i32) {
    %c0_i32 = arith.constant 0 : i32
    %c0_i32_0 = arith.constant 0 : i32
    %c0_i32_1 = arith.constant 0 : i32
    %c0_i32_2 = arith.constant 0 : i32
    return %c0_i32, %c0_i32_0, %c0_i32_1 : i32, i32, i32
  }
  func.func @transform_19(%arg0: i32) -> (i32, i32, i32) {
    %c0_i32 = arith.constant 0 : i32
    %c0_i32_0 = arith.constant 0 : i32
    %c0_i32_1 = arith.constant 0 : i32
    %c0_i32_2 = arith.constant 0 : i32
    return %c0_i32, %c0_i32_0, %c0_i32_1 : i32, i32, i32
  }
  func.func @transform_20(%arg0: i32) -> (i32, i32) {
    %c0_i32 = arith.constant 0 : i32
    %c0_i32_0 = arith.constant 0 : i32
    %c0_i32_1 = arith.constant 0 : i32
    return %c0_i32, %c0_i32_0 : i32, i32
  }
  func.func @transform_21(%arg0: i32) -> (i32, i32) {
    %c0_i32 = arith.constant 0 : i32
    %c0_i32_0 = arith.constant 0 : i32
    %c0_i32_1 = arith.constant 0 : i32
    return %c0_i32, %c0_i32_0 : i32, i32
  }
  func.func @transform_22(%arg0: i32) -> (i32, i32) {
    %c0_i32 = arith.constant 0 : i32
    %c0_i32_0 = arith.constant 0 : i32
    %c0_i32_1 = arith.constant 0 : i32
    return %c0_i32, %c0_i32_0 : i32, i32
  }
  func.func @transform_23(%arg0: i32) -> (i32, i32) {
    %c0_i32 = arith.constant 0 : i32
    %c0_i32_0 = arith.constant 0 : i32
    %c0_i32_1 = arith.constant 0 : i32
    return %c0_i32, %c0_i32_0 : i32, i32
  }
  func.func @transform_24(%arg0: i32) -> (i32, i32) {
    %c0_i32 = arith.constant 0 : i32
    %c0_i32_0 = arith.constant 0 : i32
    %c0_i32_1 = arith.constant 0 : i32
    return %c0_i32, %c0_i32_0 : i32, i32
  }
  func.func @transform_25(%arg0: i32) -> (i32, i32) {
    %c0_i32 = arith.constant 0 : i32
    %c0_i32_0 = arith.constant 0 : i32
    %c0_i32_1 = arith.constant 0 : i32
    return %c0_i32, %c0_i32_0 : i32, i32
  }
  func.func @transform_26(%arg0: i32) -> (i32, i32, i32) {
    %c0_i32 = arith.constant 0 : i32
    %c0_i32_0 = arith.constant 0 : i32
    %c0_i32_1 = arith.constant 0 : i32
    return %arg0, %c0_i32, %c0_i32_0 : i32, i32, i32
  }
}

</mosaic_0001>

<llo_original>
// kernel: mode_encoder.1
$region0: #{mode_encoder.1}
  #allocation0 [shape = 'u32[]', space=smem, size = 0x4, offset = 0x4, fixed_abs, tag = 'smem constant byte address 0x4 - core index']
  #allocation1 [shape = 'u32[144,128]{1,0:T(1,128)}', space=vmem, size = 0x12000, scoped, tag = 'internal scratch']
  %s0 = inlined_call_operand.vmem [shape: f32[2,16,32], index: 0, kind: input, shape index: {}]
  %s1 = inlined_call_operand.vmem [shape: f32[2,1,16], index: 1, kind: input, shape index: {}]
  %s2 = inlined_call_operand.vmem [shape: f32[1,32], index: 2, kind: input, shape index: {}]
  %s3 = inlined_call_operand.vmem [shape: f32[1,32], index: 3, kind: input, shape index: {}]
  %s4 = inlined_call_operand.vmem [shape: bf16[8,32,8], index: 4, kind: input, shape index: {}]
  %s5 = inlined_call_operand.vmem [shape: f32[8,1,8], index: 5, kind: input, shape index: {}]
  %s6 = inlined_call_operand.vmem [shape: bf16[8,32,8], index: 6, kind: input, shape index: {}]
  %s7 = inlined_call_operand.vmem [shape: f32[8,1,8], index: 7, kind: input, shape index: {}]
  %s8 = inlined_call_operand.vmem [shape: bf16[8,32,8], index: 8, kind: input, shape index: {}]
  %s9 = inlined_call_operand.vmem [shape: f32[8,1,8], index: 9, kind: input, shape index: {}]
  %s10 = inlined_call_operand.vmem [shape: bf16[8,8,32], index: 10, kind: input, shape index: {}]
  %s11 = inlined_call_operand.vmem [shape: f32[2,1,32], index: 11, kind: input, shape index: {}]
  %s12 = inlined_call_operand.vmem [shape: f32[2,1,32], index: 12, kind: input, shape index: {}]
  %s13 = inlined_call_operand.vmem [shape: f32[2,1,32], index: 13, kind: input, shape index: {}]
  %s14 = inlined_call_operand.vmem [shape: bf16[2,32,128], index: 14, kind: input, shape index: {}]
  %s15 = inlined_call_operand.vmem [shape: f32[2,1,128], index: 15, kind: input, shape index: {}]
  %s16 = inlined_call_operand.vmem [shape: bf16[2,128,32], index: 16, kind: input, shape index: {}]
  %s17 = inlined_call_operand.vmem [shape: f32[2,1,32], index: 17, kind: input, shape index: {}]
  %s18 = inlined_call_operand.vmem [shape: f32[2,1,32], index: 18, kind: input, shape index: {}]
  %s19 = inlined_call_operand.vmem [shape: f32[2,1,32], index: 19, kind: input, shape index: {}]
  %s20 = inlined_call_operand.vmem [shape: bf16[32,32], index: 20, kind: input, shape index: {}]
  %s21 = inlined_call_operand.vmem [shape: f32[1,32], index: 21, kind: input, shape index: {}]
  %s22 = inlined_call_operand.vmem [shape: f32[1,32], index: 22, kind: input, shape index: {}]
  %s23 = inlined_call_operand.vmem [shape: f32[1,32], index: 23, kind: input, shape index: {}]
  %s24 = inlined_call_operand.vmem [shape: bf16[32,32], index: 24, kind: input, shape index: {}]
  %s25 = inlined_call_operand.vmem [shape: f32[1,32], index: 25, kind: input, shape index: {}]
  %s26 = inlined_call_operand.hbm [shape: f32[2,1,32], index: 26, kind: output, shape index: {}]
  %s27 = sld [smem:[#allocation0]]
  $region137: #{mode_encoder.1} parent=0
    _
  %s29 = ssub.s32 1, %s27
  %s30 = scalar_select 0, %s29, %s27
  $region1: #{mode_encoder.1} parent=0
    #allocation2 [shape = 'u8[1024]{0}', space=vmem, size = 0x400, scoped, tag = 'output window, operand 0']
    #allocation3 [shape = 's32[2]{0}', space=sflag, size = 0x8, scoped, tag = 'scoped memory for mode_encoder.1']
    %31 = vsyncpa [#allocation3], 0
    %s32 = scalar_lea.sflag [#allocation3], 1
    %33 = vsyncpa %s32, 0
    loop: start=0, step=1, limit=4
    $region2: #{mode_encoder.1} parent=1 // loop_pre_header
      _
    $region3: #{mode_encoder.1} parent=1 // loop_header
      %s35 = sphi 0, %s39
      %p36 = scmp.ge.s32.totalorder %s35, 4
      %s45 = sphi 0, %s47
      %s48 = sphi 0, %s45
      %s49 = sphi 0, %s48
      %s65 = sphi 0, %s49
      %s71 = sphi 0, %s73
      %s74 = sphi 0, %s71
      %s75 = sphi 0, %s74
      %s91 = sphi 0, %s75
      %s95 = sphi 0, %s95
      %s97 = sphi 0, %s95
      %s98 = sphi 0, %s97
      %s112 = sphi 0, %s98
      %s116 = sphi 0, %s116
      %s118 = sphi 0, %s116
      %s119 = sphi 0, %s118
      %s133 = sphi 0, %s119
      %s137 = sphi 0, %s137
      %s139 = sphi 0, %s137
      %s140 = sphi 0, %s139
      %s154 = sphi 0, %s140
      %s158 = sphi 0, %s158
      %s160 = sphi 0, %s158
      %s161 = sphi 0, %s160
      %s175 = sphi 0, %s161
      %s179 = sphi 0, %s179
      %s181 = sphi 0, %s179
      %s182 = sphi 0, %s181
      %s196 = sphi 0, %s182
      %s200 = sphi 0, %s200
      %s202 = sphi 0, %s200
      %s203 = sphi 0, %s202
      %s217 = sphi 0, %s203
      %s221 = sphi 0, %s221
      %s223 = sphi 0, %s221
      %s224 = sphi 0, %s223
      %s238 = sphi 0, %s224
      %s242 = sphi 0, %s242
      %s244 = sphi 0, %s242
      %s245 = sphi 0, %s244
      %s259 = sphi 0, %s245
      %s263 = sphi 0, %s263
      %s265 = sphi 0, %s263
      %s266 = sphi 0, %s265
      %s280 = sphi 0, %s266
      %s284 = sphi 0, %s284
      %s286 = sphi 0, %s284
      %s287 = sphi 0, %s286
      %s301 = sphi 0, %s287
      %s305 = sphi 0, %s305
      %s307 = sphi 0, %s305
      %s308 = sphi 0, %s307
      %s322 = sphi 0, %s308
      %s326 = sphi 0, %s326
      %s328 = sphi 0, %s326
      %s329 = sphi 0, %s328
      %s343 = sphi 0, %s329
      %s347 = sphi 0, %s347
      %s349 = sphi 0, %s347
      %s350 = sphi 0, %s349
      %s364 = sphi 0, %s350
      %s368 = sphi 0, %s368
      %s370 = sphi 0, %s368
      %s371 = sphi 0, %s370
      %s385 = sphi 0, %s371
      %s389 = sphi 0, %s389
      %s391 = sphi 0, %s389
      %s392 = sphi 0, %s391
      %s406 = sphi 0, %s392
      %s410 = sphi 0, %s410
      %s412 = sphi 0, %s410
      %s413 = sphi 0, %s412
      %s427 = sphi 0, %s413
      %s431 = sphi 0, %s431
      %s433 = sphi 0, %s431
      %s434 = sphi 0, %s433
      %s448 = sphi 0, %s434
      %s452 = sphi 0, %s452
      %s454 = sphi 0, %s452
      %s455 = sphi 0, %s454
      %s469 = sphi 0, %s455
      %s473 = sphi 0, %s473
      %s475 = sphi 0, %s473
      %s476 = sphi 0, %s475
      %s490 = sphi 0, %s476
      %s494 = sphi 0, %s494
      %s496 = sphi 0, %s494
      %s497 = sphi 0, %s496
      %s511 = sphi 0, %s497
      %s515 = sphi 0, %s515
      %s517 = sphi 0, %s515
      %s518 = sphi 0, %s517
      %s532 = sphi 0, %s518
      %s536 = sphi 0, %s536
      %s538 = sphi 0, %s536
      %s539 = sphi 0, %s538
      %s553 = sphi 0, %s539
      %s557 = sphi 0, %s557
      %s559 = sphi 0, %s557
      %s560 = sphi 0, %s559
      %s574 = sphi 0, %s560
      %s578 = sphi 0, %s578
      %s580 = sphi 0, %s578
      %s581 = sphi 0, %s580
      %s595 = sphi 0, %s581
      %s601 = sphi 0, %s603
      %s604 = sphi 0, %s601
      %s605 = sphi 0, %s604
      %s621 = sphi 0, %s605
    $region4: #{mode_encoder.1} parent=1 // loop_header_branch
      %38 = sbr.rel (%p36) target = $region8
    $region5: #{mode_encoder.1} parent=1 // loop_body
      %s40 = ssub.s32 %s35, 1
      %s41 = ssub.s32 %s35, 2
      %s42 = sadd.s32 %s35, 1
      %s43 = ssub.s32 %s35, %s42
      %p44 = scmp.eq.s32.totalorder %s43, 0
      %s46 = sadd.s32 %s45, 1
      %s47 = scalar_select %p44, %s45, %s46
      %p50 = pneg %p44
      %p51 = scmp.eq.s32.totalorder %s35, 1
      %p52 = por %p50, %p51
      %p53 = scmp.ne.s32.totalorder %s45, %s48
      %p54 = scmp.eq.s32.totalorder %s35, 0
      %p55 = por %p53, %p54
      %p56 = scmp.ne.s32.totalorder %s45, %s48
      %p57 = scmp.eq.s32.totalorder %s40, 1
      %p58 = por %p56, %p57
      %p59 = scmp.ne.s32.totalorder %s48, %s49
      %p60 = scmp.eq.s32.totalorder %s40, 0
      %p61 = por %p59, %p60
      %p62 = scmp.ne.s32.totalorder %s48, %s49
      %p63 = scmp.eq.s32.totalorder %s41, 1
      %p64 = por %p62, %p63
      %p66 = scmp.ne.s32.totalorder %s49, %s65
      %p67 = scmp.eq.s32.totalorder %s41, 0
      %p68 = por %p66, %p67
      %s69 = ssub.s32 %s35, %s42
      %p70 = scmp.eq.s32.totalorder %s69, 0
      %s72 = sadd.s32 %s71, 1
      %s73 = scalar_select %p70, %s71, %s72
      %p76 = pneg %p70
      %p77 = scmp.eq.s32.totalorder %s35, 1
      %p78 = por %p76, %p77
      %p79 = scmp.ne.s32.totalorder %s71, %s74
      %p80 = scmp.eq.s32.totalorder %s35, 0
      %p81 = por %p79, %p80
      %p82 = scmp.ne.s32.totalorder %s71, %s74
      %p83 = scmp.eq.s32.totalorder %s40, 1
      %p84 = por %p82, %p83
      %p85 = scmp.ne.s32.totalorder %s74, %s75
      %p86 = scmp.eq.s32.totalorder %s40, 0
      %p87 = por %p85, %p86
      %p88 = scmp.ne.s32.totalorder %s74, %s75
      %p89 = scmp.eq.s32.totalorder %s41, 1
      %p90 = por %p88, %p89
      %p92 = scmp.ne.s32.totalorder %s75, %s91
      %p93 = scmp.eq.s32.totalorder %s41, 0
      %p94 = por %p92, %p93
      %s96 = sadd.s32 %s95, 1
      %p99 = scmp.eq.s32.totalorder %s35, 1
      %p100 = scmp.ne.s32.totalorder %s95, %s97
      %p101 = scmp.eq.s32.totalorder %s35, 0
      %p102 = por %p100, %p101
      %p103 = scmp.ne.s32.totalorder %s95, %s97
      %p104 = scmp.eq.s32.totalorder %s40, 1
      %p105 = por %p103, %p104
      %p106 = scmp.ne.s32.totalorder %s97, %s98
      %p107 = scmp.eq.s32.totalorder %s40, 0
      %p108 = por %p106, %p107
      %p109 = scmp.ne.s32.totalorder %s97, %s98
      %p110 = scmp.eq.s32.totalorder %s41, 1
      %p111 = por %p109, %p110
      %p113 = scmp.ne.s32.totalorder %s98, %s112
      %p114 = scmp.eq.s32.totalorder %s41, 0
      %p115 = por %p113, %p114
      %s117 = sadd.s32 %s116, 1
      %p120 = scmp.eq.s32.totalorder %s35, 1
      %p121 = scmp.ne.s32.totalorder %s116, %s118
      %p122 = scmp.eq.s32.totalorder %s35, 0
      %p123 = por %p121, %p122
      %p124 = scmp.ne.s32.totalorder %s116, %s118
      %p125 = scmp.eq.s32.totalorder %s40, 1
      %p126 = por %p124, %p125
      %p127 = scmp.ne.s32.totalorder %s118, %s119
      %p128 = scmp.eq.s32.totalorder %s40, 0
      %p129 = por %p127, %p128
      %p130 = scmp.ne.s32.totalorder %s118, %s119
      %p131 = scmp.eq.s32.totalorder %s41, 1
      %p132 = por %p130, %p131
      %p134 = scmp.ne.s32.totalorder %s119, %s133
      %p135 = scmp.eq.s32.totalorder %s41, 0
      %p136 = por %p134, %p135
      %s138 = sadd.s32 %s137, 1
      %p141 = scmp.eq.s32.totalorder %s35, 1
      %p142 = scmp.ne.s32.totalorder %s137, %s139
      %p143 = scmp.eq.s32.totalorder %s35, 0
      %p144 = por %p142, %p143
      %p145 = scmp.ne.s32.totalorder %s137, %s139
      %p146 = scmp.eq.s32.totalorder %s40, 1
      %p147 = por %p145, %p146
      %p148 = scmp.ne.s32.totalorder %s139, %s140
      %p149 = scmp.eq.s32.totalorder %s40, 0
      %p150 = por %p148, %p149
      %p151 = scmp.ne.s32.totalorder %s139, %s140
      %p152 = scmp.eq.s32.totalorder %s41, 1
      %p153 = por %p151, %p152
      %p155 = scmp.ne.s32.totalorder %s140, %s154
      %p156 = scmp.eq.s32.totalorder %s41, 0
      %p157 = por %p155, %p156
      %s159 = sadd.s32 %s158, 1
      %p162 = scmp.eq.s32.totalorder %s35, 1
      %p163 = scmp.ne.s32.totalorder %s158, %s160
      %p164 = scmp.eq.s32.totalorder %s35, 0
      %p165 = por %p163, %p164
      %p166 = scmp.ne.s32.totalorder %s158, %s160
      %p167 = scmp.eq.s32.totalorder %s40, 1
      %p168 = por %p166, %p167
      %p169 = scmp.ne.s32.totalorder %s160, %s161
      %p170 = scmp.eq.s32.totalorder %s40, 0
      %p171 = por %p169, %p170
      %p172 = scmp.ne.s32.totalorder %s160, %s161
      %p173 = scmp.eq.s32.totalorder %s41, 1
      %p174 = por %p172, %p173
      %p176 = scmp.ne.s32.totalorder %s161, %s175
      %p177 = scmp.eq.s32.totalorder %s41, 0
      %p178 = por %p176, %p177
      %s180 = sadd.s32 %s179, 1
      %p183 = scmp.eq.s32.totalorder %s35, 1
      %p184 = scmp.ne.s32.totalorder %s179, %s181
      %p185 = scmp.eq.s32.totalorder %s35, 0
      %p186 = por %p184, %p185
      %p187 = scmp.ne.s32.totalorder %s179, %s181
      %p188 = scmp.eq.s32.totalorder %s40, 1
      %p189 = por %p187, %p188
      %p190 = scmp.ne.s32.totalorder %s181, %s182
      %p191 = scmp.eq.s32.totalorder %s40, 0
      %p192 = por %p190, %p191
      %p193 = scmp.ne.s32.totalorder %s181, %s182
      %p194 = scmp.eq.s32.totalorder %s41, 1
      %p195 = por %p193, %p194
      %p197 = scmp.ne.s32.totalorder %s182, %s196
      %p198 = scmp.eq.s32.totalorder %s41, 0
      %p199 = por %p197, %p198
      %s201 = sadd.s32 %s200, 1
      %p204 = scmp.eq.s32.totalorder %s35, 1
      %p205 = scmp.ne.s32.totalorder %s200, %s202
      %p206 = scmp.eq.s32.totalorder %s35, 0
      %p207 = por %p205, %p206
      %p208 = scmp.ne.s32.totalorder %s200, %s202
      %p209 = scmp.eq.s32.totalorder %s40, 1
      %p210 = por %p208, %p209
      %p211 = scmp.ne.s32.totalorder %s202, %s203
      %p212 = scmp.eq.s32.totalorder %s40, 0
      %p213 = por %p211, %p212
      %p214 = scmp.ne.s32.totalorder %s202, %s203
      %p215 = scmp.eq.s32.totalorder %s41, 1
      %p216 = por %p214, %p215
      %p218 = scmp.ne.s32.totalorder %s203, %s217
      %p219 = scmp.eq.s32.totalorder %s41, 0
      %p220 = por %p218, %p219
      %s222 = sadd.s32 %s221, 1
      %p225 = scmp.eq.s32.totalorder %s35, 1
      %p226 = scmp.ne.s32.totalorder %s221, %s223
      %p227 = scmp.eq.s32.totalorder %s35, 0
      %p228 = por %p226, %p227
      %p229 = scmp.ne.s32.totalorder %s221, %s223
      %p230 = scmp.eq.s32.totalorder %s40, 1
      %p231 = por %p229, %p230
      %p232 = scmp.ne.s32.totalorder %s223, %s224
      %p233 = scmp.eq.s32.totalorder %s40, 0
      %p234 = por %p232, %p233
      %p235 = scmp.ne.s32.totalorder %s223, %s224
      %p236 = scmp.eq.s32.totalorder %s41, 1
      %p237 = por %p235, %p236
      %p239 = scmp.ne.s32.totalorder %s224, %s238
      %p240 = scmp.eq.s32.totalorder %s41, 0
      %p241 = por %p239, %p240
      %s243 = sadd.s32 %s242, 1
      %p246 = scmp.eq.s32.totalorder %s35, 1
      %p247 = scmp.ne.s32.totalorder %s242, %s244
      %p248 = scmp.eq.s32.totalorder %s35, 0
      %p249 = por %p247, %p248
      %p250 = scmp.ne.s32.totalorder %s242, %s244
      %p251 = scmp.eq.s32.totalorder %s40, 1
      %p252 = por %p250, %p251
      %p253 = scmp.ne.s32.totalorder %s244, %s245
      %p254 = scmp.eq.s32.totalorder %s40, 0
      %p255 = por %p253, %p254
      %p256 = scmp.ne.s32.totalorder %s244, %s245
      %p257 = scmp.eq.s32.totalorder %s41, 1
      %p258 = por %p256, %p257
      %p260 = scmp.ne.s32.totalorder %s245, %s259
      %p261 = scmp.eq.s32.totalorder %s41, 0
      %p262 = por %p260, %p261
      %s264 = sadd.s32 %s263, 1
      %p267 = scmp.eq.s32.totalorder %s35, 1
      %p268 = scmp.ne.s32.totalorder %s263, %s265
      %p269 = scmp.eq.s32.totalorder %s35, 0
      %p270 = por %p268, %p269
      %p271 = scmp.ne.s32.totalorder %s263, %s265
      %p272 = scmp.eq.s32.totalorder %s40, 1
      %p273 = por %p271, %p272
      %p274 = scmp.ne.s32.totalorder %s265, %s266
      %p275 = scmp.eq.s32.totalorder %s40, 0
      %p276 = por %p274, %p275
      %p277 = scmp.ne.s32.totalorder %s265, %s266
      %p278 = scmp.eq.s32.totalorder %s41, 1
      %p279 = por %p277, %p278
      %p281 = scmp.ne.s32.totalorder %s266, %s280
      %p282 = scmp.eq.s32.totalorder %s41, 0
      %p283 = por %p281, %p282
      %s285 = sadd.s32 %s284, 1
      %p288 = scmp.eq.s32.totalorder %s35, 1
      %p289 = scmp.ne.s32.totalorder %s284, %s286
      %p290 = scmp.eq.s32.totalorder %s35, 0
      %p291 = por %p289, %p290
      %p292 = scmp.ne.s32.totalorder %s284, %s286
      %p293 = scmp.eq.s32.totalorder %s40, 1
      %p294 = por %p292, %p293
      %p295 = scmp.ne.s32.totalorder %s286, %s287
      %p296 = scmp.eq.s32.totalorder %s40, 0
      %p297 = por %p295, %p296
      %p298 = scmp.ne.s32.totalorder %s286, %s287
      %p299 = scmp.eq.s32.totalorder %s41, 1
      %p300 = por %p298, %p299
      %p302 = scmp.ne.s32.totalorder %s287, %s301
      %p303 = scmp.eq.s32.totalorder %s41, 0
      %p304 = por %p302, %p303
      %s306 = sadd.s32 %s305, 1
      %p309 = scmp.eq.s32.totalorder %s35, 1
      %p310 = scmp.ne.s32.totalorder %s305, %s307
      %p311 = scmp.eq.s32.totalorder %s35, 0
      %p312 = por %p310, %p311
      %p313 = scmp.ne.s32.totalorder %s305, %s307
      %p314 = scmp.eq.s32.totalorder %s40, 1
      %p315 = por %p313, %p314
      %p316 = scmp.ne.s32.totalorder %s307, %s308
      %p317 = scmp.eq.s32.totalorder %s40, 0
      %p318 = por %p316, %p317
      %p319 = scmp.ne.s32.totalorder %s307, %s308
      %p320 = scmp.eq.s32.totalorder %s41, 1
      %p321 = por %p319, %p320
      %p323 = scmp.ne.s32.totalorder %s308, %s322
      %p324 = scmp.eq.s32.totalorder %s41, 0
      %p325 = por %p323, %p324
      %s327 = sadd.s32 %s326, 1
      %p330 = scmp.eq.s32.totalorder %s35, 1
      %p331 = scmp.ne.s32.totalorder %s326, %s328
      %p332 = scmp.eq.s32.totalorder %s35, 0
      %p333 = por %p331, %p332
      %p334 = scmp.ne.s32.totalorder %s326, %s328
      %p335 = scmp.eq.s32.totalorder %s40, 1
      %p336 = por %p334, %p335
      %p337 = scmp.ne.s32.totalorder %s328, %s329
      %p338 = scmp.eq.s32.totalorder %s40, 0
      %p339 = por %p337, %p338
      %p340 = scmp.ne.s32.totalorder %s328, %s329
      %p341 = scmp.eq.s32.totalorder %s41, 1
      %p342 = por %p340, %p341
      %p344 = scmp.ne.s32.totalorder %s329, %s343
      %p345 = scmp.eq.s32.totalorder %s41, 0
      %p346 = por %p344, %p345
      %s348 = sadd.s32 %s347, 1
      %p351 = scmp.eq.s32.totalorder %s35, 1
      %p352 = scmp.ne.s32.totalorder %s347, %s349
      %p353 = scmp.eq.s32.totalorder %s35, 0
      %p354 = por %p352, %p353
      %p355 = scmp.ne.s32.totalorder %s347, %s349
      %p356 = scmp.eq.s32.totalorder %s40, 1
      %p357 = por %p355, %p356
      %p358 = scmp.ne.s32.totalorder %s349, %s350
      %p359 = scmp.eq.s32.totalorder %s40, 0
      %p360 = por %p358, %p359
      %p361 = scmp.ne.s32.totalorder %s349, %s350
      %p362 = scmp.eq.s32.totalorder %s41, 1
      %p363 = por %p361, %p362
      %p365 = scmp.ne.s32.totalorder %s350, %s364
      %p366 = scmp.eq.s32.totalorder %s41, 0
      %p367 = por %p365, %p366
      %s369 = sadd.s32 %s368, 1
      %p372 = scmp.eq.s32.totalorder %s35, 1
      %p373 = scmp.ne.s32.totalorder %s368, %s370
      %p374 = scmp.eq.s32.totalorder %s35, 0
      %p375 = por %p373, %p374
      %p376 = scmp.ne.s32.totalorder %s368, %s370
      %p377 = scmp.eq.s32.totalorder %s40, 1
      %p378 = por %p376, %p377
      %p379 = scmp.ne.s32.totalorder %s370, %s371
      %p380 = scmp.eq.s32.totalorder %s40, 0
      %p381 = por %p379, %p380
      %p382 = scmp.ne.s32.totalorder %s370, %s371
      %p383 = scmp.eq.s32.totalorder %s41, 1
      %p384 = por %p382, %p383
      %p386 = scmp.ne.s32.totalorder %s371, %s385
      %p387 = scmp.eq.s32.totalorder %s41, 0
      %p388 = por %p386, %p387
      %s390 = sadd.s32 %s389, 1
      %p393 = scmp.eq.s32.totalorder %s35, 1
      %p394 = scmp.ne.s32.totalorder %s389, %s391
      %p395 = scmp.eq.s32.totalorder %s35, 0
      %p396 = por %p394, %p395
      %p397 = scmp.ne.s32.totalorder %s389, %s391
      %p398 = scmp.eq.s32.totalorder %s40, 1
      %p399 = por %p397, %p398
      %p400 = scmp.ne.s32.totalorder %s391, %s392
      %p401 = scmp.eq.s32.totalorder %s40, 0
      %p402 = por %p400, %p401
      %p403 = scmp.ne.s32.totalorder %s391, %s392
      %p404 = scmp.eq.s32.totalorder %s41, 1
      %p405 = por %p403, %p404
      %p407 = scmp.ne.s32.totalorder %s392, %s406
      %p408 = scmp.eq.s32.totalorder %s41, 0
      %p409 = por %p407, %p408
      %s411 = sadd.s32 %s410, 1
      %p414 = scmp.eq.s32.totalorder %s35, 1
      %p415 = scmp.ne.s32.totalorder %s410, %s412
      %p416 = scmp.eq.s32.totalorder %s35, 0
      %p417 = por %p415, %p416
      %p418 = scmp.ne.s32.totalorder %s410, %s412
      %p419 = scmp.eq.s32.totalorder %s40, 1
      %p420 = por %p418, %p419
      %p421 = scmp.ne.s32.totalorder %s412, %s413
      %p422 = scmp.eq.s32.totalorder %s40, 0
      %p423 = por %p421, %p422
      %p424 = scmp.ne.s32.totalorder %s412, %s413
      %p425 = scmp.eq.s32.totalorder %s41, 1
      %p426 = por %p424, %p425
      %p428 = scmp.ne.s32.totalorder %s413, %s427
      %p429 = scmp.eq.s32.totalorder %s41, 0
      %p430 = por %p428, %p429
      %s432 = sadd.s32 %s431, 1
      %p435 = scmp.eq.s32.totalorder %s35, 1
      %p436 = scmp.ne.s32.totalorder %s431, %s433
      %p437 = scmp.eq.s32.totalorder %s35, 0
      %p438 = por %p436, %p437
      %p439 = scmp.ne.s32.totalorder %s431, %s433
      %p440 = scmp.eq.s32.totalorder %s40, 1
      %p441 = por %p439, %p440
      %p442 = scmp.ne.s32.totalorder %s433, %s434
      %p443 = scmp.eq.s32.totalorder %s40, 0
      %p444 = por %p442, %p443
      %p445 = scmp.ne.s32.totalorder %s433, %s434
      %p446 = scmp.eq.s32.totalorder %s41, 1
      %p447 = por %p445, %p446
      %p449 = scmp.ne.s32.totalorder %s434, %s448
      %p450 = scmp.eq.s32.totalorder %s41, 0
      %p451 = por %p449, %p450
      %s453 = sadd.s32 %s452, 1
      %p456 = scmp.eq.s32.totalorder %s35, 1
      %p457 = scmp.ne.s32.totalorder %s452, %s454
      %p458 = scmp.eq.s32.totalorder %s35, 0
      %p459 = por %p457, %p458
      %p460 = scmp.ne.s32.totalorder %s452, %s454
      %p461 = scmp.eq.s32.totalorder %s40, 1
      %p462 = por %p460, %p461
      %p463 = scmp.ne.s32.totalorder %s454, %s455
      %p464 = scmp.eq.s32.totalorder %s40, 0
      %p465 = por %p463, %p464
      %p466 = scmp.ne.s32.totalorder %s454, %s455
      %p467 = scmp.eq.s32.totalorder %s41, 1
      %p468 = por %p466, %p467
      %p470 = scmp.ne.s32.totalorder %s455, %s469
      %p471 = scmp.eq.s32.totalorder %s41, 0
      %p472 = por %p470, %p471
      %s474 = sadd.s32 %s473, 1
      %p477 = scmp.eq.s32.totalorder %s35, 1
      %p478 = scmp.ne.s32.totalorder %s473, %s475
      %p479 = scmp.eq.s32.totalorder %s35, 0
      %p480 = por %p478, %p479
      %p481 = scmp.ne.s32.totalorder %s473, %s475
      %p482 = scmp.eq.s32.totalorder %s40, 1
      %p483 = por %p481, %p482
      %p484 = scmp.ne.s32.totalorder %s475, %s476
      %p485 = scmp.eq.s32.totalorder %s40, 0
      %p486 = por %p484, %p485
      %p487 = scmp.ne.s32.totalorder %s475, %s476
      %p488 = scmp.eq.s32.totalorder %s41, 1
      %p489 = por %p487, %p488
      %p491 = scmp.ne.s32.totalorder %s476, %s490
      %p492 = scmp.eq.s32.totalorder %s41, 0
      %p493 = por %p491, %p492
      %s495 = sadd.s32 %s494, 1
      %p498 = scmp.eq.s32.totalorder %s35, 1
      %p499 = scmp.ne.s32.totalorder %s494, %s496
      %p500 = scmp.eq.s32.totalorder %s35, 0
      %p501 = por %p499, %p500
      %p502 = scmp.ne.s32.totalorder %s494, %s496
      %p503 = scmp.eq.s32.totalorder %s40, 1
      %p504 = por %p502, %p503
      %p505 = scmp.ne.s32.totalorder %s496, %s497
      %p506 = scmp.eq.s32.totalorder %s40, 0
      %p507 = por %p505, %p506
      %p508 = scmp.ne.s32.totalorder %s496, %s497
      %p509 = scmp.eq.s32.totalorder %s41, 1
      %p510 = por %p508, %p509
      %p512 = scmp.ne.s32.totalorder %s497, %s511
      %p513 = scmp.eq.s32.totalorder %s41, 0
      %p514 = por %p512, %p513
      %s516 = sadd.s32 %s515, 1
      %p519 = scmp.eq.s32.totalorder %s35, 1
      %p520 = scmp.ne.s32.totalorder %s515, %s517
      %p521 = scmp.eq.s32.totalorder %s35, 0
      %p522 = por %p520, %p521
      %p523 = scmp.ne.s32.totalorder %s515, %s517
      %p524 = scmp.eq.s32.totalorder %s40, 1
      %p525 = por %p523, %p524
      %p526 = scmp.ne.s32.totalorder %s517, %s518
      %p527 = scmp.eq.s32.totalorder %s40, 0
      %p528 = por %p526, %p527
      %p529 = scmp.ne.s32.totalorder %s517, %s518
      %p530 = scmp.eq.s32.totalorder %s41, 1
      %p531 = por %p529, %p530
      %p533 = scmp.ne.s32.totalorder %s518, %s532
      %p534 = scmp.eq.s32.totalorder %s41, 0
      %p535 = por %p533, %p534
      %s537 = sadd.s32 %s536, 1
      %p540 = scmp.eq.s32.totalorder %s35, 1
      %p541 = scmp.ne.s32.totalorder %s536, %s538
      %p542 = scmp.eq.s32.totalorder %s35, 0
      %p543 = por %p541, %p542
      %p544 = scmp.ne.s32.totalorder %s536, %s538
      %p545 = scmp.eq.s32.totalorder %s40, 1
      %p546 = por %p544, %p545
      %p547 = scmp.ne.s32.totalorder %s538, %s539
      %p548 = scmp.eq.s32.totalorder %s40, 0
      %p549 = por %p547, %p548
      %p550 = scmp.ne.s32.totalorder %s538, %s539
      %p551 = scmp.eq.s32.totalorder %s41, 1
      %p552 = por %p550, %p551
      %p554 = scmp.ne.s32.totalorder %s539, %s553
      %p555 = scmp.eq.s32.totalorder %s41, 0
      %p556 = por %p554, %p555
      %s558 = sadd.s32 %s557, 1
      %p561 = scmp.eq.s32.totalorder %s35, 1
      %p562 = scmp.ne.s32.totalorder %s557, %s559
      %p563 = scmp.eq.s32.totalorder %s35, 0
      %p564 = por %p562, %p563
      %p565 = scmp.ne.s32.totalorder %s557, %s559
      %p566 = scmp.eq.s32.totalorder %s40, 1
      %p567 = por %p565, %p566
      %p568 = scmp.ne.s32.totalorder %s559, %s560
      %p569 = scmp.eq.s32.totalorder %s40, 0
      %p570 = por %p568, %p569
      %p571 = scmp.ne.s32.totalorder %s559, %s560
      %p572 = scmp.eq.s32.totalorder %s41, 1
      %p573 = por %p571, %p572
      %p575 = scmp.ne.s32.totalorder %s560, %s574
      %p576 = scmp.eq.s32.totalorder %s41, 0
      %p577 = por %p575, %p576
      %s579 = sadd.s32 %s578, 1
      %p582 = scmp.eq.s32.totalorder %s35, 1
      %p583 = scmp.ne.s32.totalorder %s578, %s580
      %p584 = scmp.eq.s32.totalorder %s35, 0
      %p585 = por %p583, %p584
      %p586 = scmp.ne.s32.totalorder %s578, %s580
      %p587 = scmp.eq.s32.totalorder %s40, 1
      %p588 = por %p586, %p587
      %p589 = scmp.ne.s32.totalorder %s580, %s581
      %p590 = scmp.eq.s32.totalorder %s40, 0
      %p591 = por %p589, %p590
      %p592 = scmp.ne.s32.totalorder %s580, %s581
      %p593 = scmp.eq.s32.totalorder %s41, 1
      %p594 = por %p592, %p593
      %p596 = scmp.ne.s32.totalorder %s581, %s595
      %p597 = scmp.eq.s32.totalorder %s41, 0
      %p598 = por %p596, %p597
      %s599 = ssub.s32 %s35, %s42
      %p600 = scmp.eq.s32.totalorder %s599, 0
      %s602 = sadd.s32 %s601, 1
      %s603 = scalar_select %p600, %s601, %s602
      %p606 = pneg %p600
      %p607 = scmp.eq.s32.totalorder %s35, 1
      %p608 = por %p606, %p607
      %p609 = scmp.ne.s32.totalorder %s601, %s604
      %p610 = scmp.eq.s32.totalorder %s35, 0
      %p611 = por %p609, %p610
      %p612 = scmp.ne.s32.totalorder %s601, %s604
      %p613 = scmp.eq.s32.totalorder %s40, 1
      %p614 = por %p612, %p613
      %p615 = scmp.ne.s32.totalorder %s604, %s605
      %p616 = scmp.eq.s32.totalorder %s40, 0
      %p617 = por %p615, %p616
      %p618 = scmp.ne.s32.totalorder %s604, %s605
      %p619 = scmp.eq.s32.totalorder %s41, 1
      %p620 = por %p618, %p619
      %p622 = scmp.ne.s32.totalorder %s605, %s621
      %p623 = scmp.eq.s32.totalorder %s41, 0
      %p624 = por %p622, %p623
      %p625 = scmp.le.s32.totalorder 1, %s35
      %p626 = scmp.lt.s32.totalorder %s35, 3
      %p627 = pnand %p625, %p626
      %p628 = pneg %p627
      // Predicated region
      $region9: #{mode_encoder.1} parent=5 // pred_check
        _
      $region10: #{mode_encoder.1} parent=5 // pred_check_branch
        %630 = sbr.rel (%p627) target = $region12
      $region11: #{mode_encoder.1} parent=5 // pred_region
        %s631 = ssub.s32 %s35, 1
        // Predicated region
        $region13: #{mode_encoder.1} parent=11 // pred_check
          %p632 = pneg %p108
        $region14: #{mode_encoder.1} parent=11 // pred_check_branch
          %634 = sbr.rel (%p632) target = $region16
        $region15: #{mode_encoder.1} parent=11 // pred_region
          _
        $region16: #{mode_encoder.1} parent=11 // pred_fallthru
          _
        // Predicated region
        $region17: #{mode_encoder.1} parent=11 // pred_check
          %p635 = pneg %p129
        $region18: #{mode_encoder.1} parent=11 // pred_check_branch
          %637 = sbr.rel (%p635) target = $region20
        $region19: #{mode_encoder.1} parent=11 // pred_region
          _
        $region20: #{mode_encoder.1} parent=11 // pred_fallthru
          _
        // Predicated region
        $region21: #{mode_encoder.1} parent=11 // pred_check
          %p638 = pneg %p150
        $region22: #{mode_encoder.1} parent=11 // pred_check_branch
          %640 = sbr.rel (%p638) target = $region24
        $region23: #{mode_encoder.1} parent=11 // pred_region
          _
        $region24: #{mode_encoder.1} parent=11 // pred_fallthru
          _
        // Predicated region
        $region25: #{mode_encoder.1} parent=11 // pred_check
          %p641 = pneg %p171
        $region26: #{mode_encoder.1} parent=11 // pred_check_branch
          %643 = sbr.rel (%p641) target = $region28
        $region27: #{mode_encoder.1} parent=11 // pred_region
          _
        $region28: #{mode_encoder.1} parent=11 // pred_fallthru
          _
        // Predicated region
        $region29: #{mode_encoder.1} parent=11 // pred_check
          %p644 = pneg %p192
        $region30: #{mode_encoder.1} parent=11 // pred_check_branch
          %646 = sbr.rel (%p644) target = $region32
        $region31: #{mode_encoder.1} parent=11 // pred_region
          _
        $region32: #{mode_encoder.1} parent=11 // pred_fallthru
          _
        // Predicated region
        $region33: #{mode_encoder.1} parent=11 // pred_check
          %p647 = pneg %p213
        $region34: #{mode_encoder.1} parent=11 // pred_check_branch
          %649 = sbr.rel (%p647) target = $region36
        $region35: #{mode_encoder.1} parent=11 // pred_region
          _
        $region36: #{mode_encoder.1} parent=11 // pred_fallthru
          _
        // Predicated region
        $region37: #{mode_encoder.1} parent=11 // pred_check
          %p650 = pneg %p234
        $region38: #{mode_encoder.1} parent=11 // pred_check_branch
          %652 = sbr.rel (%p650) target = $region40
        $region39: #{mode_encoder.1} parent=11 // pred_region
          _
        $region40: #{mode_encoder.1} parent=11 // pred_fallthru
          _
        // Predicated region
        $region41: #{mode_encoder.1} parent=11 // pred_check
          %p653 = pneg %p255
        $region42: #{mode_encoder.1} parent=11 // pred_check_branch
          %655 = sbr.rel (%p653) target = $region44
        $region43: #{mode_encoder.1} parent=11 // pred_region
          _
        $region44: #{mode_encoder.1} parent=11 // pred_fallthru
          _
        // Predicated region
        $region45: #{mode_encoder.1} parent=11 // pred_check
          %p656 = pneg %p276
        $region46: #{mode_encoder.1} parent=11 // pred_check_branch
          %658 = sbr.rel (%p656) target = $region48
        $region47: #{mode_encoder.1} parent=11 // pred_region
          _
        $region48: #{mode_encoder.1} parent=11 // pred_fallthru
          _
        // Predicated region
        $region49: #{mode_encoder.1} parent=11 // pred_check
          %p659 = pneg %p297
        $region50: #{mode_encoder.1} parent=11 // pred_check_branch
          %661 = sbr.rel (%p659) target = $region52
        $region51: #{mode_encoder.1} parent=11 // pred_region
          _
        $region52: #{mode_encoder.1} parent=11 // pred_fallthru
          _
        // Predicated region
        $region53: #{mode_encoder.1} parent=11 // pred_check
          %p662 = pneg %p318
        $region54: #{mode_encoder.1} parent=11 // pred_check_branch
          %664 = sbr.rel (%p662) target = $region56
        $region55: #{mode_encoder.1} parent=11 // pred_region
          _
        $region56: #{mode_encoder.1} parent=11 // pred_fallthru
          _
        // Predicated region
        $region57: #{mode_encoder.1} parent=11 // pred_check
          %p665 = pneg %p339
        $region58: #{mode_encoder.1} parent=11 // pred_check_branch
          %667 = sbr.rel (%p665) target = $region60
        $region59: #{mode_encoder.1} parent=11 // pred_region
          _
        $region60: #{mode_encoder.1} parent=11 // pred_fallthru
          _
        // Predicated region
        $region61: #{mode_encoder.1} parent=11 // pred_check
          %p668 = pneg %p360
        $region62: #{mode_encoder.1} parent=11 // pred_check_branch
          %670 = sbr.rel (%p668) target = $region64
        $region63: #{mode_encoder.1} parent=11 // pred_region
          _
        $region64: #{mode_encoder.1} parent=11 // pred_fallthru
          _
        // Predicated region
        $region65: #{mode_encoder.1} parent=11 // pred_check
          %p671 = pneg %p381
        $region66: #{mode_encoder.1} parent=11 // pred_check_branch
          %673 = sbr.rel (%p671) target = $region68
        $region67: #{mode_encoder.1} parent=11 // pred_region
          _
        $region68: #{mode_encoder.1} parent=11 // pred_fallthru
          _
        // Predicated region
        $region69: #{mode_encoder.1} parent=11 // pred_check
          %p674 = pneg %p402
        $region70: #{mode_encoder.1} parent=11 // pred_check_branch
          %676 = sbr.rel (%p674) target = $region72
        $region71: #{mode_encoder.1} parent=11 // pred_region
          _
        $region72: #{mode_encoder.1} parent=11 // pred_fallthru
          _
        // Predicated region
        $region73: #{mode_encoder.1} parent=11 // pred_check
          %p677 = pneg %p423
        $region74: #{mode_encoder.1} parent=11 // pred_check_branch
          %679 = sbr.rel (%p677) target = $region76
        $region75: #{mode_encoder.1} parent=11 // pred_region
          _
        $region76: #{mode_encoder.1} parent=11 // pred_fallthru
          _
        // Predicated region
        $region77: #{mode_encoder.1} parent=11 // pred_check
          %p680 = pneg %p444
        $region78: #{mode_encoder.1} parent=11 // pred_check_branch
          %682 = sbr.rel (%p680) target = $region80
        $region79: #{mode_encoder.1} parent=11 // pred_region
          _
        $region80: #{mode_encoder.1} parent=11 // pred_fallthru
          _
        // Predicated region
        $region81: #{mode_encoder.1} parent=11 // pred_check
          %p683 = pneg %p465
        $region82: #{mode_encoder.1} parent=11 // pred_check_branch
          %685 = sbr.rel (%p683) target = $region84
        $region83: #{mode_encoder.1} parent=11 // pred_region
          _
        $region84: #{mode_encoder.1} parent=11 // pred_fallthru
          _
        // Predicated region
        $region85: #{mode_encoder.1} parent=11 // pred_check
          %p686 = pneg %p486
        $region86: #{mode_encoder.1} parent=11 // pred_check_branch
          %688 = sbr.rel (%p686) target = $region88
        $region87: #{mode_encoder.1} parent=11 // pred_region
          _
        $region88: #{mode_encoder.1} parent=11 // pred_fallthru
          _
        // Predicated region
        $region89: #{mode_encoder.1} parent=11 // pred_check
          %p689 = pneg %p507
        $region90: #{mode_encoder.1} parent=11 // pred_check_branch
          %691 = sbr.rel (%p689) target = $region92
        $region91: #{mode_encoder.1} parent=11 // pred_region
          _
        $region92: #{mode_encoder.1} parent=11 // pred_fallthru
          _
        // Predicated region
        $region93: #{mode_encoder.1} parent=11 // pred_check
          %p692 = pneg %p528
        $region94: #{mode_encoder.1} parent=11 // pred_check_branch
          %694 = sbr.rel (%p692) target = $region96
        $region95: #{mode_encoder.1} parent=11 // pred_region
          _
        $region96: #{mode_encoder.1} parent=11 // pred_fallthru
          _
        // Predicated region
        $region97: #{mode_encoder.1} parent=11 // pred_check
          %p695 = pneg %p549
        $region98: #{mode_encoder.1} parent=11 // pred_check_branch
          %697 = sbr.rel (%p695) target = $region100
        $region99: #{mode_encoder.1} parent=11 // pred_region
          _
        $region100: #{mode_encoder.1} parent=11 // pred_fallthru
          _
        // Predicated region
        $region101: #{mode_encoder.1} parent=11 // pred_check
          %p698 = pneg %p570
        $region102: #{mode_encoder.1} parent=11 // pred_check_branch
          %700 = sbr.rel (%p698) target = $region104
        $region103: #{mode_encoder.1} parent=11 // pred_region
          _
        $region104: #{mode_encoder.1} parent=11 // pred_fallthru
          _
        // Predicated region
        $region105: #{mode_encoder.1} parent=11 // pred_check
          %p701 = pneg %p591
        $region106: #{mode_encoder.1} parent=11 // pred_check_branch
          %703 = sbr.rel (%p701) target = $region108
        $region107: #{mode_encoder.1} parent=11 // pred_region
          _
        $region108: #{mode_encoder.1} parent=11 // pred_fallthru
          _
      $region12: #{mode_encoder.1} parent=5 // pred_fallthru
        _
      %p704 = scmp.lt.s32.totalorder %s35, 2
      // Predicated region
      $region109: #{mode_encoder.1} parent=5 // pred_check
        %p705 = pneg %p704
      $region110: #{mode_encoder.1} parent=5 // pred_check_branch
        %707 = sbr.rel (%p705) target = $region112
      $region111: #{mode_encoder.1} parent=5 // pred_region
        // Predicated region
        $region113: #{mode_encoder.1} parent=111 // pred_check
          %p708 = pneg %p55
        $region114: #{mode_encoder.1} parent=111 // pred_check_branch
          %710 = sbr.rel (%p708) target = $region116
        $region115: #{mode_encoder.1} parent=111 // pred_region
          %p711 = scmp.lt.s32.totalorder %s35, 1
          %s712 = scalar_select %p711, %s35, 1
          %s713 = smul.addr %s712, 2
          %s714 = smul.addr %s713, 8
          %s715 = scalar_lea.vmem %s0, %s714
        $region116: #{mode_encoder.1} parent=111 // pred_fallthru
          _
        // Predicated region
        $region117: #{mode_encoder.1} parent=111 // pred_check
          %p716 = pneg %p81
        $region118: #{mode_encoder.1} parent=111 // pred_check_branch
          %718 = sbr.rel (%p716) target = $region120
        $region119: #{mode_encoder.1} parent=111 // pred_region
          %p719 = scmp.lt.s32.totalorder %s35, 1
          %s720 = scalar_select %p719, %s35, 1
          %s721 = scalar_lea.vmem %s1, %s720
        $region120: #{mode_encoder.1} parent=111 // pred_fallthru
          _
      $region112: #{mode_encoder.1} parent=5 // pred_fallthru
        _
      %p722 = scmp.le.s32.totalorder 1, %s35
      %p723 = scmp.lt.s32.totalorder %s35, 3
      %p724 = pnand %p722, %p723
      %p725 = pneg %p724
      // Predicated region
      $region121: #{mode_encoder.1} parent=5 // pred_check
        _
      $region122: #{mode_encoder.1} parent=5 // pred_check_branch
        %727 = sbr.rel (%p724) target = $region124
      $region123: #{mode_encoder.1} parent=5 // pred_region
        %s728 = ssub.s32 %s35, 1
        %p729 = scmp.lt.s32.totalorder %s40, 1
        %s730 = scalar_select %p729, %s40, 1
        %s731 = smul.addr %s730, 2
        %s732 = smul.addr %s731, 8
        %s733 = scalar_lea.vmem %s0, %s732
        %p734 = pneg %p61
        %p735 = pneg %p58
        %p736 = scmp.lt.s32.totalorder %s40, 1
        %s737 = scalar_select %p736, %s40, 1
        %s738 = scalar_lea.vmem %s1, %s737
        %p739 = pneg %p87
        %p740 = pneg %p84
        %p741 = pneg %p108
        %p742 = pneg %p105
        %p743 = pneg %p129
        %p744 = pneg %p126
        %p745 = pneg %p150
        %p746 = pneg %p147
        %p747 = pneg %p171
        %p748 = pneg %p168
        %p749 = pneg %p192
        %p750 = pneg %p189
        %p751 = pneg %p213
        %p752 = pneg %p210
        %p753 = pneg %p234
        %p754 = pneg %p231
        %p755 = pneg %p255
        %p756 = pneg %p252
        %p757 = pneg %p276
        %p758 = pneg %p273
        %p759 = pneg %p297
        %p760 = pneg %p294
        %p761 = pneg %p318
        %p762 = pneg %p315
        %p763 = pneg %p339
        %p764 = pneg %p336
        %p765 = pneg %p360
        %p766 = pneg %p357
        %p767 = pneg %p381
        %p768 = pneg %p378
        %p769 = pneg %p402
        %p770 = pneg %p399
        %p771 = pneg %p423
        %p772 = pneg %p420
        %p773 = pneg %p444
        %p774 = pneg %p441
        %p775 = pneg %p465
        %p776 = pneg %p462
        %p777 = pneg %p486
        %p778 = pneg %p483
        %p779 = pneg %p507
        %p780 = pneg %p504
        %p781 = pneg %p528
        %p782 = pneg %p525
        %p783 = pneg %p549
        %p784 = pneg %p546
        %p785 = pneg %p570
        %p786 = pneg %p567
        %p787 = pneg %p591
        %p788 = pneg %p588
        %p789 = pneg %p617
        %p790 = pneg %p614
        %s791 = sand.u32 %s604, 1
        %s792 = scalar_lea.sflag [#allocation3], %s791
        %s793 = sand.u32 %s604, 1
        %s794 = scalar_lea.vmem [#allocation2], %s793
        %p795 = scmp.lt.s32.totalorder %s40, 1
        %s796 = scalar_select %p795, %s40, 1
        %s797 = smul.addr %s796, 2
        %s798 = smul.addr %s797, 8
        %s799 = scalar_lea.vmem %s0, %s798
        %p800 = scmp.lt.s32.totalorder %s40, 1
        %s801 = scalar_select %p800, %s40, 1
        %s802 = scalar_lea.vmem %s1, %s801
        %v804 = vld [vmem:[%s799] sm:$0xff]
        %v805 = vld [vmem:[%s799 + $0x8] sm:$0xff]
        %v806 = vld [vmem:[%s2] sm:$0x1]
        %v807 = vld [vmem:[%s3] sm:$0x1]
        %vm808 = vcmask 261120
        %v809 = vsel %vm808, %v804, 0.0
        %810 = vadd.xlane.f32.xlu0 %v809
        %v811 = vpop.xlane.xlu0 %810
        %v812 = vsel %vm808, %v805, 0.0
        %813 = vadd.xlane.f32.xlu0 %v812
        %v814 = vpop.xlane.xlu0 %813
        %v815 = vrcp.pop 32.0
        %v816 = vmul.f32 %v811, %v815
        %v817 = vmul.f32 %v814, %v815
        %v818 = vsub.f32 %v804, %v816
        %v819 = vsub.f32 %v805, %v817
        %v820 = vmul.f32 %v818, %v818
        %v821 = vmul.f32 %v819, %v819
        %v822 = vsel %vm808, %v820, 0.0
        %823 = vadd.xlane.f32.xlu0 %v822
        %v824 = vpop.xlane.xlu0 %823
        %v825 = vsel %vm808, %v821, 0.0
        %826 = vadd.xlane.f32.xlu0 %v825
        %v827 = vpop.xlane.xlu0 %826
        %v828 = vmul.f32 %v824, %v815
        %v829 = vmul.f32 %v827, %v815
        %v830 = vadd.f32 %v828, 1e-12
        %v831 = vadd.f32 %v829, 1e-12
        %v832 = vrsqrt.pop %v830
        %v833 = vrsqrt.pop %v831
        %v834 = vmul.f32 %v818, %v832
        %v835 = vmul.f32 %v819, %v833
        %v837 = vlaneseq
        %v838 = vshrl.u32 %v837, 7
        %v839 = vsub.s32 0, %v838
        %v840 = vrot.slane %v806, %v839
        %v842 = vmul.f32 %v834, %v840
        %v843 = vmul.f32 %v835, %v840
        %v845 = vlaneseq
        %v846 = vshrl.u32 %v845, 7
        %v847 = vsub.s32 0, %v846
        %v848 = vrot.slane %v807, %v847
        %v850 = vadd.f32 %v842, %v848
        %v851 = vadd.f32 %v843, %v848
        %v852 = vld [vmem:[%s802] sm:$0x1]
        %v853 = vpack.c.bf16 %v851, %v850
        %v854 = vld [vmem:[%s4] sm:$0xf]
        %v855 = vld [vmem:[%s4 + $0x4] sm:$0xf]
        %v856 = vld [vmem:[%s4 + $0x8] sm:$0xf]
        %v857 = vld [vmem:[%s4 + $0xc] sm:$0xf]
        %v858 = vld [vmem:[%s5] sm:$0x1]
        %v860 = vlaneseq
        %v861 = vshrl.u32 %v860, 7
        %v862 = vsub.s32 0, %v861
        %v863 = vrot.slane %v858, %v862
        %v869 = vunpack.c.l.b16 %v854
        %v870 = vunpack.c.l.b16 %v855
        %v871 = vunpack.c.l.b16 %v856
        %v872 = vunpack.c.l.b16 %v857
        %v873 = vpack.c.b16 %v870, %v869
        %v874 = vpack.c.b16 %v872, %v871
        %v878 = vsel %vm808, %v853, 0
        %880 = vmatprep.subr.bf16.mxu0 0
        %881 = vmatpush1.bf16.msra.mxu0 %v873
        %882 = vmatprep.subr.bf16.mxu0 0
        %883 = vmatpush1.bf16.msra.mxu0 %v874
        %884 = vmatprep.subr.bf16.mxu0 0
        %885 = vmatpush1.bf16.msra.mxu0 0
        %886 = vmatprep.subr.bf16.mxu0 0
        %887 = vmatpush1.bf16.msra.mxu0 0
        %888 = vmatprep.subr.bf16.mxu0 0
        %889 = vmatpush1.bf16.msra.mxu0 0
        %890 = vmatprep.subr.bf16.mxu0 0
        %891 = vmatpush1.bf16.msra.mxu0 0
        %892 = vmatprep.subr.bf16.mxu0 0
        %893 = vmatpush1.bf16.msra.mxu0 0
        %894 = vmatprep.subr.bf16.mxu0 0
        %895 = vmatpush1.bf16.msra.mxu0 0
        %896 = vmatprep.subr.bf16.mxu0 0
        %897 = vmatpush1.bf16.msra.mxu0 0
        %898 = vmatprep.subr.bf16.mxu0 0
        %899 = vmatpush1.bf16.msra.mxu0 0
        %900 = vmatprep.subr.bf16.mxu0 0
        %901 = vmatpush1.bf16.msra.mxu0 0
        %902 = vmatprep.subr.bf16.mxu0 0
        %903 = vmatpush1.bf16.msra.mxu0 0
        %904 = vmatprep.subr.bf16.mxu0 0
        %905 = vmatpush1.bf16.msra.mxu0 0
        %906 = vmatprep.subr.bf16.mxu0 0
        %907 = vmatpush1.bf16.msra.mxu0 0
        %908 = vmatprep.subr.bf16.mxu0 0
        %909 = vmatpush1.bf16.msra.mxu0 0
        %910 = vmatprep.subr.bf16.mxu0 0
        %911 = vmatpush1.bf16.msra.mxu0 0
        %912 = vmatprep.mubr.bf16.mxu0 0
        %913 = vmatmul.mubr.bf16.gmra.mrb[0].mxu0 %v878
        %v914 = vpop.f32.mrb[0].mxu0
        %v915 = vadd.f32 %v863, %v914
        %v916 = vpop.f32.mrb[0].mxu0
        %v917 = vpop.f32.mrb[0].mxu0
        %v918 = vadd.f32 %v863, %v917
        %v919 = vpop.f32.mrb[0].mxu0
        %920 = vdwg.mxu0
        %v921 = vld [vmem:[%s6] sm:$0xf]
        %v922 = vld [vmem:[%s6 + $0x4] sm:$0xf]
        %v923 = vld [vmem:[%s6 + $0x8] sm:$0xf]
        %v924 = vld [vmem:[%s6 + $0xc] sm:$0xf]
        %v925 = vld [vmem:[%s7] sm:$0x1]
        %v927 = vlaneseq
        %v928 = vshrl.u32 %v927, 7
        %v929 = vsub.s32 0, %v928
        %v930 = vrot.slane %v925, %v929
        %v936 = vunpack.c.l.b16 %v921
        %v937 = vunpack.c.l.b16 %v922
        %v938 = vunpack.c.l.b16 %v923
        %v939 = vunpack.c.l.b16 %v924
        %v940 = vpack.c.b16 %v937, %v936
        %v941 = vpack.c.b16 %v939, %v938
        %944 = vmatprep.subr.bf16.mxu0 0
        %945 = vmatpush1.bf16.msra.mxu0 %v940
        %946 = vmatprep.subr.bf16.mxu0 0
        %947 = vmatpush1.bf16.msra.mxu0 %v941
        %948 = vmatprep.subr.bf16.mxu0 0
        %949 = vmatpush1.bf16.msra.mxu0 0
        %950 = vmatprep.subr.bf16.mxu0 0
        %951 = vmatpush1.bf16.msra.mxu0 0
        %952 = vmatprep.subr.bf16.mxu0 0
        %953 = vmatpush1.bf16.msra.mxu0 0
        %954 = vmatprep.subr.bf16.mxu0 0
        %955 = vmatpush1.bf16.msra.mxu0 0
        %956 = vmatprep.subr.bf16.mxu0 0
        %957 = vmatpush1.bf16.msra.mxu0 0
        %958 = vmatprep.subr.bf16.mxu0 0
        %959 = vmatpush1.bf16.msra.mxu0 0
        %960 = vmatprep.subr.bf16.mxu0 0
        %961 = vmatpush1.bf16.msra.mxu0 0
        %962 = vmatprep.subr.bf16.mxu0 0
        %963 = vmatpush1.bf16.msra.mxu0 0
        %964 = vmatprep.subr.bf16.mxu0 0
        %965 = vmatpush1.bf16.msra.mxu0 0
        %966 = vmatprep.subr.bf16.mxu0 0
        %967 = vmatpush1.bf16.msra.mxu0 0
        %968 = vmatprep.subr.bf16.mxu0 0
        %969 = vmatpush1.bf16.msra.mxu0 0
        %970 = vmatprep.subr.bf16.mxu0 0
        %971 = vmatpush1.bf16.msra.mxu0 0
        %972 = vmatprep.subr.bf16.mxu0 0
        %973 = vmatpush1.bf16.msra.mxu0 0
        %974 = vmatprep.subr.bf16.mxu0 0
        %975 = vmatpush1.bf16.msra.mxu0 0
        %976 = vmatprep.mubr.bf16.mxu0 0
        %977 = vmatmul.mubr.bf16.gmra.mrb[0].mxu0 %v878
        %v978 = vpop.f32.mrb[0].mxu0
        %v979 = vadd.f32 %v930, %v978
        %v980 = vpop.f32.mrb[0].mxu0
        %v981 = vpop.f32.mrb[0].mxu0
        %v982 = vadd.f32 %v930, %v981
        %v983 = vpop.f32.mrb[0].mxu0
        %984 = vdwg.mxu0
        %v985 = vld [vmem:[%s8] sm:$0xf]
        %v986 = vld [vmem:[%s8 + $0x4] sm:$0xf]
        %v987 = vld [vmem:[%s8 + $0x8] sm:$0xf]
        %v988 = vld [vmem:[%s8 + $0xc] sm:$0xf]
        %v989 = vld [vmem:[%s9] sm:$0x1]
        %v991 = vlaneseq
        %v992 = vshrl.u32 %v991, 7
        %v993 = vsub.s32 0, %v992
        %v994 = vrot.slane %v989, %v993
        %v1000 = vunpack.c.l.b16 %v985
        %v1001 = vunpack.c.l.b16 %v986
        %v1002 = vunpack.c.l.b16 %v987
        %v1003 = vunpack.c.l.b16 %v988
        %v1004 = vpack.c.b16 %v1001, %v1000
        %v1005 = vpack.c.b16 %v1003, %v1002
        %1008 = vmatprep.subr.bf16.mxu0 0
        %1009 = vmatpush1.bf16.msra.mxu0 %v1004
        %1010 = vmatprep.subr.bf16.mxu0 0
        %1011 = vmatpush1.bf16.msra.mxu0 %v1005
        %1012 = vmatprep.subr.bf16.mxu0 0
        %1013 = vmatpush1.bf16.msra.mxu0 0
        %1014 = vmatprep.subr.bf16.mxu0 0
        %1015 = vmatpush1.bf16.msra.mxu0 0
        %1016 = vmatprep.subr.bf16.mxu0 0
        %1017 = vmatpush1.bf16.msra.mxu0 0
        %1018 = vmatprep.subr.bf16.mxu0 0
        %1019 = vmatpush1.bf16.msra.mxu0 0
        %1020 = vmatprep.subr.bf16.mxu0 0
        %1021 = vmatpush1.bf16.msra.mxu0 0
        %1022 = vmatprep.subr.bf16.mxu0 0
        %1023 = vmatpush1.bf16.msra.mxu0 0
        %1024 = vmatprep.subr.bf16.mxu0 0
        %1025 = vmatpush1.bf16.msra.mxu0 0
        %1026 = vmatprep.subr.bf16.mxu0 0
        %1027 = vmatpush1.bf16.msra.mxu0 0
        %1028 = vmatprep.subr.bf16.mxu0 0
        %1029 = vmatpush1.bf16.msra.mxu0 0
        %1030 = vmatprep.subr.bf16.mxu0 0
        %1031 = vmatpush1.bf16.msra.mxu0 0
        %1032 = vmatprep.subr.bf16.mxu0 0
        %1033 = vmatpush1.bf16.msra.mxu0 0
        %1034 = vmatprep.subr.bf16.mxu0 0
        %1035 = vmatpush1.bf16.msra.mxu0 0
        %1036 = vmatprep.subr.bf16.mxu0 0
        %1037 = vmatpush1.bf16.msra.mxu0 0
        %1038 = vmatprep.subr.bf16.mxu0 0
        %1039 = vmatpush1.bf16.msra.mxu0 0
        %1040 = vmatprep.mubr.bf16.mxu0 0
        %1041 = vmatmul.mubr.bf16.gmra.mrb[0].mxu0 %v878
        %v1042 = vpop.f32.mrb[0].mxu0
        %v1043 = vadd.f32 %v994, %v1042
        %v1044 = vpop.f32.mrb[0].mxu0
        %v1045 = vpop.f32.mrb[0].mxu0
        %v1046 = vadd.f32 %v994, %v1045
        %v1047 = vpop.f32.mrb[0].mxu0
        %1048 = vdwg.mxu0
        %v1049 = vpack.c.bf16 %v918, %v915
        %v1050 = vpack.c.bf16 %v982, %v979
        %v1052 = vlaneseq
        %v1053 = vshrl.u32 %v1052, 7
        %v1054 = vsub.s32 0, %v1053
        %v1055 = vrot.slane %v852, %v1054
        %vm1057 = vcmask 64512
        %v1059 = vsel %vm1057, %v1049, 0
        %v1062 = vsel %vm1057, %v1050, 0
        %1064 = vmatprep.subr.bf16.mxu0 0
        %1065 = vmatpush1.bf16.xpose.msra.mxu0 %v1062
        %1066 = vmatprep.subr.bf16.mxu0 0
        %1067 = vmatpush1.bf16.xpose.msra.mxu0 0
        %1068 = vmatprep.subr.bf16.mxu0 0
        %1069 = vmatpush1.bf16.xpose.msra.mxu0 0
        %1070 = vmatprep.subr.bf16.mxu0 0
        %1071 = vmatpush1.bf16.xpose.msra.mxu0 0
        %1072 = vmatprep.subr.bf16.mxu0 0
        %1073 = vmatpush1.bf16.xpose.msra.mxu0 0
        %1074 = vmatprep.subr.bf16.mxu0 0
        %1075 = vmatpush1.bf16.xpose.msra.mxu0 0
        %1076 = vmatprep.subr.bf16.mxu0 0
        %1077 = vmatpush1.bf16.xpose.msra.mxu0 0
        %1078 = vmatprep.subr.bf16.mxu0 0
        %1079 = vmatpush1.bf16.xpose.msra.mxu0 0
        %1080 = vmatprep.subr.bf16.mxu0 0
        %1081 = vmatpush1.bf16.xpose.msra.mxu0 0
        %1082 = vmatprep.subr.bf16.mxu0 0
        %1083 = vmatpush1.bf16.xpose.msra.mxu0 0
        %1084 = vmatprep.subr.bf16.mxu0 0
        %1085 = vmatpush1.bf16.xpose.msra.mxu0 0
        %1086 = vmatprep.subr.bf16.mxu0 0
        %1087 = vmatpush1.bf16.xpose.msra.mxu0 0
        %1088 = vmatprep.subr.bf16.mxu0 0
        %1089 = vmatpush1.bf16.xpose.msra.mxu0 0
        %1090 = vmatprep.subr.bf16.mxu0 0
        %1091 = vmatpush1.bf16.xpose.msra.mxu0 0
        %1092 = vmatprep.subr.bf16.mxu0 0
        %1093 = vmatpush1.bf16.xpose.msra.mxu0 0
        %1094 = vmatprep.subr.bf16.mxu0 0
        %1095 = vmatpush1.bf16.xpose.msra.mxu0 0
        %1096 = vmatprep.mubr.bf16.mxu0 0
        %1097 = vmatmul.mubr.bf16.gmra.mrb[0].mxu0 %v1059
        %v1098 = vpop.f32.mrb[0].mxu0
        %v1099 = vadd.f32 %v1055, %v1098
        %v1100 = vpop.f32.mrb[0].mxu0
        %v1101 = vpop.f32.mrb[0].mxu0
        %v1102 = vadd.f32 %v1055, %v1101
        %v1103 = vpop.f32.mrb[0].mxu0
        %1104 = vdwg.mxu0
        %vm1105 = vcmask 130048
        %v1106 = vsel %vm1105, %v1099, -inf
        %1107 = vmax.xlane.f32.xlu0 %v1106
        %v1108 = vpop.xlane.xlu0 %1107
        %v1109 = vsel %vm1105, %v1102, -inf
        %1110 = vmax.xlane.f32.xlu0 %v1109
        %v1111 = vpop.xlane.xlu0 %1110
        %v1112 = vsub.f32 %v1099, %v1108
        %v1113 = vsub.f32 %v1102, %v1111
        %v1114 = vmul.f32 %v1112, 1.442695
        %v1115 = vpow.pop %v1114
        %v1116 = vmul.f32 %v1113, 1.442695
        %v1117 = vpow.pop %v1116
        %v1118 = vsel %vm1105, %v1115, 0.0
        %1119 = vadd.xlane.f32.xlu0 %v1118
        %v1120 = vpop.xlane.xlu0 %1119
        %v1121 = vsel %vm1105, %v1117, 0.0
        %1122 = vadd.xlane.f32.xlu0 %v1121
        %v1123 = vpop.xlane.xlu0 %1122
        %v1124 = vrcp.pop %v1120
        %v1125 = vrcp.pop %v1123
        %v1126 = vmul.f32 %v1115, %v1124
        %v1127 = vmul.f32 %v1117, %v1125
        %v1128 = vpack.c.bf16 %v1127, %v1126
        %v1129 = vpack.c.bf16 %v1046, %v1043
        %v1131 = vsel %vm1105, %v1128, 0
        %1133 = vmatprep.subr.bf16.mxu0 0
        %1134 = vmatpush1.bf16.msra.mxu0 %v1129
        %1135 = vmatprep.subr.bf16.mxu0 0
        %1136 = vmatpush1.bf16.msra.mxu0 0
        %1137 = vmatprep.subr.bf16.mxu0 0
        %1138 = vmatpush1.bf16.msra.mxu0 0
        %1139 = vmatprep.subr.bf16.mxu0 0
        %1140 = vmatpush1.bf16.msra.mxu0 0
        %1141 = vmatprep.subr.bf16.mxu0 0
        %1142 = vmatpush1.bf16.msra.mxu0 0
        %1143 = vmatprep.subr.bf16.mxu0 0
        %1144 = vmatpush1.bf16.msra.mxu0 0
        %1145 = vmatprep.subr.bf16.mxu0 0
        %1146 = vmatpush1.bf16.msra.mxu0 0
        %1147 = vmatprep.subr.bf16.mxu0 0
        %1148 = vmatpush1.bf16.msra.mxu0 0
        %1149 = vmatprep.subr.bf16.mxu0 0
        %1150 = vmatpush1.bf16.msra.mxu0 0
        %1151 = vmatprep.subr.bf16.mxu0 0
        %1152 = vmatpush1.bf16.msra.mxu0 0
        %1153 = vmatprep.subr.bf16.mxu0 0
        %1154 = vmatpush1.bf16.msra.mxu0 0
        %1155 = vmatprep.subr.bf16.mxu0 0
        %1156 = vmatpush1.bf16.msra.mxu0 0
        %1157 = vmatprep.subr.bf16.mxu0 0
        %1158 = vmatpush1.bf16.msra.mxu0 0
        %1159 = vmatprep.subr.bf16.mxu0 0
        %1160 = vmatpush1.bf16.msra.mxu0 0
        %1161 = vmatprep.subr.bf16.mxu0 0
        %1162 = vmatpush1.bf16.msra.mxu0 0
        %1163 = vmatprep.subr.bf16.mxu0 0
        %1164 = vmatpush1.bf16.msra.mxu0 0
        %1165 = vmatprep.mubr.bf16.mxu0 0
        %1166 = vmatmul.mubr.bf16.gmra.mrb[0].mxu0 %v1131
        %v1167 = vpop.f32.mrb[0].mxu0
        %v1168 = vadd.f32 0.0, %v1167
        %v1169 = vpop.f32.mrb[0].mxu0
        %v1170 = vpop.f32.mrb[0].mxu0
        %v1171 = vadd.f32 0.0, %v1170
        %v1172 = vpop.f32.mrb[0].mxu0
        %1173 = vdwg.mxu0
        %v1174 = vpack.c.bf16 %v1171, %v1168
        %v1175 = vld [vmem:[%s10] sm:$0xf]
        %s1176 = scalar_lea.vmem %s4, 16
        %v1177 = vld [vmem:[%s1176] sm:$0xf]
        %v1178 = vld [vmem:[%s1176 + $0x4] sm:$0xf]
        %v1179 = vld [vmem:[%s1176 + $0x8] sm:$0xf]
        %v1180 = vld [vmem:[%s1176 + $0xc] sm:$0xf]
        %s1181 = scalar_lea.vmem %s5, 1
        %v1182 = vld [vmem:[%s1181] sm:$0x1]
        %v1184 = vlaneseq
        %v1185 = vshrl.u32 %v1184, 7
        %v1186 = vsub.s32 0, %v1185
        %v1187 = vrot.slane %v1182, %v1186
        %v1193 = vunpack.c.l.b16 %v1177
        %v1194 = vunpack.c.l.b16 %v1178
        %v1195 = vunpack.c.l.b16 %v1179
        %v1196 = vunpack.c.l.b16 %v1180
        %v1197 = vpack.c.b16 %v1194, %v1193
        %v1198 = vpack.c.b16 %v1196, %v1195
        %1201 = vmatprep.subr.bf16.mxu0 0
        %1202 = vmatpush1.bf16.msra.mxu0 %v1197
        %1203 = vmatprep.subr.bf16.mxu0 0
        %1204 = vmatpush1.bf16.msra.mxu0 %v1198
        %1205 = vmatprep.subr.bf16.mxu0 0
        %1206 = vmatpush1.bf16.msra.mxu0 0
        %1207 = vmatprep.subr.bf16.mxu0 0
        %1208 = vmatpush1.bf16.msra.mxu0 0
        %1209 = vmatprep.subr.bf16.mxu0 0
        %1210 = vmatpush1.bf16.msra.mxu0 0
        %1211 = vmatprep.subr.bf16.mxu0 0
        %1212 = vmatpush1.bf16.msra.mxu0 0
        %1213 = vmatprep.subr.bf16.mxu0 0
        %1214 = vmatpush1.bf16.msra.mxu0 0
        %1215 = vmatprep.subr.bf16.mxu0 0
        %1216 = vmatpush1.bf16.msra.mxu0 0
        %1217 = vmatprep.subr.bf16.mxu0 0
        %1218 = vmatpush1.bf16.msra.mxu0 0
        %1219 = vmatprep.subr.bf16.mxu0 0
        %1220 = vmatpush1.bf16.msra.mxu0 0
        %1221 = vmatprep.subr.bf16.mxu0 0
        %1222 = vmatpush1.bf16.msra.mxu0 0
        %1223 = vmatprep.subr.bf16.mxu0 0
        %1224 = vmatpush1.bf16.msra.mxu0 0
        %1225 = vmatprep.subr.bf16.mxu0 0
        %1226 = vmatpush1.bf16.msra.mxu0 0
        %1227 = vmatprep.subr.bf16.mxu0 0
        %1228 = vmatpush1.bf16.msra.mxu0 0
        %1229 = vmatprep.subr.bf16.mxu0 0
        %1230 = vmatpush1.bf16.msra.mxu0 0
        %1231 = vmatprep.subr.bf16.mxu0 0
        %1232 = vmatpush1.bf16.msra.mxu0 0
        %1233 = vmatprep.mubr.bf16.mxu0 0
        %1234 = vmatmul.mubr.bf16.gmra.mrb[0].mxu0 %v878
        %v1235 = vpop.f32.mrb[0].mxu0
        %v1236 = vadd.f32 %v1187, %v1235
        %v1237 = vpop.f32.mrb[0].mxu0
        %v1238 = vpop.f32.mrb[0].mxu0
        %v1239 = vadd.f32 %v1187, %v1238
        %v1240 = vpop.f32.mrb[0].mxu0
        %1241 = vdwg.mxu0
        %s1242 = scalar_lea.vmem %s6, 16
        %v1243 = vld [vmem:[%s1242] sm:$0xf]
        %v1244 = vld [vmem:[%s1242 + $0x4] sm:$0xf]
        %v1245 = vld [vmem:[%s1242 + $0x8] sm:$0xf]
        %v1246 = vld [vmem:[%s1242 + $0xc] sm:$0xf]
        %s1247 = scalar_lea.vmem %s7, 1
        %v1248 = vld [vmem:[%s1247] sm:$0x1]
        %v1250 = vlaneseq
        %v1251 = vshrl.u32 %v1250, 7
        %v1252 = vsub.s32 0, %v1251
        %v1253 = vrot.slane %v1248, %v1252
        %v1259 = vunpack.c.l.b16 %v1243
        %v1260 = vunpack.c.l.b16 %v1244
        %v1261 = vunpack.c.l.b16 %v1245
        %v1262 = vunpack.c.l.b16 %v1246
        %v1263 = vpack.c.b16 %v1260, %v1259
        %v1264 = vpack.c.b16 %v1262, %v1261
        %1267 = vmatprep.subr.bf16.mxu0 0
        %1268 = vmatpush1.bf16.msra.mxu0 %v1263
        %1269 = vmatprep.subr.bf16.mxu0 0
        %1270 = vmatpush1.bf16.msra.mxu0 %v1264
        %1271 = vmatprep.subr.bf16.mxu0 0
        %1272 = vmatpush1.bf16.msra.mxu0 0
        %1273 = vmatprep.subr.bf16.mxu0 0
        %1274 = vmatpush1.bf16.msra.mxu0 0
        %1275 = vmatprep.subr.bf16.mxu0 0
        %1276 = vmatpush1.bf16.msra.mxu0 0
        %1277 = vmatprep.subr.bf16.mxu0 0
        %1278 = vmatpush1.bf16.msra.mxu0 0
        %1279 = vmatprep.subr.bf16.mxu0 0
        %1280 = vmatpush1.bf16.msra.mxu0 0
        %1281 = vmatprep.subr.bf16.mxu0 0
        %1282 = vmatpush1.bf16.msra.mxu0 0
        %1283 = vmatprep.subr.bf16.mxu0 0
        %1284 = vmatpush1.bf16.msra.mxu0 0
        %1285 = vmatprep.subr.bf16.mxu0 0
        %1286 = vmatpush1.bf16.msra.mxu0 0
        %1287 = vmatprep.subr.bf16.mxu0 0
        %1288 = vmatpush1.bf16.msra.mxu0 0
        %1289 = vmatprep.subr.bf16.mxu0 0
        %1290 = vmatpush1.bf16.msra.mxu0 0
        %1291 = vmatprep.subr.bf16.mxu0 0
        %1292 = vmatpush1.bf16.msra.mxu0 0
        %1293 = vmatprep.subr.bf16.mxu0 0
        %1294 = vmatpush1.bf16.msra.mxu0 0
        %1295 = vmatprep.subr.bf16.mxu0 0
        %1296 = vmatpush1.bf16.msra.mxu0 0
        %1297 = vmatprep.subr.bf16.mxu0 0
        %1298 = vmatpush1.bf16.msra.mxu0 0
        %1299 = vmatprep.mubr.bf16.mxu0 0
        %1300 = vmatmul.mubr.bf16.gmra.mrb[0].mxu0 %v878
        %v1301 = vpop.f32.mrb[0].mxu0
        %v1302 = vadd.f32 %v1253, %v1301
        %v1303 = vpop.f32.mrb[0].mxu0
        %v1304 = vpop.f32.mrb[0].mxu0
        %v1305 = vadd.f32 %v1253, %v1304
        %v1306 = vpop.f32.mrb[0].mxu0
        %1307 = vdwg.mxu0
        %s1308 = scalar_lea.vmem %s8, 16
        %v1309 = vld [vmem:[%s1308] sm:$0xf]
        %v1310 = vld [vmem:[%s1308 + $0x4] sm:$0xf]
        %v1311 = vld [vmem:[%s1308 + $0x8] sm:$0xf]
        %v1312 = vld [vmem:[%s1308 + $0xc] sm:$0xf]
        %s1313 = scalar_lea.vmem %s9, 1
        %v1314 = vld [vmem:[%s1313] sm:$0x1]
        %v1316 = vlaneseq
        %v1317 = vshrl.u32 %v1316, 7
        %v1318 = vsub.s32 0, %v1317
        %v1319 = vrot.slane %v1314, %v1318
        %v1325 = vunpack.c.l.b16 %v1309
        %v1326 = vunpack.c.l.b16 %v1310
        %v1327 = vunpack.c.l.b16 %v1311
        %v1328 = vunpack.c.l.b16 %v1312
        %v1329 = vpack.c.b16 %v1326, %v1325
        %v1330 = vpack.c.b16 %v1328, %v1327
        %1333 = vmatprep.subr.bf16.mxu0 0
        %1334 = vmatpush1.bf16.msra.mxu0 %v1329
        %1335 = vmatprep.subr.bf16.mxu0 0
        %1336 = vmatpush1.bf16.msra.mxu0 %v1330
        %1337 = vmatprep.subr.bf16.mxu0 0
        %1338 = vmatpush1.bf16.msra.mxu0 0
        %1339 = vmatprep.subr.bf16.mxu0 0
        %1340 = vmatpush1.bf16.msra.mxu0 0
        %1341 = vmatprep.subr.bf16.mxu0 0
        %1342 = vmatpush1.bf16.msra.mxu0 0
        %1343 = vmatprep.subr.bf16.mxu0 0
        %1344 = vmatpush1.bf16.msra.mxu0 0
        %1345 = vmatprep.subr.bf16.mxu0 0
        %1346 = vmatpush1.bf16.msra.mxu0 0
        %1347 = vmatprep.subr.bf16.mxu0 0
        %1348 = vmatpush1.bf16.msra.mxu0 0
        %1349 = vmatprep.subr.bf16.mxu0 0
        %1350 = vmatpush1.bf16.msra.mxu0 0
        %1351 = vmatprep.subr.bf16.mxu0 0
        %1352 = vmatpush1.bf16.msra.mxu0 0
        %1353 = vmatprep.subr.bf16.mxu0 0
        %1354 = vmatpush1.bf16.msra.mxu0 0
        %1355 = vmatprep.subr.bf16.mxu0 0
        %1356 = vmatpush1.bf16.msra.mxu0 0
        %1357 = vmatprep.subr.bf16.mxu0 0
        %1358 = vmatpush1.bf16.msra.mxu0 0
        %1359 = vmatprep.subr.bf16.mxu0 0
        %1360 = vmatpush1.bf16.msra.mxu0 0
        %1361 = vmatprep.subr.bf16.mxu0 0
        %1362 = vmatpush1.bf16.msra.mxu0 0
        %1363 = vmatprep.subr.bf16.mxu0 0
        %1364 = vmatpush1.bf16.msra.mxu0 0
        %1365 = vmatprep.mubr.bf16.mxu0 0
        %1366 = vmatmul.mubr.bf16.gmra.mrb[0].mxu0 %v878
        %v1367 = vpop.f32.mrb[0].mxu0
        %v1368 = vadd.f32 %v1319, %v1367
        %v1369 = vpop.f32.mrb[0].mxu0
        %v1370 = vpop.f32.mrb[0].mxu0
        %v1371 = vadd.f32 %v1319, %v1370
        %v1372 = vpop.f32.mrb[0].mxu0
        %1373 = vdwg.mxu0
        %v1374 = vpack.c.bf16 %v1239, %v1236
        %v1375 = vpack.c.bf16 %v1305, %v1302
        %v1377 = vsel %vm1057, %v1374, 0
        %v1380 = vsel %vm1057, %v1375, 0
        %1382 = vmatprep.subr.bf16.mxu0 0
        %1383 = vmatpush1.bf16.xpose.msra.mxu0 %v1380
        %1384 = vmatprep.subr.bf16.mxu0 0
        %1385 = vmatpush1.bf16.xpose.msra.mxu0 0
        %1386 = vmatprep.subr.bf16.mxu0 0
        %1387 = vmatpush1.bf16.xpose.msra.mxu0 0
        %1388 = vmatprep.subr.bf16.mxu0 0
        %1389 = vmatpush1.bf16.xpose.msra.mxu0 0
        %1390 = vmatprep.subr.bf16.mxu0 0
        %1391 = vmatpush1.bf16.xpose.msra.mxu0 0
        %1392 = vmatprep.subr.bf16.mxu0 0
        %1393 = vmatpush1.bf16.xpose.msra.mxu0 0
        %1394 = vmatprep.subr.bf16.mxu0 0
        %1395 = vmatpush1.bf16.xpose.msra.mxu0 0
        %1396 = vmatprep.subr.bf16.mxu0 0
        %1397 = vmatpush1.bf16.xpose.msra.mxu0 0
        %1398 = vmatprep.subr.bf16.mxu0 0
        %1399 = vmatpush1.bf16.xpose.msra.mxu0 0
        %1400 = vmatprep.subr.bf16.mxu0 0
        %1401 = vmatpush1.bf16.xpose.msra.mxu0 0
        %1402 = vmatprep.subr.bf16.mxu0 0
        %1403 = vmatpush1.bf16.xpose.msra.mxu0 0
        %1404 = vmatprep.subr.bf16.mxu0 0
        %1405 = vmatpush1.bf16.xpose.msra.mxu0 0
        %1406 = vmatprep.subr.bf16.mxu0 0
        %1407 = vmatpush1.bf16.xpose.msra.mxu0 0
        %1408 = vmatprep.subr.bf16.mxu0 0
        %1409 = vmatpush1.bf16.xpose.msra.mxu0 0
        %1410 = vmatprep.subr.bf16.mxu0 0
        %1411 = vmatpush1.bf16.xpose.msra.mxu0 0
        %1412 = vmatprep.subr.bf16.mxu0 0
        %1413 = vmatpush1.bf16.xpose.msra.mxu0 0
        %1414 = vmatprep.mubr.bf16.mxu0 0
        %1415 = vmatmul.mubr.bf16.gmra.mrb[0].mxu0 %v1377
        %v1416 = vpop.f32.mrb[0].mxu0
        %v1417 = vadd.f32 %v1055, %v1416
        %v1418 = vpop.f32.mrb[0].mxu0
        %v1419 = vpop.f32.mrb[0].mxu0
        %v1420 = vadd.f32 %v1055, %v1419
        %v1421 = vpop.f32.mrb[0].mxu0
        %1422 = vdwg.mxu0
        %v1423 = vsel %vm1105, %v1417, -inf
        %1424 = vmax.xlane.f32.xlu0 %v1423
        %v1425 = vpop.xlane.xlu0 %1424
        %v1426 = vsel %vm1105, %v1420, -inf
        %1427 = vmax.xlane.f32.xlu0 %v1426
        %v1428 = vpop.xlane.xlu0 %1427
        %v1429 = vsub.f32 %v1417, %v1425
        %v1430 = vsub.f32 %v1420, %v1428
        %v1431 = vmul.f32 %v1429, 1.442695
        %v1432 = vpow.pop %v1431
        %v1433 = vmul.f32 %v1430, 1.442695
        %v1434 = vpow.pop %v1433
        %v1435 = vsel %vm1105, %v1432, 0.0
        %1436 = vadd.xlane.f32.xlu0 %v1435
        %v1437 = vpop.xlane.xlu0 %1436
        %v1438 = vsel %vm1105, %v1434, 0.0
        %1439 = vadd.xlane.f32.xlu0 %v1438
        %v1440 = vpop.xlane.xlu0 %1439
        %v1441 = vrcp.pop %v1437
        %v1442 = vrcp.pop %v1440
        %v1443 = vmul.f32 %v1432, %v1441
        %v1444 = vmul.f32 %v1434, %v1442
        %v1445 = vpack.c.bf16 %v1444, %v1443
        %v1446 = vpack.c.bf16 %v1371, %v1368
        %v1448 = vsel %vm1105, %v1445, 0
        %1450 = vmatprep.subr.bf16.mxu0 0
        %1451 = vmatpush1.bf16.msra.mxu0 %v1446
        %1452 = vmatprep.subr.bf16.mxu0 0
        %1453 = vmatpush1.bf16.msra.mxu0 0
        %1454 = vmatprep.subr.bf16.mxu0 0
        %1455 = vmatpush1.bf16.msra.mxu0 0
        %1456 = vmatprep.subr.bf16.mxu0 0
        %1457 = vmatpush1.bf16.msra.mxu0 0
        %1458 = vmatprep.subr.bf16.mxu0 0
        %1459 = vmatpush1.bf16.msra.mxu0 0
        %1460 = vmatprep.subr.bf16.mxu0 0
        %1461 = vmatpush1.bf16.msra.mxu0 0
        %1462 = vmatprep.subr.bf16.mxu0 0
        %1463 = vmatpush1.bf16.msra.mxu0 0
        %1464 = vmatprep.subr.bf16.mxu0 0
        %1465 = vmatpush1.bf16.msra.mxu0 0
        %1466 = vmatprep.subr.bf16.mxu0 0
        %1467 = vmatpush1.bf16.msra.mxu0 0
        %1468 = vmatprep.subr.bf16.mxu0 0
        %1469 = vmatpush1.bf16.msra.mxu0 0
        %1470 = vmatprep.subr.bf16.mxu0 0
        %1471 = vmatpush1.bf16.msra.mxu0 0
        %1472 = vmatprep.subr.bf16.mxu0 0
        %1473 = vmatpush1.bf16.msra.mxu0 0
        %1474 = vmatprep.subr.bf16.mxu0 0
        %1475 = vmatpush1.bf16.msra.mxu0 0
        %1476 = vmatprep.subr.bf16.mxu0 0
        %1477 = vmatpush1.bf16.msra.mxu0 0
        %1478 = vmatprep.subr.bf16.mxu0 0
        %1479 = vmatpush1.bf16.msra.mxu0 0
        %1480 = vmatprep.subr.bf16.mxu0 0
        %1481 = vmatpush1.bf16.msra.mxu0 0
        %1482 = vmatprep.mubr.bf16.mxu0 0
        %1483 = vmatmul.mubr.bf16.gmra.mrb[0].mxu0 %v1448
        %v1484 = vpop.f32.mrb[0].mxu0
        %v1485 = vadd.f32 0.0, %v1484
        %v1486 = vpop.f32.mrb[0].mxu0
        %v1487 = vpop.f32.mrb[0].mxu0
        %v1488 = vadd.f32 0.0, %v1487
        %v1489 = vpop.f32.mrb[0].mxu0
        %1490 = vdwg.mxu0
        %v1491 = vpack.c.bf16 %v1488, %v1485
        %s1492 = scalar_lea.vmem %s10, 4
        %v1493 = vld [vmem:[%s1492] sm:$0xf]
        %v1495 = vsel %vm1057, %v1491, 0
        %vm1497 = vcmask 1043456
        %v1499 = vsel %vm1497, %v1493, 0
        %1501 = vmatprep.subr.bf16.mxu0 0
        %1502 = vmatpush1.bf16.msra.mxu0 %v1499
        %1503 = vmatprep.subr.bf16.mxu0 0
        %1504 = vmatpush1.bf16.msra.mxu0 0
        %1505 = vmatprep.subr.bf16.mxu0 0
        %1506 = vmatpush1.bf16.msra.mxu0 0
        %1507 = vmatprep.subr.bf16.mxu0 0
        %1508 = vmatpush1.bf16.msra.mxu0 0
        %1509 = vmatprep.subr.bf16.mxu0 0
        %1510 = vmatpush1.bf16.msra.mxu0 0
        %1511 = vmatprep.subr.bf16.mxu0 0
        %1512 = vmatpush1.bf16.msra.mxu0 0
        %1513 = vmatprep.subr.bf16.mxu0 0
        %1514 = vmatpush1.bf16.msra.mxu0 0
        %1515 = vmatprep.subr.bf16.mxu0 0
        %1516 = vmatpush1.bf16.msra.mxu0 0
        %1517 = vmatprep.subr.bf16.mxu0 0
        %1518 = vmatpush1.bf16.msra.mxu0 0
        %1519 = vmatprep.subr.bf16.mxu0 0
        %1520 = vmatpush1.bf16.msra.mxu0 0
        %1521 = vmatprep.subr.bf16.mxu0 0
        %1522 = vmatpush1.bf16.msra.mxu0 0
        %1523 = vmatprep.subr.bf16.mxu0 0
        %1524 = vmatpush1.bf16.msra.mxu0 0
        %1525 = vmatprep.subr.bf16.mxu0 0
        %1526 = vmatpush1.bf16.msra.mxu0 0
        %1527 = vmatprep.subr.bf16.mxu0 0
        %1528 = vmatpush1.bf16.msra.mxu0 0
        %1529 = vmatprep.subr.bf16.mxu0 0
        %1530 = vmatpush1.bf16.msra.mxu0 0
        %1531 = vmatprep.subr.bf16.mxu0 0
        %1532 = vmatpush1.bf16.msra.mxu0 0
        %1533 = vmatprep.mubr.bf16.mxu0 0
        %1534 = vmatmul.mubr.bf16.gmra.mrb[0].mxu0 %v1495
        %v1535 = vpop.f32.mrb[0].mxu0
        %v1536 = vadd.f32 0.0, %v1535
        %v1537 = vpop.f32.mrb[0].mxu0
        %v1538 = vpop.f32.mrb[0].mxu0
        %v1539 = vadd.f32 0.0, %v1538
        %v1540 = vpop.f32.mrb[0].mxu0
        %1541 = vdwg.mxu0
        %v1543 = vsel %vm1057, %v1174, 0
        %v1546 = vsel %vm1497, %v1175, 0
        %1548 = vmatprep.subr.bf16.mxu0 0
        %1549 = vmatpush1.bf16.msra.mxu0 %v1546
        %1550 = vmatprep.subr.bf16.mxu0 0
        %1551 = vmatpush1.bf16.msra.mxu0 0
        %1552 = vmatprep.subr.bf16.mxu0 0
        %1553 = vmatpush1.bf16.msra.mxu0 0
        %1554 = vmatprep.subr.bf16.mxu0 0
        %1555 = vmatpush1.bf16.msra.mxu0 0
        %1556 = vmatprep.subr.bf16.mxu0 0
        %1557 = vmatpush1.bf16.msra.mxu0 0
        %1558 = vmatprep.subr.bf16.mxu0 0
        %1559 = vmatpush1.bf16.msra.mxu0 0
        %1560 = vmatprep.subr.bf16.mxu0 0
        %1561 = vmatpush1.bf16.msra.mxu0 0
        %1562 = vmatprep.subr.bf16.mxu0 0
        %1563 = vmatpush1.bf16.msra.mxu0 0
        %1564 = vmatprep.subr.bf16.mxu0 0
        %1565 = vmatpush1.bf16.msra.mxu0 0
        %1566 = vmatprep.subr.bf16.mxu0 0
        %1567 = vmatpush1.bf16.msra.mxu0 0
        %1568 = vmatprep.subr.bf16.mxu0 0
        %1569 = vmatpush1.bf16.msra.mxu0 0
        %1570 = vmatprep.subr.bf16.mxu0 0
        %1571 = vmatpush1.bf16.msra.mxu0 0
        %1572 = vmatprep.subr.bf16.mxu0 0
        %1573 = vmatpush1.bf16.msra.mxu0 0
        %1574 = vmatprep.subr.bf16.mxu0 0
        %1575 = vmatpush1.bf16.msra.mxu0 0
        %1576 = vmatprep.subr.bf16.mxu0 0
        %1577 = vmatpush1.bf16.msra.mxu0 0
        %1578 = vmatprep.subr.bf16.mxu0 0
        %1579 = vmatpush1.bf16.msra.mxu0 0
        %1580 = vmatprep.mubr.bf16.mxu0 0
        %1581 = vmatmul.mubr.bf16.gmra.mrb[0].mxu0 %v1543
        %v1582 = vpop.f32.mrb[0].mxu0
        %v1583 = vadd.f32 %v1536, %v1582
        %v1584 = vpop.f32.mrb[0].mxu0
        %v1585 = vpop.f32.mrb[0].mxu0
        %v1586 = vadd.f32 %v1539, %v1585
        %v1587 = vpop.f32.mrb[0].mxu0
        %1588 = vdwg.mxu0
        %s1589 = scalar_lea.vmem %s4, 32
        %v1590 = vld [vmem:[%s1589] sm:$0xf]
        %v1591 = vld [vmem:[%s1589 + $0x4] sm:$0xf]
        %v1592 = vld [vmem:[%s1589 + $0x8] sm:$0xf]
        %v1593 = vld [vmem:[%s1589 + $0xc] sm:$0xf]
        %s1594 = scalar_lea.vmem %s5, 2
        %v1595 = vld [vmem:[%s1594] sm:$0x1]
        %v1597 = vlaneseq
        %v1598 = vshrl.u32 %v1597, 7
        %v1599 = vsub.s32 0, %v1598
        %v1600 = vrot.slane %v1595, %v1599
        %v1606 = vunpack.c.l.b16 %v1590
        %v1607 = vunpack.c.l.b16 %v1591
        %v1608 = vunpack.c.l.b16 %v1592
        %v1609 = vunpack.c.l.b16 %v1593
        %v1610 = vpack.c.b16 %v1607, %v1606
        %v1611 = vpack.c.b16 %v1609, %v1608
        %1614 = vmatprep.subr.bf16.mxu0 0
        %1615 = vmatpush1.bf16.msra.mxu0 %v1610
        %1616 = vmatprep.subr.bf16.mxu0 0
        %1617 = vmatpush1.bf16.msra.mxu0 %v1611
        %1618 = vmatprep.subr.bf16.mxu0 0
        %1619 = vmatpush1.bf16.msra.mxu0 0
        %1620 = vmatprep.subr.bf16.mxu0 0
        %1621 = vmatpush1.bf16.msra.mxu0 0
        %1622 = vmatprep.subr.bf16.mxu0 0
        %1623 = vmatpush1.bf16.msra.mxu0 0
        %1624 = vmatprep.subr.bf16.mxu0 0
        %1625 = vmatpush1.bf16.msra.mxu0 0
        %1626 = vmatprep.subr.bf16.mxu0 0
        %1627 = vmatpush1.bf16.msra.mxu0 0
        %1628 = vmatprep.subr.bf16.mxu0 0
        %1629 = vmatpush1.bf16.msra.mxu0 0
        %1630 = vmatprep.subr.bf16.mxu0 0
        %1631 = vmatpush1.bf16.msra.mxu0 0
        %1632 = vmatprep.subr.bf16.mxu0 0
        %1633 = vmatpush1.bf16.msra.mxu0 0
        %1634 = vmatprep.subr.bf16.mxu0 0
        %1635 = vmatpush1.bf16.msra.mxu0 0
        %1636 = vmatprep.subr.bf16.mxu0 0
        %1637 = vmatpush1.bf16.msra.mxu0 0
        %1638 = vmatprep.subr.bf16.mxu0 0
        %1639 = vmatpush1.bf16.msra.mxu0 0
        %1640 = vmatprep.subr.bf16.mxu0 0
        %1641 = vmatpush1.bf16.msra.mxu0 0
        %1642 = vmatprep.subr.bf16.mxu0 0
        %1643 = vmatpush1.bf16.msra.mxu0 0
        %1644 = vmatprep.subr.bf16.mxu0 0
        %1645 = vmatpush1.bf16.msra.mxu0 0
        %1646 = vmatprep.mubr.bf16.mxu0 0
        %1647 = vmatmul.mubr.bf16.gmra.mrb[0].mxu0 %v878
        %v1648 = vpop.f32.mrb[0].mxu0
        %v1649 = vadd.f32 %v1600, %v1648
        %v1650 = vpop.f32.mrb[0].mxu0
        %v1651 = vpop.f32.mrb[0].mxu0
        %v1652 = vadd.f32 %v1600, %v1651
        %v1653 = vpop.f32.mrb[0].mxu0
        %1654 = vdwg.mxu0
        %s1655 = scalar_lea.vmem %s6, 32
        %v1656 = vld [vmem:[%s1655] sm:$0xf]
        %v1657 = vld [vmem:[%s1655 + $0x4] sm:$0xf]
        %v1658 = vld [vmem:[%s1655 + $0x8] sm:$0xf]
        %v1659 = vld [vmem:[%s1655 + $0xc] sm:$0xf]
        %s1660 = scalar_lea.vmem %s7, 2
        %v1661 = vld [vmem:[%s1660] sm:$0x1]
        %v1663 = vlaneseq
        %v1664 = vshrl.u32 %v1663, 7
        %v1665 = vsub.s32 0, %v1664
        %v1666 = vrot.slane %v1661, %v1665
        %v1672 = vunpack.c.l.b16 %v1656
        %v1673 = vunpack.c.l.b16 %v1657
        %v1674 = vunpack.c.l.b16 %v1658
        %v1675 = vunpack.c.l.b16 %v1659
        %v1676 = vpack.c.b16 %v1673, %v1672
        %v1677 = vpack.c.b16 %v1675, %v1674
        %1680 = vmatprep.subr.bf16.mxu0 0
        %1681 = vmatpush1.bf16.msra.mxu0 %v1676
        %1682 = vmatprep.subr.bf16.mxu0 0
        %1683 = vmatpush1.bf16.msra.mxu0 %v1677
        %1684 = vmatprep.subr.bf16.mxu0 0
        %1685 = vmatpush1.bf16.msra.mxu0 0
        %1686 = vmatprep.subr.bf16.mxu0 0
        %1687 = vmatpush1.bf16.msra.mxu0 0
        %1688 = vmatprep.subr.bf16.mxu0 0
        %1689 = vmatpush1.bf16.msra.mxu0 0
        %1690 = vmatprep.subr.bf16.mxu0 0
        %1691 = vmatpush1.bf16.msra.mxu0 0
        %1692 = vmatprep.subr.bf16.mxu0 0
        %1693 = vmatpush1.bf16.msra.mxu0 0
        %1694 = vmatprep.subr.bf16.mxu0 0
        %1695 = vmatpush1.bf16.msra.mxu0 0
        %1696 = vmatprep.subr.bf16.mxu0 0
        %1697 = vmatpush1.bf16.msra.mxu0 0
        %1698 = vmatprep.subr.bf16.mxu0 0
        %1699 = vmatpush1.bf16.msra.mxu0 0
        %1700 = vmatprep.subr.bf16.mxu0 0
        %1701 = vmatpush1.bf16.msra.mxu0 0
        %1702 = vmatprep.subr.bf16.mxu0 0
        %1703 = vmatpush1.bf16.msra.mxu0 0
        %1704 = vmatprep.subr.bf16.mxu0 0
        %1705 = vmatpush1.bf16.msra.mxu0 0
        %1706 = vmatprep.subr.bf16.mxu0 0
        %1707 = vmatpush1.bf16.msra.mxu0 0
        %1708 = vmatprep.subr.bf16.mxu0 0
        %1709 = vmatpush1.bf16.msra.mxu0 0
        %1710 = vmatprep.subr.bf16.mxu0 0
        %1711 = vmatpush1.bf16.msra.mxu0 0
        %1712 = vmatprep.mubr.bf16.mxu0 0
        %1713 = vmatmul.mubr.bf16.gmra.mrb[0].mxu0 %v878
        %v1714 = vpop.f32.mrb[0].mxu0
        %v1715 = vadd.f32 %v1666, %v1714
        %v1716 = vpop.f32.mrb[0].mxu0
        %v1717 = vpop.f32.mrb[0].mxu0
        %v1718 = vadd.f32 %v1666, %v1717
        %v1719 = vpop.f32.mrb[0].mxu0
        %1720 = vdwg.mxu0
        %s1721 = scalar_lea.vmem %s8, 32
        %v1722 = vld [vmem:[%s1721] sm:$0xf]
        %v1723 = vld [vmem:[%s1721 + $0x4] sm:$0xf]
        %v1724 = vld [vmem:[%s1721 + $0x8] sm:$0xf]
        %v1725 = vld [vmem:[%s1721 + $0xc] sm:$0xf]
        %s1726 = scalar_lea.vmem %s9, 2
        %v1727 = vld [vmem:[%s1726] sm:$0x1]
        %v1729 = vlaneseq
        %v1730 = vshrl.u32 %v1729, 7
        %v1731 = vsub.s32 0, %v1730
        %v1732 = vrot.slane %v1727, %v1731
        %v1738 = vunpack.c.l.b16 %v1722
        %v1739 = vunpack.c.l.b16 %v1723
        %v1740 = vunpack.c.l.b16 %v1724
        %v1741 = vunpack.c.l.b16 %v1725
        %v1742 = vpack.c.b16 %v1739, %v1738
        %v1743 = vpack.c.b16 %v1741, %v1740
        %1746 = vmatprep.subr.bf16.mxu0 0
        %1747 = vmatpush1.bf16.msra.mxu0 %v1742
        %1748 = vmatprep.subr.bf16.mxu0 0
        %1749 = vmatpush1.bf16.msra.mxu0 %v1743
        %1750 = vmatprep.subr.bf16.mxu0 0
        %1751 = vmatpush1.bf16.msra.mxu0 0
        %1752 = vmatprep.subr.bf16.mxu0 0
        %1753 = vmatpush1.bf16.msra.mxu0 0
        %1754 = vmatprep.subr.bf16.mxu0 0
        %1755 = vmatpush1.bf16.msra.mxu0 0
        %1756 = vmatprep.subr.bf16.mxu0 0
        %1757 = vmatpush1.bf16.msra.mxu0 0
        %1758 = vmatprep.subr.bf16.mxu0 0
        %1759 = vmatpush1.bf16.msra.mxu0 0
        %1760 = vmatprep.subr.bf16.mxu0 0
        %1761 = vmatpush1.bf16.msra.mxu0 0
        %1762 = vmatprep.subr.bf16.mxu0 0
        %1763 = vmatpush1.bf16.msra.mxu0 0
        %1764 = vmatprep.subr.bf16.mxu0 0
        %1765 = vmatpush1.bf16.msra.mxu0 0
        %1766 = vmatprep.subr.bf16.mxu0 0
        %1767 = vmatpush1.bf16.msra.mxu0 0
        %1768 = vmatprep.subr.bf16.mxu0 0
        %1769 = vmatpush1.bf16.msra.mxu0 0
        %1770 = vmatprep.subr.bf16.mxu0 0
        %1771 = vmatpush1.bf16.msra.mxu0 0
        %1772 = vmatprep.subr.bf16.mxu0 0
        %1773 = vmatpush1.bf16.msra.mxu0 0
        %1774 = vmatprep.subr.bf16.mxu0 0
        %1775 = vmatpush1.bf16.msra.mxu0 0
        %1776 = vmatprep.subr.bf16.mxu0 0
        %1777 = vmatpush1.bf16.msra.mxu0 0
        %1778 = vmatprep.mubr.bf16.mxu0 0
        %1779 = vmatmul.mubr.bf16.gmra.mrb[0].mxu0 %v878
        %v1780 = vpop.f32.mrb[0].mxu0
        %v1781 = vadd.f32 %v1732, %v1780
        %v1782 = vpop.f32.mrb[0].mxu0
        %v1783 = vpop.f32.mrb[0].mxu0
        %v1784 = vadd.f32 %v1732, %v1783
        %v1785 = vpop.f32.mrb[0].mxu0
        %1786 = vdwg.mxu0
        %v1787 = vpack.c.bf16 %v1652, %v1649
        %v1788 = vpack.c.bf16 %v1718, %v1715
        %v1790 = vsel %vm1057, %v1787, 0
        %v1793 = vsel %vm1057, %v1788, 0
        %1795 = vmatprep.subr.bf16.mxu0 0
        %1796 = vmatpush1.bf16.xpose.msra.mxu0 %v1793
        %1797 = vmatprep.subr.bf16.mxu0 0
        %1798 = vmatpush1.bf16.xpose.msra.mxu0 0
        %1799 = vmatprep.subr.bf16.mxu0 0
        %1800 = vmatpush1.bf16.xpose.msra.mxu0 0
        %1801 = vmatprep.subr.bf16.mxu0 0
        %1802 = vmatpush1.bf16.xpose.msra.mxu0 0
        %1803 = vmatprep.subr.bf16.mxu0 0
        %1804 = vmatpush1.bf16.xpose.msra.mxu0 0
        %1805 = vmatprep.subr.bf16.mxu0 0
        %1806 = vmatpush1.bf16.xpose.msra.mxu0 0
        %1807 = vmatprep.subr.bf16.mxu0 0
        %1808 = vmatpush1.bf16.xpose.msra.mxu0 0
        %1809 = vmatprep.subr.bf16.mxu0 0
        %1810 = vmatpush1.bf16.xpose.msra.mxu0 0
        %1811 = vmatprep.subr.bf16.mxu0 0
        %1812 = vmatpush1.bf16.xpose.msra.mxu0 0
        %1813 = vmatprep.subr.bf16.mxu0 0
        %1814 = vmatpush1.bf16.xpose.msra.mxu0 0
        %1815 = vmatprep.subr.bf16.mxu0 0
        %1816 = vmatpush1.bf16.xpose.msra.mxu0 0
        %1817 = vmatprep.subr.bf16.mxu0 0
        %1818 = vmatpush1.bf16.xpose.msra.mxu0 0
        %1819 = vmatprep.subr.bf16.mxu0 0
        %1820 = vmatpush1.bf16.xpose.msra.mxu0 0
        %1821 = vmatprep.subr.bf16.mxu0 0
        %1822 = vmatpush1.bf16.xpose.msra.mxu0 0
        %1823 = vmatprep.subr.bf16.mxu0 0
        %1824 = vmatpush1.bf16.xpose.msra.mxu0 0
        %1825 = vmatprep.subr.bf16.mxu0 0
        %1826 = vmatpush1.bf16.xpose.msra.mxu0 0
        %1827 = vmatprep.mubr.bf16.mxu0 0
        %1828 = vmatmul.mubr.bf16.gmra.mrb[0].mxu0 %v1790
        %v1829 = vpop.f32.mrb[0].mxu0
        %v1830 = vadd.f32 %v1055, %v1829
        %v1831 = vpop.f32.mrb[0].mxu0
        %v1832 = vpop.f32.mrb[0].mxu0
        %v1833 = vadd.f32 %v1055, %v1832
        %v1834 = vpop.f32.mrb[0].mxu0
        %1835 = vdwg.mxu0
        %v1836 = vsel %vm1105, %v1830, -inf
        %1837 = vmax.xlane.f32.xlu0 %v1836
        %v1838 = vpop.xlane.xlu0 %1837
        %v1839 = vsel %vm1105, %v1833, -inf
        %1840 = vmax.xlane.f32.xlu0 %v1839
        %v1841 = vpop.xlane.xlu0 %1840
        %v1842 = vsub.f32 %v1830, %v1838
        %v1843 = vsub.f32 %v1833, %v1841
        %v1844 = vmul.f32 %v1842, 1.442695
        %v1845 = vpow.pop %v1844
        %v1846 = vmul.f32 %v1843, 1.442695
        %v1847 = vpow.pop %v1846
        %v1848 = vsel %vm1105, %v1845, 0.0
        %1849 = vadd.xlane.f32.xlu0 %v1848
        %v1850 = vpop.xlane.xlu0 %1849
        %v1851 = vsel %vm1105, %v1847, 0.0
        %1852 = vadd.xlane.f32.xlu0 %v1851
        %v1853 = vpop.xlane.xlu0 %1852
        %v1854 = vrcp.pop %v1850
        %v1855 = vrcp.pop %v1853
        %v1856 = vmul.f32 %v1845, %v1854
        %v1857 = vmul.f32 %v1847, %v1855
        %v1858 = vpack.c.bf16 %v1857, %v1856
        %v1859 = vpack.c.bf16 %v1784, %v1781
        %v1861 = vsel %vm1105, %v1858, 0
        %1863 = vmatprep.subr.bf16.mxu0 0
        %1864 = vmatpush1.bf16.msra.mxu0 %v1859
        %1865 = vmatprep.subr.bf16.mxu0 0
        %1866 = vmatpush1.bf16.msra.mxu0 0
        %1867 = vmatprep.subr.bf16.mxu0 0
        %1868 = vmatpush1.bf16.msra.mxu0 0
        %1869 = vmatprep.subr.bf16.mxu0 0
        %1870 = vmatpush1.bf16.msra.mxu0 0
        %1871 = vmatprep.subr.bf16.mxu0 0
        %1872 = vmatpush1.bf16.msra.mxu0 0
        %1873 = vmatprep.subr.bf16.mxu0 0
        %1874 = vmatpush1.bf16.msra.mxu0 0
        %1875 = vmatprep.subr.bf16.mxu0 0
        %1876 = vmatpush1.bf16.msra.mxu0 0
        %1877 = vmatprep.subr.bf16.mxu0 0
        %1878 = vmatpush1.bf16.msra.mxu0 0
        %1879 = vmatprep.subr.bf16.mxu0 0
        %1880 = vmatpush1.bf16.msra.mxu0 0
        %1881 = vmatprep.subr.bf16.mxu0 0
        %1882 = vmatpush1.bf16.msra.mxu0 0
        %1883 = vmatprep.subr.bf16.mxu0 0
        %1884 = vmatpush1.bf16.msra.mxu0 0
        %1885 = vmatprep.subr.bf16.mxu0 0
        %1886 = vmatpush1.bf16.msra.mxu0 0
        %1887 = vmatprep.subr.bf16.mxu0 0
        %1888 = vmatpush1.bf16.msra.mxu0 0
        %1889 = vmatprep.subr.bf16.mxu0 0
        %1890 = vmatpush1.bf16.msra.mxu0 0
        %1891 = vmatprep.subr.bf16.mxu0 0
        %1892 = vmatpush1.bf16.msra.mxu0 0
        %1893 = vmatprep.subr.bf16.mxu0 0
        %1894 = vmatpush1.bf16.msra.mxu0 0
        %1895 = vmatprep.mubr.bf16.mxu0 0
        %1896 = vmatmul.mubr.bf16.gmra.mrb[0].mxu0 %v1861
        %v1897 = vpop.f32.mrb[0].mxu0
        %v1898 = vadd.f32 0.0, %v1897
        %v1899 = vpop.f32.mrb[0].mxu0
        %v1900 = vpop.f32.mrb[0].mxu0
        %v1901 = vadd.f32 0.0, %v1900
        %v1902 = vpop.f32.mrb[0].mxu0
        %1903 = vdwg.mxu0
        %v1904 = vpack.c.bf16 %v1901, %v1898
        %s1905 = scalar_lea.vmem %s10, 8
        %v1906 = vld [vmem:[%s1905] sm:$0xf]
        %v1908 = vsel %vm1057, %v1904, 0
        %v1911 = vsel %vm1497, %v1906, 0
        %1913 = vmatprep.subr.bf16.mxu0 0
        %1914 = vmatpush1.bf16.msra.mxu0 %v1911
        %1915 = vmatprep.subr.bf16.mxu0 0
        %1916 = vmatpush1.bf16.msra.mxu0 0
        %1917 = vmatprep.subr.bf16.mxu0 0
        %1918 = vmatpush1.bf16.msra.mxu0 0
        %1919 = vmatprep.subr.bf16.mxu0 0
        %1920 = vmatpush1.bf16.msra.mxu0 0
        %1921 = vmatprep.subr.bf16.mxu0 0
        %1922 = vmatpush1.bf16.msra.mxu0 0
        %1923 = vmatprep.subr.bf16.mxu0 0
        %1924 = vmatpush1.bf16.msra.mxu0 0
        %1925 = vmatprep.subr.bf16.mxu0 0
        %1926 = vmatpush1.bf16.msra.mxu0 0
        %1927 = vmatprep.subr.bf16.mxu0 0
        %1928 = vmatpush1.bf16.msra.mxu0 0
        %1929 = vmatprep.subr.bf16.mxu0 0
        %1930 = vmatpush1.bf16.msra.mxu0 0
        %1931 = vmatprep.subr.bf16.mxu0 0
        %1932 = vmatpush1.bf16.msra.mxu0 0
        %1933 = vmatprep.subr.bf16.mxu0 0
        %1934 = vmatpush1.bf16.msra.mxu0 0
        %1935 = vmatprep.subr.bf16.mxu0 0
        %1936 = vmatpush1.bf16.msra.mxu0 0
        %1937 = vmatprep.subr.bf16.mxu0 0
        %1938 = vmatpush1.bf16.msra.mxu0 0
        %1939 = vmatprep.subr.bf16.mxu0 0
        %1940 = vmatpush1.bf16.msra.mxu0 0
        %1941 = vmatprep.subr.bf16.mxu0 0
        %1942 = vmatpush1.bf16.msra.mxu0 0
        %1943 = vmatprep.subr.bf16.mxu0 0
        %1944 = vmatpush1.bf16.msra.mxu0 0
        %1945 = vmatprep.mubr.bf16.mxu0 0
        %1946 = vmatmul.mubr.bf16.gmra.mrb[0].mxu0 %v1908
        %v1947 = vpop.f32.mrb[0].mxu0
        %v1948 = vadd.f32 0.0, %v1947
        %v1949 = vpop.f32.mrb[0].mxu0
        %v1950 = vpop.f32.mrb[0].mxu0
        %v1951 = vadd.f32 0.0, %v1950
        %v1952 = vpop.f32.mrb[0].mxu0
        %1953 = vdwg.mxu0
        %v1954 = vadd.f32 %v1583, %v1948
        %v1955 = vadd.f32 %v1586, %v1951
        %s1956 = scalar_lea.vmem %s4, 48
        %v1957 = vld [vmem:[%s1956] sm:$0xf]
        %v1958 = vld [vmem:[%s1956 + $0x4] sm:$0xf]
        %v1959 = vld [vmem:[%s1956 + $0x8] sm:$0xf]
        %v1960 = vld [vmem:[%s1956 + $0xc] sm:$0xf]
        %s1961 = scalar_lea.vmem %s5, 3
        %v1962 = vld [vmem:[%s1961] sm:$0x1]
        %v1964 = vlaneseq
        %v1965 = vshrl.u32 %v1964, 7
        %v1966 = vsub.s32 0, %v1965
        %v1967 = vrot.slane %v1962, %v1966
        %v1973 = vunpack.c.l.b16 %v1957
        %v1974 = vunpack.c.l.b16 %v1958
        %v1975 = vunpack.c.l.b16 %v1959
        %v1976 = vunpack.c.l.b16 %v1960
        %v1977 = vpack.c.b16 %v1974, %v1973
        %v1978 = vpack.c.b16 %v1976, %v1975
        %1981 = vmatprep.subr.bf16.mxu0 0
        %1982 = vmatpush1.bf16.msra.mxu0 %v1977
        %1983 = vmatprep.subr.bf16.mxu0 0
        %1984 = vmatpush1.bf16.msra.mxu0 %v1978
        %1985 = vmatprep.subr.bf16.mxu0 0
        %1986 = vmatpush1.bf16.msra.mxu0 0
        %1987 = vmatprep.subr.bf16.mxu0 0
        %1988 = vmatpush1.bf16.msra.mxu0 0
        %1989 = vmatprep.subr.bf16.mxu0 0
        %1990 = vmatpush1.bf16.msra.mxu0 0
        %1991 = vmatprep.subr.bf16.mxu0 0
        %1992 = vmatpush1.bf16.msra.mxu0 0
        %1993 = vmatprep.subr.bf16.mxu0 0
        %1994 = vmatpush1.bf16.msra.mxu0 0
        %1995 = vmatprep.subr.bf16.mxu0 0
        %1996 = vmatpush1.bf16.msra.mxu0 0
        %1997 = vmatprep.subr.bf16.mxu0 0
        %1998 = vmatpush1.bf16.msra.mxu0 0
        %1999 = vmatprep.subr.bf16.mxu0 0
        %2000 = vmatpush1.bf16.msra.mxu0 0
        %2001 = vmatprep.subr.bf16.mxu0 0
        %2002 = vmatpush1.bf16.msra.mxu0 0
        %2003 = vmatprep.subr.bf16.mxu0 0
        %2004 = vmatpush1.bf16.msra.mxu0 0
        %2005 = vmatprep.subr.bf16.mxu0 0
        %2006 = vmatpush1.bf16.msra.mxu0 0
        %2007 = vmatprep.subr.bf16.mxu0 0
        %2008 = vmatpush1.bf16.msra.mxu0 0
        %2009 = vmatprep.subr.bf16.mxu0 0
        %2010 = vmatpush1.bf16.msra.mxu0 0
        %2011 = vmatprep.subr.bf16.mxu0 0
        %2012 = vmatpush1.bf16.msra.mxu0 0
        %2013 = vmatprep.mubr.bf16.mxu0 0
        %2014 = vmatmul.mubr.bf16.gmra.mrb[0].mxu0 %v878
        %v2015 = vpop.f32.mrb[0].mxu0
        %v2016 = vadd.f32 %v1967, %v2015
        %v2017 = vpop.f32.mrb[0].mxu0
        %v2018 = vpop.f32.mrb[0].mxu0
        %v2019 = vadd.f32 %v1967, %v2018
        %v2020 = vpop.f32.mrb[0].mxu0
        %2021 = vdwg.mxu0
        %s2022 = scalar_lea.vmem %s6, 48
        %v2023 = vld [vmem:[%s2022] sm:$0xf]
        %v2024 = vld [vmem:[%s2022 + $0x4] sm:$0xf]
        %v2025 = vld [vmem:[%s2022 + $0x8] sm:$0xf]
        %v2026 = vld [vmem:[%s2022 + $0xc] sm:$0xf]
        %s2027 = scalar_lea.vmem %s7, 3
        %v2028 = vld [vmem:[%s2027] sm:$0x1]
        %v2030 = vlaneseq
        %v2031 = vshrl.u32 %v2030, 7
        %v2032 = vsub.s32 0, %v2031
        %v2033 = vrot.slane %v2028, %v2032
        %v2039 = vunpack.c.l.b16 %v2023
        %v2040 = vunpack.c.l.b16 %v2024
        %v2041 = vunpack.c.l.b16 %v2025
        %v2042 = vunpack.c.l.b16 %v2026
        %v2043 = vpack.c.b16 %v2040, %v2039
        %v2044 = vpack.c.b16 %v2042, %v2041
        %2047 = vmatprep.subr.bf16.mxu0 0
        %2048 = vmatpush1.bf16.msra.mxu0 %v2043
        %2049 = vmatprep.subr.bf16.mxu0 0
        %2050 = vmatpush1.bf16.msra.mxu0 %v2044
        %2051 = vmatprep.subr.bf16.mxu0 0
        %2052 = vmatpush1.bf16.msra.mxu0 0
        %2053 = vmatprep.subr.bf16.mxu0 0
        %2054 = vmatpush1.bf16.msra.mxu0 0
        %2055 = vmatprep.subr.bf16.mxu0 0
        %2056 = vmatpush1.bf16.msra.mxu0 0
        %2057 = vmatprep.subr.bf16.mxu0 0
        %2058 = vmatpush1.bf16.msra.mxu0 0
        %2059 = vmatprep.subr.bf16.mxu0 0
        %2060 = vmatpush1.bf16.msra.mxu0 0
        %2061 = vmatprep.subr.bf16.mxu0 0
        %2062 = vmatpush1.bf16.msra.mxu0 0
        %2063 = vmatprep.subr.bf16.mxu0 0
        %2064 = vmatpush1.bf16.msra.mxu0 0
        %2065 = vmatprep.subr.bf16.mxu0 0
        %2066 = vmatpush1.bf16.msra.mxu0 0
        %2067 = vmatprep.subr.bf16.mxu0 0
        %2068 = vmatpush1.bf16.msra.mxu0 0
        %2069 = vmatprep.subr.bf16.mxu0 0
        %2070 = vmatpush1.bf16.msra.mxu0 0
        %2071 = vmatprep.subr.bf16.mxu0 0
        %2072 = vmatpush1.bf16.msra.mxu0 0
        %2073 = vmatprep.subr.bf16.mxu0 0
        %2074 = vmatpush1.bf16.msra.mxu0 0
        %2075 = vmatprep.subr.bf16.mxu0 0
        %2076 = vmatpush1.bf16.msra.mxu0 0
        %2077 = vmatprep.subr.bf16.mxu0 0
        %2078 = vmatpush1.bf16.msra.mxu0 0
        %2079 = vmatprep.mubr.bf16.mxu0 0
        %2080 = vmatmul.mubr.bf16.gmra.mrb[0].mxu0 %v878
        %v2081 = vpop.f32.mrb[0].mxu0
        %v2082 = vadd.f32 %v2033, %v2081
        %v2083 = vpop.f32.mrb[0].mxu0
        %v2084 = vpop.f32.mrb[0].mxu0
        %v2085 = vadd.f32 %v2033, %v2084
        %v2086 = vpop.f32.mrb[0].mxu0
        %2087 = vdwg.mxu0
        %s2088 = scalar_lea.vmem %s8, 48
        %v2089 = vld [vmem:[%s2088] sm:$0xf]
        %v2090 = vld [vmem:[%s2088 + $0x4] sm:$0xf]
        %v2091 = vld [vmem:[%s2088 + $0x8] sm:$0xf]
        %v2092 = vld [vmem:[%s2088 + $0xc] sm:$0xf]
        %s2093 = scalar_lea.vmem %s9, 3
        %v2094 = vld [vmem:[%s2093] sm:$0x1]
        %v2096 = vlaneseq
        %v2097 = vshrl.u32 %v2096, 7
        %v2098 = vsub.s32 0, %v2097
        %v2099 = vrot.slane %v2094, %v2098
        %v2105 = vunpack.c.l.b16 %v2089
        %v2106 = vunpack.c.l.b16 %v2090
        %v2107 = vunpack.c.l.b16 %v2091
        %v2108 = vunpack.c.l.b16 %v2092
        %v2109 = vpack.c.b16 %v2106, %v2105
        %v2110 = vpack.c.b16 %v2108, %v2107
        %2113 = vmatprep.subr.bf16.mxu0 0
        %2114 = vmatpush1.bf16.msra.mxu0 %v2109
        %2115 = vmatprep.subr.bf16.mxu0 0
        %2116 = vmatpush1.bf16.msra.mxu0 %v2110
        %2117 = vmatprep.subr.bf16.mxu0 0
        %2118 = vmatpush1.bf16.msra.mxu0 0
        %2119 = vmatprep.subr.bf16.mxu0 0
        %2120 = vmatpush1.bf16.msra.mxu0 0
        %2121 = vmatprep.subr.bf16.mxu0 0
        %2122 = vmatpush1.bf16.msra.mxu0 0
        %2123 = vmatprep.subr.bf16.mxu0 0
        %2124 = vmatpush1.bf16.msra.mxu0 0
        %2125 = vmatprep.subr.bf16.mxu0 0
        %2126 = vmatpush1.bf16.msra.mxu0 0
        %2127 = vmatprep.subr.bf16.mxu0 0
        %2128 = vmatpush1.bf16.msra.mxu0 0
        %2129 = vmatprep.subr.bf16.mxu0 0
        %2130 = vmatpush1.bf16.msra.mxu0 0
        %2131 = vmatprep.subr.bf16.mxu0 0
        %2132 = vmatpush1.bf16.msra.mxu0 0
        %2133 = vmatprep.subr.bf16.mxu0 0
        %2134 = vmatpush1.bf16.msra.mxu0 0
        %2135 = vmatprep.subr.bf16.mxu0 0
        %2136 = vmatpush1.bf16.msra.mxu0 0
        %2137 = vmatprep.subr.bf16.mxu0 0
        %2138 = vmatpush1.bf16.msra.mxu0 0
        %2139 = vmatprep.subr.bf16.mxu0 0
        %2140 = vmatpush1.bf16.msra.mxu0 0
        %2141 = vmatprep.subr.bf16.mxu0 0
        %2142 = vmatpush1.bf16.msra.mxu0 0
        %2143 = vmatprep.subr.bf16.mxu0 0
        %2144 = vmatpush1.bf16.msra.mxu0 0
        %2145 = vmatprep.mubr.bf16.mxu0 0
        %2146 = vmatmul.mubr.bf16.gmra.mrb[0].mxu0 %v878
        %v2147 = vpop.f32.mrb[0].mxu0
        %v2148 = vadd.f32 %v2099, %v2147
        %v2149 = vpop.f32.mrb[0].mxu0
        %v2150 = vpop.f32.mrb[0].mxu0
        %v2151 = vadd.f32 %v2099, %v2150
        %v2152 = vpop.f32.mrb[0].mxu0
        %2153 = vdwg.mxu0
        %v2154 = vpack.c.bf16 %v2019, %v2016
        %v2155 = vpack.c.bf16 %v2085, %v2082
        %v2157 = vsel %vm1057, %v2154, 0
        %v2160 = vsel %vm1057, %v2155, 0
        %2162 = vmatprep.subr.bf16.mxu0 0
        %2163 = vmatpush1.bf16.xpose.msra.mxu0 %v2160
        %2164 = vmatprep.subr.bf16.mxu0 0
        %2165 = vmatpush1.bf16.xpose.msra.mxu0 0
        %2166 = vmatprep.subr.bf16.mxu0 0
        %2167 = vmatpush1.bf16.xpose.msra.mxu0 0
        %2168 = vmatprep.subr.bf16.mxu0 0
        %2169 = vmatpush1.bf16.xpose.msra.mxu0 0
        %2170 = vmatprep.subr.bf16.mxu0 0
        %2171 = vmatpush1.bf16.xpose.msra.mxu0 0
        %2172 = vmatprep.subr.bf16.mxu0 0
        %2173 = vmatpush1.bf16.xpose.msra.mxu0 0
        %2174 = vmatprep.subr.bf16.mxu0 0
        %2175 = vmatpush1.bf16.xpose.msra.mxu0 0
        %2176 = vmatprep.subr.bf16.mxu0 0
        %2177 = vmatpush1.bf16.xpose.msra.mxu0 0
        %2178 = vmatprep.subr.bf16.mxu0 0
        %2179 = vmatpush1.bf16.xpose.msra.mxu0 0
        %2180 = vmatprep.subr.bf16.mxu0 0
        %2181 = vmatpush1.bf16.xpose.msra.mxu0 0
        %2182 = vmatprep.subr.bf16.mxu0 0
        %2183 = vmatpush1.bf16.xpose.msra.mxu0 0
        %2184 = vmatprep.subr.bf16.mxu0 0
        %2185 = vmatpush1.bf16.xpose.msra.mxu0 0
        %2186 = vmatprep.subr.bf16.mxu0 0
        %2187 = vmatpush1.bf16.xpose.msra.mxu0 0
        %2188 = vmatprep.subr.bf16.mxu0 0
        %2189 = vmatpush1.bf16.xpose.msra.mxu0 0
        %2190 = vmatprep.subr.bf16.mxu0 0
        %2191 = vmatpush1.bf16.xpose.msra.mxu0 0
        %2192 = vmatprep.subr.bf16.mxu0 0
        %2193 = vmatpush1.bf16.xpose.msra.mxu0 0
        %2194 = vmatprep.mubr.bf16.mxu0 0
        %2195 = vmatmul.mubr.bf16.gmra.mrb[0].mxu0 %v2157
        %v2196 = vpop.f32.mrb[0].mxu0
        %v2197 = vadd.f32 %v1055, %v2196
        %v2198 = vpop.f32.mrb[0].mxu0
        %v2199 = vpop.f32.mrb[0].mxu0
        %v2200 = vadd.f32 %v1055, %v2199
        %v2201 = vpop.f32.mrb[0].mxu0
        %2202 = vdwg.mxu0
        %v2203 = vsel %vm1105, %v2197, -inf
        %2204 = vmax.xlane.f32.xlu0 %v2203
        %v2205 = vpop.xlane.xlu0 %2204
        %v2206 = vsel %vm1105, %v2200, -inf
        %2207 = vmax.xlane.f32.xlu0 %v2206
        %v2208 = vpop.xlane.xlu0 %2207
        %v2209 = vsub.f32 %v2197, %v2205
        %v2210 = vsub.f32 %v2200, %v2208
        %v2211 = vmul.f32 %v2209, 1.442695
        %v2212 = vpow.pop %v2211
        %v2213 = vmul.f32 %v2210, 1.442695
        %v2214 = vpow.pop %v2213
        %v2215 = vsel %vm1105, %v2212, 0.0
        %2216 = vadd.xlane.f32.xlu0 %v2215
        %v2217 = vpop.xlane.xlu0 %2216
        %v2218 = vsel %vm1105, %v2214, 0.0
        %2219 = vadd.xlane.f32.xlu0 %v2218
        %v2220 = vpop.xlane.xlu0 %2219
        %v2221 = vrcp.pop %v2217
        %v2222 = vrcp.pop %v2220
        %v2223 = vmul.f32 %v2212, %v2221
        %v2224 = vmul.f32 %v2214, %v2222
        %v2225 = vpack.c.bf16 %v2224, %v2223
        %v2226 = vpack.c.bf16 %v2151, %v2148
        %v2228 = vsel %vm1105, %v2225, 0
        %2230 = vmatprep.subr.bf16.mxu0 0
        %2231 = vmatpush1.bf16.msra.mxu0 %v2226
        %2232 = vmatprep.subr.bf16.mxu0 0
        %2233 = vmatpush1.bf16.msra.mxu0 0
        %2234 = vmatprep.subr.bf16.mxu0 0
        %2235 = vmatpush1.bf16.msra.mxu0 0
        %2236 = vmatprep.subr.bf16.mxu0 0
        %2237 = vmatpush1.bf16.msra.mxu0 0
        %2238 = vmatprep.subr.bf16.mxu0 0
        %2239 = vmatpush1.bf16.msra.mxu0 0
        %2240 = vmatprep.subr.bf16.mxu0 0
        %2241 = vmatpush1.bf16.msra.mxu0 0
        %2242 = vmatprep.subr.bf16.mxu0 0
        %2243 = vmatpush1.bf16.msra.mxu0 0
        %2244 = vmatprep.subr.bf16.mxu0 0
        %2245 = vmatpush1.bf16.msra.mxu0 0
        %2246 = vmatprep.subr.bf16.mxu0 0
        %2247 = vmatpush1.bf16.msra.mxu0 0
        %2248 = vmatprep.subr.bf16.mxu0 0
        %2249 = vmatpush1.bf16.msra.mxu0 0
        %2250 = vmatprep.subr.bf16.mxu0 0
        %2251 = vmatpush1.bf16.msra.mxu0 0
        %2252 = vmatprep.subr.bf16.mxu0 0
        %2253 = vmatpush1.bf16.msra.mxu0 0
        %2254 = vmatprep.subr.bf16.mxu0 0
        %2255 = vmatpush1.bf16.msra.mxu0 0
        %2256 = vmatprep.subr.bf16.mxu0 0
        %2257 = vmatpush1.bf16.msra.mxu0 0
        %2258 = vmatprep.subr.bf16.mxu0 0
        %2259 = vmatpush1.bf16.msra.mxu0 0
        %2260 = vmatprep.subr.bf16.mxu0 0
        %2261 = vmatpush1.bf16.msra.mxu0 0
        %2262 = vmatprep.mubr.bf16.mxu0 0
        %2263 = vmatmul.mubr.bf16.gmra.mrb[0].mxu0 %v2228
        %v2264 = vpop.f32.mrb[0].mxu0
        %v2265 = vadd.f32 0.0, %v2264
        %v2266 = vpop.f32.mrb[0].mxu0
        %v2267 = vpop.f32.mrb[0].mxu0
        %v2268 = vadd.f32 0.0, %v2267
        %v2269 = vpop.f32.mrb[0].mxu0
        %2270 = vdwg.mxu0
        %v2271 = vpack.c.bf16 %v2268, %v2265
        %s2272 = scalar_lea.vmem %s10, 12
        %v2273 = vld [vmem:[%s2272] sm:$0xf]
        %v2275 = vsel %vm1057, %v2271, 0
        %v2278 = vsel %vm1497, %v2273, 0
        %2280 = vmatprep.subr.bf16.mxu0 0
        %2281 = vmatpush1.bf16.msra.mxu0 %v2278
        %2282 = vmatprep.subr.bf16.mxu0 0
        %2283 = vmatpush1.bf16.msra.mxu0 0
        %2284 = vmatprep.subr.bf16.mxu0 0
        %2285 = vmatpush1.bf16.msra.mxu0 0
        %2286 = vmatprep.subr.bf16.mxu0 0
        %2287 = vmatpush1.bf16.msra.mxu0 0
        %2288 = vmatprep.subr.bf16.mxu0 0
        %2289 = vmatpush1.bf16.msra.mxu0 0
        %2290 = vmatprep.subr.bf16.mxu0 0
        %2291 = vmatpush1.bf16.msra.mxu0 0
        %2292 = vmatprep.subr.bf16.mxu0 0
        %2293 = vmatpush1.bf16.msra.mxu0 0
        %2294 = vmatprep.subr.bf16.mxu0 0
        %2295 = vmatpush1.bf16.msra.mxu0 0
        %2296 = vmatprep.subr.bf16.mxu0 0
        %2297 = vmatpush1.bf16.msra.mxu0 0
        %2298 = vmatprep.subr.bf16.mxu0 0
        %2299 = vmatpush1.bf16.msra.mxu0 0
        %2300 = vmatprep.subr.bf16.mxu0 0
        %2301 = vmatpush1.bf16.msra.mxu0 0
        %2302 = vmatprep.subr.bf16.mxu0 0
        %2303 = vmatpush1.bf16.msra.mxu0 0
        %2304 = vmatprep.subr.bf16.mxu0 0
        %2305 = vmatpush1.bf16.msra.mxu0 0
        %2306 = vmatprep.subr.bf16.mxu0 0
        %2307 = vmatpush1.bf16.msra.mxu0 0
        %2308 = vmatprep.subr.bf16.mxu0 0
        %2309 = vmatpush1.bf16.msra.mxu0 0
        %2310 = vmatprep.subr.bf16.mxu0 0
        %2311 = vmatpush1.bf16.msra.mxu0 0
        %2312 = vmatprep.mubr.bf16.mxu0 0
        %2313 = vmatmul.mubr.bf16.gmra.mrb[0].mxu0 %v2275
        %v2314 = vpop.f32.mrb[0].mxu0
        %v2315 = vadd.f32 0.0, %v2314
        %v2316 = vpop.f32.mrb[0].mxu0
        %v2317 = vpop.f32.mrb[0].mxu0
        %v2318 = vadd.f32 0.0, %v2317
        %v2319 = vpop.f32.mrb[0].mxu0
        %2320 = vdwg.mxu0
        %v2321 = vadd.f32 %v1954, %v2315
        %v2322 = vadd.f32 %v1955, %v2318
        %v2323 = vld [vmem:[%s11] sm:$0x1]
        %v2325 = vlaneseq
        %v2326 = vshrl.u32 %v2325, 7
        %v2327 = vsub.s32 0, %v2326
        %v2328 = vrot.slane %v2323, %v2327
        %v2330 = vadd.f32 %v2321, %v2328
        %v2331 = vadd.f32 %v2322, %v2328
        %v2332 = vadd.f32 %v2330, %v850
        %v2333 = vadd.f32 %v2331, %v851
        %v2334 = vld [vmem:[%s12] sm:$0x1]
        %v2335 = vld [vmem:[%s13] sm:$0x1]
        %v2336 = vsel %vm808, %v2332, 0.0
        %2337 = vadd.xlane.f32.xlu0 %v2336
        %v2338 = vpop.xlane.xlu0 %2337
        %v2339 = vsel %vm808, %v2333, 0.0
        %2340 = vadd.xlane.f32.xlu0 %v2339
        %v2341 = vpop.xlane.xlu0 %2340
        %v2342 = vmul.f32 %v2338, %v815
        %v2343 = vmul.f32 %v2341, %v815
        %v2344 = vsub.f32 %v2332, %v2342
        %v2345 = vsub.f32 %v2333, %v2343
        %v2346 = vmul.f32 %v2344, %v2344
        %v2347 = vmul.f32 %v2345, %v2345
        %v2348 = vsel %vm808, %v2346, 0.0
        %2349 = vadd.xlane.f32.xlu0 %v2348
        %v2350 = vpop.xlane.xlu0 %2349
        %v2351 = vsel %vm808, %v2347, 0.0
        %2352 = vadd.xlane.f32.xlu0 %v2351
        %v2353 = vpop.xlane.xlu0 %2352
        %v2354 = vmul.f32 %v2350, %v815
        %v2355 = vmul.f32 %v2353, %v815
        %v2356 = vadd.f32 %v2354, 1e-12
        %v2357 = vadd.f32 %v2355, 1e-12
        %v2358 = vrsqrt.pop %v2356
        %v2359 = vrsqrt.pop %v2357
        %v2360 = vmul.f32 %v2344, %v2358
        %v2361 = vmul.f32 %v2345, %v2359
        %v2363 = vlaneseq
        %v2364 = vshrl.u32 %v2363, 7
        %v2365 = vsub.s32 0, %v2364
        %v2366 = vrot.slane %v2334, %v2365
        %v2368 = vmul.f32 %v2360, %v2366
        %v2369 = vmul.f32 %v2361, %v2366
        %v2371 = vlaneseq
        %v2372 = vshrl.u32 %v2371, 7
        %v2373 = vsub.s32 0, %v2372
        %v2374 = vrot.slane %v2335, %v2373
        %v2376 = vadd.f32 %v2368, %v2374
        %v2377 = vadd.f32 %v2369, %v2374
        %v2378 = vpack.c.bf16 %v2377, %v2376
        %v2379 = vld [vmem:[%s14] sm:$0xf]
        %v2380 = vld [vmem:[%s14 + $0x4] sm:$0xf]
        %v2381 = vld [vmem:[%s14 + $0x8] sm:$0xf]
        %v2382 = vld [vmem:[%s14 + $0xc] sm:$0xf]
        %v2383 = vld [vmem:[%s15] sm:$0x1]
        %v2385 = vlaneseq
        %v2386 = vshrl.u32 %v2385, 7
        %v2387 = vsub.s32 0, %v2386
        %v2388 = vrot.slane %v2383, %v2387
        %v2394 = vunpack.c.l.b16 %v2379
        %v2395 = vunpack.c.l.b16 %v2380
        %v2396 = vunpack.c.l.b16 %v2381
        %v2397 = vunpack.c.l.b16 %v2382
        %v2398 = vpack.c.b16 %v2395, %v2394
        %v2399 = vpack.c.b16 %v2397, %v2396
        %v2403 = vsel %vm808, %v2378, 0
        %2405 = vmatprep.subr.bf16.mxu0 0
        %2406 = vmatpush1.bf16.msra.mxu0 %v2398
        %2407 = vmatprep.subr.bf16.mxu0 0
        %2408 = vmatpush1.bf16.msra.mxu0 %v2399
        %2409 = vmatprep.subr.bf16.mxu0 0
        %2410 = vmatpush1.bf16.msra.mxu0 0
        %2411 = vmatprep.subr.bf16.mxu0 0
        %2412 = vmatpush1.bf16.msra.mxu0 0
        %2413 = vmatprep.subr.bf16.mxu0 0
        %2414 = vmatpush1.bf16.msra.mxu0 0
        %2415 = vmatprep.subr.bf16.mxu0 0
        %2416 = vmatpush1.bf16.msra.mxu0 0
        %2417 = vmatprep.subr.bf16.mxu0 0
        %2418 = vmatpush1.bf16.msra.mxu0 0
        %2419 = vmatprep.subr.bf16.mxu0 0
        %2420 = vmatpush1.bf16.msra.mxu0 0
        %2421 = vmatprep.subr.bf16.mxu0 0
        %2422 = vmatpush1.bf16.msra.mxu0 0
        %2423 = vmatprep.subr.bf16.mxu0 0
        %2424 = vmatpush1.bf16.msra.mxu0 0
        %2425 = vmatprep.subr.bf16.mxu0 0
        %2426 = vmatpush1.bf16.msra.mxu0 0
        %2427 = vmatprep.subr.bf16.mxu0 0
        %2428 = vmatpush1.bf16.msra.mxu0 0
        %2429 = vmatprep.subr.bf16.mxu0 0
        %2430 = vmatpush1.bf16.msra.mxu0 0
        %2431 = vmatprep.subr.bf16.mxu0 0
        %2432 = vmatpush1.bf16.msra.mxu0 0
        %2433 = vmatprep.subr.bf16.mxu0 0
        %2434 = vmatpush1.bf16.msra.mxu0 0
        %2435 = vmatprep.subr.bf16.mxu0 0
        %2436 = vmatpush1.bf16.msra.mxu0 0
        %2437 = vmatprep.mubr.bf16.mxu0 0
        %2438 = vmatmul.mubr.bf16.gmra.mrb[0].mxu0 %v2403
        %v2439 = vpop.f32.mrb[0].mxu0
        %v2440 = vadd.f32 %v2388, %v2439
        %v2441 = vpop.f32.mrb[0].mxu0
        %v2442 = vpop.f32.mrb[0].mxu0
        %v2443 = vadd.f32 %v2388, %v2442
        %v2444 = vpop.f32.mrb[0].mxu0
        %2445 = vdwg.mxu0
        %v2446 = vmul.f32 %v2440, 0.5
        %v2447 = vmul.f32 %v2443, 0.5
        %v2448 = vmul.f32 %v2440, 0.044715
        %v2449 = vmul.f32 %v2443, 0.044715
        %v2450 = vmul.f32 %v2448, %v2440
        %v2451 = vmul.f32 %v2449, %v2443
        %v2452 = vmul.f32 %v2450, %v2440
        %v2453 = vmul.f32 %v2451, %v2443
        %v2454 = vadd.f32 %v2440, %v2452
        %v2455 = vadd.f32 %v2443, %v2453
        %v2456 = vmul.f32 %v2454, 0.7978846
        %v2457 = vmul.f32 %v2455, 0.7978846
        %v2458 = vtanh.pop %v2456
        %v2459 = vtanh.pop %v2457
        %v2460 = vadd.f32 %v2458, 1.0
        %v2461 = vadd.f32 %v2459, 1.0
        %v2462 = vmul.f32 %v2446, %v2460
        %v2463 = vmul.f32 %v2447, %v2461
        %v2464 = vpack.c.bf16 %v2463, %v2462
        %v2465 = vld [vmem:[%s16] sm:$0xf]
        %v2466 = vld [vmem:[%s16 + $0x4] sm:$0xf]
        %v2467 = vld [vmem:[%s16 + $0x8] sm:$0xf]
        %v2468 = vld [vmem:[%s16 + $0xc] sm:$0xf]
        %v2469 = vld [vmem:[%s16 + $0x10] sm:$0xf]
        %v2470 = vld [vmem:[%s16 + $0x14] sm:$0xf]
        %v2471 = vld [vmem:[%s16 + $0x18] sm:$0xf]
        %v2472 = vld [vmem:[%s16 + $0x1c] sm:$0xf]
        %v2473 = vld [vmem:[%s16 + $0x20] sm:$0xf]
        %v2474 = vld [vmem:[%s16 + $0x24] sm:$0xf]
        %v2475 = vld [vmem:[%s16 + $0x28] sm:$0xf]
        %v2476 = vld [vmem:[%s16 + $0x2c] sm:$0xf]
        %v2477 = vld [vmem:[%s16 + $0x30] sm:$0xf]
        %v2478 = vld [vmem:[%s16 + $0x34] sm:$0xf]
        %v2479 = vld [vmem:[%s16 + $0x38] sm:$0xf]
        %v2480 = vld [vmem:[%s16 + $0x3c] sm:$0xf]
        %v2481 = vld [vmem:[%s17] sm:$0x1]
        %v2483 = vlaneseq
        %v2484 = vshrl.u32 %v2483, 7
        %v2485 = vsub.s32 0, %v2484
        %v2486 = vrot.slane %v2481, %v2485
        %v2504 = vunpack.c.l.b16 %v2465
        %v2505 = vunpack.c.l.b16 %v2466
        %v2506 = vunpack.c.l.b16 %v2467
        %v2507 = vunpack.c.l.b16 %v2468
        %v2508 = vunpack.c.l.b16 %v2469
        %v2509 = vunpack.c.l.b16 %v2470
        %v2510 = vunpack.c.l.b16 %v2471
        %v2511 = vunpack.c.l.b16 %v2472
        %v2512 = vunpack.c.l.b16 %v2473
        %v2513 = vunpack.c.l.b16 %v2474
        %v2514 = vunpack.c.l.b16 %v2475
        %v2515 = vunpack.c.l.b16 %v2476
        %v2516 = vunpack.c.l.b16 %v2477
        %v2517 = vunpack.c.l.b16 %v2478
        %v2518 = vunpack.c.l.b16 %v2479
        %v2519 = vunpack.c.l.b16 %v2480
        %v2520 = vpack.c.b16 %v2505, %v2504
        %v2521 = vpack.c.b16 %v2507, %v2506
        %v2522 = vpack.c.b16 %v2509, %v2508
        %v2523 = vpack.c.b16 %v2511, %v2510
        %v2524 = vpack.c.b16 %v2513, %v2512
        %v2525 = vpack.c.b16 %v2515, %v2514
        %v2526 = vpack.c.b16 %v2517, %v2516
        %v2527 = vpack.c.b16 %v2519, %v2518
        %2536 = vmatprep.subr.bf16.mxu0 0
        %2537 = vmatpush1.bf16.msra.mxu0 %v2520
        %2538 = vmatprep.subr.bf16.mxu0 0
        %2539 = vmatpush1.bf16.msra.mxu0 %v2521
        %2540 = vmatprep.subr.bf16.mxu0 0
        %2541 = vmatpush1.bf16.msra.mxu0 %v2522
        %2542 = vmatprep.subr.bf16.mxu0 0
        %2543 = vmatpush1.bf16.msra.mxu0 %v2523
        %2544 = vmatprep.subr.bf16.mxu0 0
        %2545 = vmatpush1.bf16.msra.mxu0 %v2524
        %2546 = vmatprep.subr.bf16.mxu0 0
        %2547 = vmatpush1.bf16.msra.mxu0 %v2525
        %2548 = vmatprep.subr.bf16.mxu0 0
        %2549 = vmatpush1.bf16.msra.mxu0 %v2526
        %2550 = vmatprep.subr.bf16.mxu0 0
        %2551 = vmatpush1.bf16.msra.mxu0 %v2527
        %2552 = vmatprep.subr.bf16.mxu0 0
        %2553 = vmatpush1.bf16.msra.mxu0 0
        %2554 = vmatprep.subr.bf16.mxu0 0
        %2555 = vmatpush1.bf16.msra.mxu0 0
        %2556 = vmatprep.subr.bf16.mxu0 0
        %2557 = vmatpush1.bf16.msra.mxu0 0
        %2558 = vmatprep.subr.bf16.mxu0 0
        %2559 = vmatpush1.bf16.msra.mxu0 0
        %2560 = vmatprep.subr.bf16.mxu0 0
        %2561 = vmatpush1.bf16.msra.mxu0 0
        %2562 = vmatprep.subr.bf16.mxu0 0
        %2563 = vmatpush1.bf16.msra.mxu0 0
        %2564 = vmatprep.subr.bf16.mxu0 0
        %2565 = vmatpush1.bf16.msra.mxu0 0
        %2566 = vmatprep.subr.bf16.mxu0 0
        %2567 = vmatpush1.bf16.msra.mxu0 0
        %2568 = vmatprep.mubr.bf16.mxu0 0
        %2569 = vmatmul.mubr.bf16.gmra.mrb[0].mxu0 %v2464
        %v2570 = vpop.f32.mrb[0].mxu0
        %v2571 = vadd.f32 %v2486, %v2570
        %v2572 = vpop.f32.mrb[0].mxu0
        %v2573 = vpop.f32.mrb[0].mxu0
        %v2574 = vadd.f32 %v2486, %v2573
        %v2575 = vpop.f32.mrb[0].mxu0
        %2576 = vdwg.mxu0
        %v2577 = vadd.f32 %v2571, %v2376
        %v2578 = vadd.f32 %v2574, %v2377
        %v2579 = vld [vmem:[%s18] sm:$0x1]
        %v2580 = vld [vmem:[%s19] sm:$0x1]
        %v2581 = vsel %vm808, %v2577, 0.0
        %2582 = vadd.xlane.f32.xlu0 %v2581
        %v2583 = vpop.xlane.xlu0 %2582
        %v2584 = vsel %vm808, %v2578, 0.0
        %2585 = vadd.xlane.f32.xlu0 %v2584
        %v2586 = vpop.xlane.xlu0 %2585
        %v2587 = vmul.f32 %v2583, %v815
        %v2588 = vmul.f32 %v2586, %v815
        %v2589 = vsub.f32 %v2577, %v2587
        %v2590 = vsub.f32 %v2578, %v2588
        %v2591 = vmul.f32 %v2589, %v2589
        %v2592 = vmul.f32 %v2590, %v2590
        %v2593 = vsel %vm808, %v2591, 0.0
        %2594 = vadd.xlane.f32.xlu0 %v2593
        %v2595 = vpop.xlane.xlu0 %2594
        %v2596 = vsel %vm808, %v2592, 0.0
        %2597 = vadd.xlane.f32.xlu0 %v2596
        %v2598 = vpop.xlane.xlu0 %2597
        %v2599 = vmul.f32 %v2595, %v815
        %v2600 = vmul.f32 %v2598, %v815
        %v2601 = vadd.f32 %v2599, 1e-12
        %v2602 = vadd.f32 %v2600, 1e-12
        %v2603 = vrsqrt.pop %v2601
        %v2604 = vrsqrt.pop %v2602
        %v2605 = vmul.f32 %v2589, %v2603
        %v2606 = vmul.f32 %v2590, %v2604
        %v2608 = vlaneseq
        %v2609 = vshrl.u32 %v2608, 7
        %v2610 = vsub.s32 0, %v2609
        %v2611 = vrot.slane %v2579, %v2610
        %v2613 = vmul.f32 %v2605, %v2611
        %v2614 = vmul.f32 %v2606, %v2611
        %v2616 = vlaneseq
        %v2617 = vshrl.u32 %v2616, 7
        %v2618 = vsub.s32 0, %v2617
        %v2619 = vrot.slane %v2580, %v2618
        %v2621 = vadd.f32 %v2613, %v2619
        %v2622 = vadd.f32 %v2614, %v2619
        %v2623 = vpack.c.bf16 %v2622, %v2621
        %s2624 = scalar_lea.vmem %s4, 64
        %v2625 = vld [vmem:[%s2624] sm:$0xf]
        %v2626 = vld [vmem:[%s2624 + $0x4] sm:$0xf]
        %v2627 = vld [vmem:[%s2624 + $0x8] sm:$0xf]
        %v2628 = vld [vmem:[%s2624 + $0xc] sm:$0xf]
        %s2629 = scalar_lea.vmem %s5, 4
        %v2630 = vld [vmem:[%s2629] sm:$0x1]
        %v2632 = vlaneseq
        %v2633 = vshrl.u32 %v2632, 7
        %v2634 = vsub.s32 0, %v2633
        %v2635 = vrot.slane %v2630, %v2634
        %v2641 = vunpack.c.l.b16 %v2625
        %v2642 = vunpack.c.l.b16 %v2626
        %v2643 = vunpack.c.l.b16 %v2627
        %v2644 = vunpack.c.l.b16 %v2628
        %v2645 = vpack.c.b16 %v2642, %v2641
        %v2646 = vpack.c.b16 %v2644, %v2643
        %v2650 = vsel %vm808, %v2623, 0
        %2652 = vmatprep.subr.bf16.mxu0 0
        %2653 = vmatpush1.bf16.msra.mxu0 %v2645
        %2654 = vmatprep.subr.bf16.mxu0 0
        %2655 = vmatpush1.bf16.msra.mxu0 %v2646
        %2656 = vmatprep.subr.bf16.mxu0 0
        %2657 = vmatpush1.bf16.msra.mxu0 0
        %2658 = vmatprep.subr.bf16.mxu0 0
        %2659 = vmatpush1.bf16.msra.mxu0 0
        %2660 = vmatprep.subr.bf16.mxu0 0
        %2661 = vmatpush1.bf16.msra.mxu0 0
        %2662 = vmatprep.subr.bf16.mxu0 0
        %2663 = vmatpush1.bf16.msra.mxu0 0
        %2664 = vmatprep.subr.bf16.mxu0 0
        %2665 = vmatpush1.bf16.msra.mxu0 0
        %2666 = vmatprep.subr.bf16.mxu0 0
        %2667 = vmatpush1.bf16.msra.mxu0 0
        %2668 = vmatprep.subr.bf16.mxu0 0
        %2669 = vmatpush1.bf16.msra.mxu0 0
        %2670 = vmatprep.subr.bf16.mxu0 0
        %2671 = vmatpush1.bf16.msra.mxu0 0
        %2672 = vmatprep.subr.bf16.mxu0 0
        %2673 = vmatpush1.bf16.msra.mxu0 0
        %2674 = vmatprep.subr.bf16.mxu0 0
        %2675 = vmatpush1.bf16.msra.mxu0 0
        %2676 = vmatprep.subr.bf16.mxu0 0
        %2677 = vmatpush1.bf16.msra.mxu0 0
        %2678 = vmatprep.subr.bf16.mxu0 0
        %2679 = vmatpush1.bf16.msra.mxu0 0
        %2680 = vmatprep.subr.bf16.mxu0 0
        %2681 = vmatpush1.bf16.msra.mxu0 0
        %2682 = vmatprep.subr.bf16.mxu0 0
        %2683 = vmatpush1.bf16.msra.mxu0 0
        %2684 = vmatprep.mubr.bf16.mxu0 0
        %2685 = vmatmul.mubr.bf16.gmra.mrb[0].mxu0 %v2650
        %v2686 = vpop.f32.mrb[0].mxu0
        %v2687 = vadd.f32 %v2635, %v2686
        %v2688 = vpop.f32.mrb[0].mxu0
        %v2689 = vpop.f32.mrb[0].mxu0
        %v2690 = vadd.f32 %v2635, %v2689
        %v2691 = vpop.f32.mrb[0].mxu0
        %2692 = vdwg.mxu0
        %s2693 = scalar_lea.vmem %s6, 64
        %v2694 = vld [vmem:[%s2693] sm:$0xf]
        %v2695 = vld [vmem:[%s2693 + $0x4] sm:$0xf]
        %v2696 = vld [vmem:[%s2693 + $0x8] sm:$0xf]
        %v2697 = vld [vmem:[%s2693 + $0xc] sm:$0xf]
        %s2698 = scalar_lea.vmem %s7, 4
        %v2699 = vld [vmem:[%s2698] sm:$0x1]
        %v2701 = vlaneseq
        %v2702 = vshrl.u32 %v2701, 7
        %v2703 = vsub.s32 0, %v2702
        %v2704 = vrot.slane %v2699, %v2703
        %v2710 = vunpack.c.l.b16 %v2694
        %v2711 = vunpack.c.l.b16 %v2695
        %v2712 = vunpack.c.l.b16 %v2696
        %v2713 = vunpack.c.l.b16 %v2697
        %v2714 = vpack.c.b16 %v2711, %v2710
        %v2715 = vpack.c.b16 %v2713, %v2712
        %2718 = vmatprep.subr.bf16.mxu0 0
        %2719 = vmatpush1.bf16.msra.mxu0 %v2714
        %2720 = vmatprep.subr.bf16.mxu0 0
        %2721 = vmatpush1.bf16.msra.mxu0 %v2715
        %2722 = vmatprep.subr.bf16.mxu0 0
        %2723 = vmatpush1.bf16.msra.mxu0 0
        %2724 = vmatprep.subr.bf16.mxu0 0
        %2725 = vmatpush1.bf16.msra.mxu0 0
        %2726 = vmatprep.subr.bf16.mxu0 0
        %2727 = vmatpush1.bf16.msra.mxu0 0
        %2728 = vmatprep.subr.bf16.mxu0 0
        %2729 = vmatpush1.bf16.msra.mxu0 0
        %2730 = vmatprep.subr.bf16.mxu0 0
        %2731 = vmatpush1.bf16.msra.mxu0 0
        %2732 = vmatprep.subr.bf16.mxu0 0
        %2733 = vmatpush1.bf16.msra.mxu0 0
        %2734 = vmatprep.subr.bf16.mxu0 0
        %2735 = vmatpush1.bf16.msra.mxu0 0
        %2736 = vmatprep.subr.bf16.mxu0 0
        %2737 = vmatpush1.bf16.msra.mxu0 0
        %2738 = vmatprep.subr.bf16.mxu0 0
        %2739 = vmatpush1.bf16.msra.mxu0 0
        %2740 = vmatprep.subr.bf16.mxu0 0
        %2741 = vmatpush1.bf16.msra.mxu0 0
        %2742 = vmatprep.subr.bf16.mxu0 0
        %2743 = vmatpush1.bf16.msra.mxu0 0
        %2744 = vmatprep.subr.bf16.mxu0 0
        %2745 = vmatpush1.bf16.msra.mxu0 0
        %2746 = vmatprep.subr.bf16.mxu0 0
        %2747 = vmatpush1.bf16.msra.mxu0 0
        %2748 = vmatprep.subr.bf16.mxu0 0
        %2749 = vmatpush1.bf16.msra.mxu0 0
        %2750 = vmatprep.mubr.bf16.mxu0 0
        %2751 = vmatmul.mubr.bf16.gmra.mrb[0].mxu0 %v2650
        %v2752 = vpop.f32.mrb[0].mxu0
        %v2753 = vadd.f32 %v2704, %v2752
        %v2754 = vpop.f32.mrb[0].mxu0
        %v2755 = vpop.f32.mrb[0].mxu0
        %v2756 = vadd.f32 %v2704, %v2755
        %v2757 = vpop.f32.mrb[0].mxu0
        %2758 = vdwg.mxu0
        %s2759 = scalar_lea.vmem %s8, 64
        %v2760 = vld [vmem:[%s2759] sm:$0xf]
        %v2761 = vld [vmem:[%s2759 + $0x4] sm:$0xf]
        %v2762 = vld [vmem:[%s2759 + $0x8] sm:$0xf]
        %v2763 = vld [vmem:[%s2759 + $0xc] sm:$0xf]
        %s2764 = scalar_lea.vmem %s9, 4
        %v2765 = vld [vmem:[%s2764] sm:$0x1]
        %v2767 = vlaneseq
        %v2768 = vshrl.u32 %v2767, 7
        %v2769 = vsub.s32 0, %v2768
        %v2770 = vrot.slane %v2765, %v2769
        %v2776 = vunpack.c.l.b16 %v2760
        %v2777 = vunpack.c.l.b16 %v2761
        %v2778 = vunpack.c.l.b16 %v2762
        %v2779 = vunpack.c.l.b16 %v2763
        %v2780 = vpack.c.b16 %v2777, %v2776
        %v2781 = vpack.c.b16 %v2779, %v2778
        %2784 = vmatprep.subr.bf16.mxu0 0
        %2785 = vmatpush1.bf16.msra.mxu0 %v2780
        %2786 = vmatprep.subr.bf16.mxu0 0
        %2787 = vmatpush1.bf16.msra.mxu0 %v2781
        %2788 = vmatprep.subr.bf16.mxu0 0
        %2789 = vmatpush1.bf16.msra.mxu0 0
        %2790 = vmatprep.subr.bf16.mxu0 0
        %2791 = vmatpush1.bf16.msra.mxu0 0
        %2792 = vmatprep.subr.bf16.mxu0 0
        %2793 = vmatpush1.bf16.msra.mxu0 0
        %2794 = vmatprep.subr.bf16.mxu0 0
        %2795 = vmatpush1.bf16.msra.mxu0 0
        %2796 = vmatprep.subr.bf16.mxu0 0
        %2797 = vmatpush1.bf16.msra.mxu0 0
        %2798 = vmatprep.subr.bf16.mxu0 0
        %2799 = vmatpush1.bf16.msra.mxu0 0
        %2800 = vmatprep.subr.bf16.mxu0 0
        %2801 = vmatpush1.bf16.msra.mxu0 0
        %2802 = vmatprep.subr.bf16.mxu0 0
        %2803 = vmatpush1.bf16.msra.mxu0 0
        %2804 = vmatprep.subr.bf16.mxu0 0
        %2805 = vmatpush1.bf16.msra.mxu0 0
        %2806 = vmatprep.subr.bf16.mxu0 0
        %2807 = vmatpush1.bf16.msra.mxu0 0
        %2808 = vmatprep.subr.bf16.mxu0 0
        %2809 = vmatpush1.bf16.msra.mxu0 0
        %2810 = vmatprep.subr.bf16.mxu0 0
        %2811 = vmatpush1.bf16.msra.mxu0 0
        %2812 = vmatprep.subr.bf16.mxu0 0
        %2813 = vmatpush1.bf16.msra.mxu0 0
        %2814 = vmatprep.subr.bf16.mxu0 0
        %2815 = vmatpush1.bf16.msra.mxu0 0
        %2816 = vmatprep.mubr.bf16.mxu0 0
        %2817 = vmatmul.mubr.bf16.gmra.mrb[0].mxu0 %v2650
        %v2818 = vpop.f32.mrb[0].mxu0
        %v2819 = vadd.f32 %v2770, %v2818
        %v2820 = vpop.f32.mrb[0].mxu0
        %v2821 = vpop.f32.mrb[0].mxu0
        %v2822 = vadd.f32 %v2770, %v2821
        %v2823 = vpop.f32.mrb[0].mxu0
        %2824 = vdwg.mxu0
        %v2825 = vpack.c.bf16 %v2690, %v2687
        %v2826 = vpack.c.bf16 %v2756, %v2753
        %v2828 = vsel %vm1057, %v2825, 0
        %v2831 = vsel %vm1057, %v2826, 0
        %2833 = vmatprep.subr.bf16.mxu0 0
        %2834 = vmatpush1.bf16.xpose.msra.mxu0 %v2831
        %2835 = vmatprep.subr.bf16.mxu0 0
        %2836 = vmatpush1.bf16.xpose.msra.mxu0 0
        %2837 = vmatprep.subr.bf16.mxu0 0
        %2838 = vmatpush1.bf16.xpose.msra.mxu0 0
        %2839 = vmatprep.subr.bf16.mxu0 0
        %2840 = vmatpush1.bf16.xpose.msra.mxu0 0
        %2841 = vmatprep.subr.bf16.mxu0 0
        %2842 = vmatpush1.bf16.xpose.msra.mxu0 0
        %2843 = vmatprep.subr.bf16.mxu0 0
        %2844 = vmatpush1.bf16.xpose.msra.mxu0 0
        %2845 = vmatprep.subr.bf16.mxu0 0
        %2846 = vmatpush1.bf16.xpose.msra.mxu0 0
        %2847 = vmatprep.subr.bf16.mxu0 0
        %2848 = vmatpush1.bf16.xpose.msra.mxu0 0
        %2849 = vmatprep.subr.bf16.mxu0 0
        %2850 = vmatpush1.bf16.xpose.msra.mxu0 0
        %2851 = vmatprep.subr.bf16.mxu0 0
        %2852 = vmatpush1.bf16.xpose.msra.mxu0 0
        %2853 = vmatprep.subr.bf16.mxu0 0
        %2854 = vmatpush1.bf16.xpose.msra.mxu0 0
        %2855 = vmatprep.subr.bf16.mxu0 0
        %2856 = vmatpush1.bf16.xpose.msra.mxu0 0
        %2857 = vmatprep.subr.bf16.mxu0 0
        %2858 = vmatpush1.bf16.xpose.msra.mxu0 0
        %2859 = vmatprep.subr.bf16.mxu0 0
        %2860 = vmatpush1.bf16.xpose.msra.mxu0 0
        %2861 = vmatprep.subr.bf16.mxu0 0
        %2862 = vmatpush1.bf16.xpose.msra.mxu0 0
        %2863 = vmatprep.subr.bf16.mxu0 0
        %2864 = vmatpush1.bf16.xpose.msra.mxu0 0
        %2865 = vmatprep.mubr.bf16.mxu0 0
        %2866 = vmatmul.mubr.bf16.gmra.mrb[0].mxu0 %v2828
        %v2867 = vpop.f32.mrb[0].mxu0
        %v2868 = vadd.f32 %v1055, %v2867
        %v2869 = vpop.f32.mrb[0].mxu0
        %v2870 = vpop.f32.mrb[0].mxu0
        %v2871 = vadd.f32 %v1055, %v2870
        %v2872 = vpop.f32.mrb[0].mxu0
        %2873 = vdwg.mxu0
        %v2874 = vsel %vm1105, %v2868, -inf
        %2875 = vmax.xlane.f32.xlu0 %v2874
        %v2876 = vpop.xlane.xlu0 %2875
        %v2877 = vsel %vm1105, %v2871, -inf
        %2878 = vmax.xlane.f32.xlu0 %v2877
        %v2879 = vpop.xlane.xlu0 %2878
        %v2880 = vsub.f32 %v2868, %v2876
        %v2881 = vsub.f32 %v2871, %v2879
        %v2882 = vmul.f32 %v2880, 1.442695
        %v2883 = vpow.pop %v2882
        %v2884 = vmul.f32 %v2881, 1.442695
        %v2885 = vpow.pop %v2884
        %v2886 = vsel %vm1105, %v2883, 0.0
        %2887 = vadd.xlane.f32.xlu0 %v2886
        %v2888 = vpop.xlane.xlu0 %2887
        %v2889 = vsel %vm1105, %v2885, 0.0
        %2890 = vadd.xlane.f32.xlu0 %v2889
        %v2891 = vpop.xlane.xlu0 %2890
        %v2892 = vrcp.pop %v2888
        %v2893 = vrcp.pop %v2891
        %v2894 = vmul.f32 %v2883, %v2892
        %v2895 = vmul.f32 %v2885, %v2893
        %v2896 = vpack.c.bf16 %v2895, %v2894
        %v2897 = vpack.c.bf16 %v2822, %v2819
        %v2899 = vsel %vm1105, %v2896, 0
        %2901 = vmatprep.subr.bf16.mxu0 0
        %2902 = vmatpush1.bf16.msra.mxu0 %v2897
        %2903 = vmatprep.subr.bf16.mxu0 0
        %2904 = vmatpush1.bf16.msra.mxu0 0
        %2905 = vmatprep.subr.bf16.mxu0 0
        %2906 = vmatpush1.bf16.msra.mxu0 0
        %2907 = vmatprep.subr.bf16.mxu0 0
        %2908 = vmatpush1.bf16.msra.mxu0 0
        %2909 = vmatprep.subr.bf16.mxu0 0
        %2910 = vmatpush1.bf16.msra.mxu0 0
        %2911 = vmatprep.subr.bf16.mxu0 0
        %2912 = vmatpush1.bf16.msra.mxu0 0
        %2913 = vmatprep.subr.bf16.mxu0 0
        %2914 = vmatpush1.bf16.msra.mxu0 0
        %2915 = vmatprep.subr.bf16.mxu0 0
        %2916 = vmatpush1.bf16.msra.mxu0 0
        %2917 = vmatprep.subr.bf16.mxu0 0
        %2918 = vmatpush1.bf16.msra.mxu0 0
        %2919 = vmatprep.subr.bf16.mxu0 0
        %2920 = vmatpush1.bf16.msra.mxu0 0
        %2921 = vmatprep.subr.bf16.mxu0 0
        %2922 = vmatpush1.bf16.msra.mxu0 0
        %2923 = vmatprep.subr.bf16.mxu0 0
        %2924 = vmatpush1.bf16.msra.mxu0 0
        %2925 = vmatprep.subr.bf16.mxu0 0
        %2926 = vmatpush1.bf16.msra.mxu0 0
        %2927 = vmatprep.subr.bf16.mxu0 0
        %2928 = vmatpush1.bf16.msra.mxu0 0
        %2929 = vmatprep.subr.bf16.mxu0 0
        %2930 = vmatpush1.bf16.msra.mxu0 0
        %2931 = vmatprep.subr.bf16.mxu0 0
        %2932 = vmatpush1.bf16.msra.mxu0 0
        %2933 = vmatprep.mubr.bf16.mxu0 0
        %2934 = vmatmul.mubr.bf16.gmra.mrb[0].mxu0 %v2899
        %v2935 = vpop.f32.mrb[0].mxu0
        %v2936 = vadd.f32 0.0, %v2935
        %v2937 = vpop.f32.mrb[0].mxu0
        %v2938 = vpop.f32.mrb[0].mxu0
        %v2939 = vadd.f32 0.0, %v2938
        %v2940 = vpop.f32.mrb[0].mxu0
        %2941 = vdwg.mxu0
        %v2942 = vpack.c.bf16 %v2939, %v2936
        %s2943 = scalar_lea.vmem %s10, 16
        %v2944 = vld [vmem:[%s2943] sm:$0xf]
        %s2945 = scalar_lea.vmem %s4, 80
        %v2946 = vld [vmem:[%s2945] sm:$0xf]
        %v2947 = vld [vmem:[%s2945 + $0x4] sm:$0xf]
        %v2948 = vld [vmem:[%s2945 + $0x8] sm:$0xf]
        %v2949 = vld [vmem:[%s2945 + $0xc] sm:$0xf]
        %s2950 = scalar_lea.vmem %s5, 5
        %v2951 = vld [vmem:[%s2950] sm:$0x1]
        %v2953 = vlaneseq
        %v2954 = vshrl.u32 %v2953, 7
        %v2955 = vsub.s32 0, %v2954
        %v2956 = vrot.slane %v2951, %v2955
        %v2962 = vunpack.c.l.b16 %v2946
        %v2963 = vunpack.c.l.b16 %v2947
        %v2964 = vunpack.c.l.b16 %v2948
        %v2965 = vunpack.c.l.b16 %v2949
        %v2966 = vpack.c.b16 %v2963, %v2962
        %v2967 = vpack.c.b16 %v2965, %v2964
        %2970 = vmatprep.subr.bf16.mxu0 0
        %2971 = vmatpush1.bf16.msra.mxu0 %v2966
        %2972 = vmatprep.subr.bf16.mxu0 0
        %2973 = vmatpush1.bf16.msra.mxu0 %v2967
        %2974 = vmatprep.subr.bf16.mxu0 0
        %2975 = vmatpush1.bf16.msra.mxu0 0
        %2976 = vmatprep.subr.bf16.mxu0 0
        %2977 = vmatpush1.bf16.msra.mxu0 0
        %2978 = vmatprep.subr.bf16.mxu0 0
        %2979 = vmatpush1.bf16.msra.mxu0 0
        %2980 = vmatprep.subr.bf16.mxu0 0
        %2981 = vmatpush1.bf16.msra.mxu0 0
        %2982 = vmatprep.subr.bf16.mxu0 0
        %2983 = vmatpush1.bf16.msra.mxu0 0
        %2984 = vmatprep.subr.bf16.mxu0 0
        %2985 = vmatpush1.bf16.msra.mxu0 0
        %2986 = vmatprep.subr.bf16.mxu0 0
        %2987 = vmatpush1.bf16.msra.mxu0 0
        %2988 = vmatprep.subr.bf16.mxu0 0
        %2989 = vmatpush1.bf16.msra.mxu0 0
        %2990 = vmatprep.subr.bf16.mxu0 0
        %2991 = vmatpush1.bf16.msra.mxu0 0
        %2992 = vmatprep.subr.bf16.mxu0 0
        %2993 = vmatpush1.bf16.msra.mxu0 0
        %2994 = vmatprep.subr.bf16.mxu0 0
        %2995 = vmatpush1.bf16.msra.mxu0 0
        %2996 = vmatprep.subr.bf16.mxu0 0
        %2997 = vmatpush1.bf16.msra.mxu0 0
        %2998 = vmatprep.subr.bf16.mxu0 0
        %2999 = vmatpush1.bf16.msra.mxu0 0
        %3000 = vmatprep.subr.bf16.mxu0 0
        %3001 = vmatpush1.bf16.msra.mxu0 0
        %3002 = vmatprep.mubr.bf16.mxu0 0
        %3003 = vmatmul.mubr.bf16.gmra.mrb[0].mxu0 %v2650
        %v3004 = vpop.f32.mrb[0].mxu0
        %v3005 = vadd.f32 %v2956, %v3004
        %v3006 = vpop.f32.mrb[0].mxu0
        %v3007 = vpop.f32.mrb[0].mxu0
        %v3008 = vadd.f32 %v2956, %v3007
        %v3009 = vpop.f32.mrb[0].mxu0
        %3010 = vdwg.mxu0
        %s3011 = scalar_lea.vmem %s6, 80
        %v3012 = vld [vmem:[%s3011] sm:$0xf]
        %v3013 = vld [vmem:[%s3011 + $0x4] sm:$0xf]
        %v3014 = vld [vmem:[%s3011 + $0x8] sm:$0xf]
        %v3015 = vld [vmem:[%s3011 + $0xc] sm:$0xf]
        %s3016 = scalar_lea.vmem %s7, 5
        %v3017 = vld [vmem:[%s3016] sm:$0x1]
        %v3019 = vlaneseq
        %v3020 = vshrl.u32 %v3019, 7
        %v3021 = vsub.s32 0, %v3020
        %v3022 = vrot.slane %v3017, %v3021
        %v3028 = vunpack.c.l.b16 %v3012
        %v3029 = vunpack.c.l.b16 %v3013
        %v3030 = vunpack.c.l.b16 %v3014
        %v3031 = vunpack.c.l.b16 %v3015
        %v3032 = vpack.c.b16 %v3029, %v3028
        %v3033 = vpack.c.b16 %v3031, %v3030
        %3036 = vmatprep.subr.bf16.mxu0 0
        %3037 = vmatpush1.bf16.msra.mxu0 %v3032
        %3038 = vmatprep.subr.bf16.mxu0 0
        %3039 = vmatpush1.bf16.msra.mxu0 %v3033
        %3040 = vmatprep.subr.bf16.mxu0 0
        %3041 = vmatpush1.bf16.msra.mxu0 0
        %3042 = vmatprep.subr.bf16.mxu0 0
        %3043 = vmatpush1.bf16.msra.mxu0 0
        %3044 = vmatprep.subr.bf16.mxu0 0
        %3045 = vmatpush1.bf16.msra.mxu0 0
        %3046 = vmatprep.subr.bf16.mxu0 0
        %3047 = vmatpush1.bf16.msra.mxu0 0
        %3048 = vmatprep.subr.bf16.mxu0 0
        %3049 = vmatpush1.bf16.msra.mxu0 0
        %3050 = vmatprep.subr.bf16.mxu0 0
        %3051 = vmatpush1.bf16.msra.mxu0 0
        %3052 = vmatprep.subr.bf16.mxu0 0
        %3053 = vmatpush1.bf16.msra.mxu0 0
        %3054 = vmatprep.subr.bf16.mxu0 0
        %3055 = vmatpush1.bf16.msra.mxu0 0
        %3056 = vmatprep.subr.bf16.mxu0 0
        %3057 = vmatpush1.bf16.msra.mxu0 0
        %3058 = vmatprep.subr.bf16.mxu0 0
        %3059 = vmatpush1.bf16.msra.mxu0 0
        %3060 = vmatprep.subr.bf16.mxu0 0
        %3061 = vmatpush1.bf16.msra.mxu0 0
        %3062 = vmatprep.subr.bf16.mxu0 0
        %3063 = vmatpush1.bf16.msra.mxu0 0
        %3064 = vmatprep.subr.bf16.mxu0 0
        %3065 = vmatpush1.bf16.msra.mxu0 0
        %3066 = vmatprep.subr.bf16.mxu0 0
        %3067 = vmatpush1.bf16.msra.mxu0 0
        %3068 = vmatprep.mubr.bf16.mxu0 0
        %3069 = vmatmul.mubr.bf16.gmra.mrb[0].mxu0 %v2650
        %v3070 = vpop.f32.mrb[0].mxu0
        %v3071 = vadd.f32 %v3022, %v3070
        %v3072 = vpop.f32.mrb[0].mxu0
        %v3073 = vpop.f32.mrb[0].mxu0
        %v3074 = vadd.f32 %v3022, %v3073
        %v3075 = vpop.f32.mrb[0].mxu0
        %3076 = vdwg.mxu0
        %s3077 = scalar_lea.vmem %s8, 80
        %v3078 = vld [vmem:[%s3077] sm:$0xf]
        %v3079 = vld [vmem:[%s3077 + $0x4] sm:$0xf]
        %v3080 = vld [vmem:[%s3077 + $0x8] sm:$0xf]
        %v3081 = vld [vmem:[%s3077 + $0xc] sm:$0xf]
        %s3082 = scalar_lea.vmem %s9, 5
        %v3083 = vld [vmem:[%s3082] sm:$0x1]
        %v3085 = vlaneseq
        %v3086 = vshrl.u32 %v3085, 7
        %v3087 = vsub.s32 0, %v3086
        %v3088 = vrot.slane %v3083, %v3087
        %v3094 = vunpack.c.l.b16 %v3078
        %v3095 = vunpack.c.l.b16 %v3079
        %v3096 = vunpack.c.l.b16 %v3080
        %v3097 = vunpack.c.l.b16 %v3081
        %v3098 = vpack.c.b16 %v3095, %v3094
        %v3099 = vpack.c.b16 %v3097, %v3096
        %3102 = vmatprep.subr.bf16.mxu0 0
        %3103 = vmatpush1.bf16.msra.mxu0 %v3098
        %3104 = vmatprep.subr.bf16.mxu0 0
        %3105 = vmatpush1.bf16.msra.mxu0 %v3099
        %3106 = vmatprep.subr.bf16.mxu0 0
        %3107 = vmatpush1.bf16.msra.mxu0 0
        %3108 = vmatprep.subr.bf16.mxu0 0
        %3109 = vmatpush1.bf16.msra.mxu0 0
        %3110 = vmatprep.subr.bf16.mxu0 0
        %3111 = vmatpush1.bf16.msra.mxu0 0
        %3112 = vmatprep.subr.bf16.mxu0 0
        %3113 = vmatpush1.bf16.msra.mxu0 0
        %3114 = vmatprep.subr.bf16.mxu0 0
        %3115 = vmatpush1.bf16.msra.mxu0 0
        %3116 = vmatprep.subr.bf16.mxu0 0
        %3117 = vmatpush1.bf16.msra.mxu0 0
        %3118 = vmatprep.subr.bf16.mxu0 0
        %3119 = vmatpush1.bf16.msra.mxu0 0
        %3120 = vmatprep.subr.bf16.mxu0 0
        %3121 = vmatpush1.bf16.msra.mxu0 0
        %3122 = vmatprep.subr.bf16.mxu0 0
        %3123 = vmatpush1.bf16.msra.mxu0 0
        %3124 = vmatprep.subr.bf16.mxu0 0
        %3125 = vmatpush1.bf16.msra.mxu0 0
        %3126 = vmatprep.subr.bf16.mxu0 0
        %3127 = vmatpush1.bf16.msra.mxu0 0
        %3128 = vmatprep.subr.bf16.mxu0 0
        %3129 = vmatpush1.bf16.msra.mxu0 0
        %3130 = vmatprep.subr.bf16.mxu0 0
        %3131 = vmatpush1.bf16.msra.mxu0 0
        %3132 = vmatprep.subr.bf16.mxu0 0
        %3133 = vmatpush1.bf16.msra.mxu0 0
        %3134 = vmatprep.mubr.bf16.mxu0 0
        %3135 = vmatmul.mubr.bf16.gmra.mrb[0].mxu0 %v2650
        %v3136 = vpop.f32.mrb[0].mxu0
        %v3137 = vadd.f32 %v3088, %v3136
        %v3138 = vpop.f32.mrb[0].mxu0
        %v3139 = vpop.f32.mrb[0].mxu0
        %v3140 = vadd.f32 %v3088, %v3139
        %v3141 = vpop.f32.mrb[0].mxu0
        %3142 = vdwg.mxu0
        %v3143 = vpack.c.bf16 %v3008, %v3005
        %v3144 = vpack.c.bf16 %v3074, %v3071
        %v3146 = vsel %vm1057, %v3143, 0
        %v3149 = vsel %vm1057, %v3144, 0
        %3151 = vmatprep.subr.bf16.mxu0 0
        %3152 = vmatpush1.bf16.xpose.msra.mxu0 %v3149
        %3153 = vmatprep.subr.bf16.mxu0 0
        %3154 = vmatpush1.bf16.xpose.msra.mxu0 0
        %3155 = vmatprep.subr.bf16.mxu0 0
        %3156 = vmatpush1.bf16.xpose.msra.mxu0 0
        %3157 = vmatprep.subr.bf16.mxu0 0
        %3158 = vmatpush1.bf16.xpose.msra.mxu0 0
        %3159 = vmatprep.subr.bf16.mxu0 0
        %3160 = vmatpush1.bf16.xpose.msra.mxu0 0
        %3161 = vmatprep.subr.bf16.mxu0 0
        %3162 = vmatpush1.bf16.xpose.msra.mxu0 0
        %3163 = vmatprep.subr.bf16.mxu0 0
        %3164 = vmatpush1.bf16.xpose.msra.mxu0 0
        %3165 = vmatprep.subr.bf16.mxu0 0
        %3166 = vmatpush1.bf16.xpose.msra.mxu0 0
        %3167 = vmatprep.subr.bf16.mxu0 0
        %3168 = vmatpush1.bf16.xpose.msra.mxu0 0
        %3169 = vmatprep.subr.bf16.mxu0 0
        %3170 = vmatpush1.bf16.xpose.msra.mxu0 0
        %3171 = vmatprep.subr.bf16.mxu0 0
        %3172 = vmatpush1.bf16.xpose.msra.mxu0 0
        %3173 = vmatprep.subr.bf16.mxu0 0
        %3174 = vmatpush1.bf16.xpose.msra.mxu0 0
        %3175 = vmatprep.subr.bf16.mxu0 0
        %3176 = vmatpush1.bf16.xpose.msra.mxu0 0
        %3177 = vmatprep.subr.bf16.mxu0 0
        %3178 = vmatpush1.bf16.xpose.msra.mxu0 0
        %3179 = vmatprep.subr.bf16.mxu0 0
        %3180 = vmatpush1.bf16.xpose.msra.mxu0 0
        %3181 = vmatprep.subr.bf16.mxu0 0
        %3182 = vmatpush1.bf16.xpose.msra.mxu0 0
        %3183 = vmatprep.mubr.bf16.mxu0 0
        %3184 = vmatmul.mubr.bf16.gmra.mrb[0].mxu0 %v3146
        %v3185 = vpop.f32.mrb[0].mxu0
        %v3186 = vadd.f32 %v1055, %v3185
        %v3187 = vpop.f32.mrb[0].mxu0
        %v3188 = vpop.f32.mrb[0].mxu0
        %v3189 = vadd.f32 %v1055, %v3188
        %v3190 = vpop.f32.mrb[0].mxu0
        %3191 = vdwg.mxu0
        %v3192 = vsel %vm1105, %v3186, -inf
        %3193 = vmax.xlane.f32.xlu0 %v3192
        %v3194 = vpop.xlane.xlu0 %3193
        %v3195 = vsel %vm1105, %v3189, -inf
        %3196 = vmax.xlane.f32.xlu0 %v3195
        %v3197 = vpop.xlane.xlu0 %3196
        %v3198 = vsub.f32 %v3186, %v3194
        %v3199 = vsub.f32 %v3189, %v3197
        %v3200 = vmul.f32 %v3198, 1.442695
        %v3201 = vpow.pop %v3200
        %v3202 = vmul.f32 %v3199, 1.442695
        %v3203 = vpow.pop %v3202
        %v3204 = vsel %vm1105, %v3201, 0.0
        %3205 = vadd.xlane.f32.xlu0 %v3204
        %v3206 = vpop.xlane.xlu0 %3205
        %v3207 = vsel %vm1105, %v3203, 0.0
        %3208 = vadd.xlane.f32.xlu0 %v3207
        %v3209 = vpop.xlane.xlu0 %3208
        %v3210 = vrcp.pop %v3206
        %v3211 = vrcp.pop %v3209
        %v3212 = vmul.f32 %v3201, %v3210
        %v3213 = vmul.f32 %v3203, %v3211
        %v3214 = vpack.c.bf16 %v3213, %v3212
        %v3215 = vpack.c.bf16 %v3140, %v3137
        %v3217 = vsel %vm1105, %v3214, 0
        %3219 = vmatprep.subr.bf16.mxu0 0
        %3220 = vmatpush1.bf16.msra.mxu0 %v3215
        %3221 = vmatprep.subr.bf16.mxu0 0
        %3222 = vmatpush1.bf16.msra.mxu0 0
        %3223 = vmatprep.subr.bf16.mxu0 0
        %3224 = vmatpush1.bf16.msra.mxu0 0
        %3225 = vmatprep.subr.bf16.mxu0 0
        %3226 = vmatpush1.bf16.msra.mxu0 0
        %3227 = vmatprep.subr.bf16.mxu0 0
        %3228 = vmatpush1.bf16.msra.mxu0 0
        %3229 = vmatprep.subr.bf16.mxu0 0
        %3230 = vmatpush1.bf16.msra.mxu0 0
        %3231 = vmatprep.subr.bf16.mxu0 0
        %3232 = vmatpush1.bf16.msra.mxu0 0
        %3233 = vmatprep.subr.bf16.mxu0 0
        %3234 = vmatpush1.bf16.msra.mxu0 0
        %3235 = vmatprep.subr.bf16.mxu0 0
        %3236 = vmatpush1.bf16.msra.mxu0 0
        %3237 = vmatprep.subr.bf16.mxu0 0
        %3238 = vmatpush1.bf16.msra.mxu0 0
        %3239 = vmatprep.subr.bf16.mxu0 0
        %3240 = vmatpush1.bf16.msra.mxu0 0
        %3241 = vmatprep.subr.bf16.mxu0 0
        %3242 = vmatpush1.bf16.msra.mxu0 0
        %3243 = vmatprep.subr.bf16.mxu0 0
        %3244 = vmatpush1.bf16.msra.mxu0 0
        %3245 = vmatprep.subr.bf16.mxu0 0
        %3246 = vmatpush1.bf16.msra.mxu0 0
        %3247 = vmatprep.subr.bf16.mxu0 0
        %3248 = vmatpush1.bf16.msra.mxu0 0
        %3249 = vmatprep.subr.bf16.mxu0 0
        %3250 = vmatpush1.bf16.msra.mxu0 0
        %3251 = vmatprep.mubr.bf16.mxu0 0
        %3252 = vmatmul.mubr.bf16.gmra.mrb[0].mxu0 %v3217
        %v3253 = vpop.f32.mrb[0].mxu0
        %v3254 = vadd.f32 0.0, %v3253
        %v3255 = vpop.f32.mrb[0].mxu0
        %v3256 = vpop.f32.mrb[0].mxu0
        %v3257 = vadd.f32 0.0, %v3256
        %v3258 = vpop.f32.mrb[0].mxu0
        %3259 = vdwg.mxu0
        %v3260 = vpack.c.bf16 %v3257, %v3254
        %s3261 = scalar_lea.vmem %s10, 20
        %v3262 = vld [vmem:[%s3261] sm:$0xf]
        %v3264 = vsel %vm1057, %v3260, 0
        %v3267 = vsel %vm1497, %v3262, 0
        %3269 = vmatprep.subr.bf16.mxu0 0
        %3270 = vmatpush1.bf16.msra.mxu0 %v3267
        %3271 = vmatprep.subr.bf16.mxu0 0
        %3272 = vmatpush1.bf16.msra.mxu0 0
        %3273 = vmatprep.subr.bf16.mxu0 0
        %3274 = vmatpush1.bf16.msra.mxu0 0
        %3275 = vmatprep.subr.bf16.mxu0 0
        %3276 = vmatpush1.bf16.msra.mxu0 0
        %3277 = vmatprep.subr.bf16.mxu0 0
        %3278 = vmatpush1.bf16.msra.mxu0 0
        %3279 = vmatprep.subr.bf16.mxu0 0
        %3280 = vmatpush1.bf16.msra.mxu0 0
        %3281 = vmatprep.subr.bf16.mxu0 0
        %3282 = vmatpush1.bf16.msra.mxu0 0
        %3283 = vmatprep.subr.bf16.mxu0 0
        %3284 = vmatpush1.bf16.msra.mxu0 0
        %3285 = vmatprep.subr.bf16.mxu0 0
        %3286 = vmatpush1.bf16.msra.mxu0 0
        %3287 = vmatprep.subr.bf16.mxu0 0
        %3288 = vmatpush1.bf16.msra.mxu0 0
        %3289 = vmatprep.subr.bf16.mxu0 0
        %3290 = vmatpush1.bf16.msra.mxu0 0
        %3291 = vmatprep.subr.bf16.mxu0 0
        %3292 = vmatpush1.bf16.msra.mxu0 0
        %3293 = vmatprep.subr.bf16.mxu0 0
        %3294 = vmatpush1.bf16.msra.mxu0 0
        %3295 = vmatprep.subr.bf16.mxu0 0
        %3296 = vmatpush1.bf16.msra.mxu0 0
        %3297 = vmatprep.subr.bf16.mxu0 0
        %3298 = vmatpush1.bf16.msra.mxu0 0
        %3299 = vmatprep.subr.bf16.mxu0 0
        %3300 = vmatpush1.bf16.msra.mxu0 0
        %3301 = vmatprep.mubr.bf16.mxu0 0
        %3302 = vmatmul.mubr.bf16.gmra.mrb[0].mxu0 %v3264
        %v3303 = vpop.f32.mrb[0].mxu0
        %v3304 = vadd.f32 0.0, %v3303
        %v3305 = vpop.f32.mrb[0].mxu0
        %v3306 = vpop.f32.mrb[0].mxu0
        %v3307 = vadd.f32 0.0, %v3306
        %v3308 = vpop.f32.mrb[0].mxu0
        %3309 = vdwg.mxu0
        %v3311 = vsel %vm1057, %v2942, 0
        %v3314 = vsel %vm1497, %v2944, 0
        %3316 = vmatprep.subr.bf16.mxu0 0
        %3317 = vmatpush1.bf16.msra.mxu0 %v3314
        %3318 = vmatprep.subr.bf16.mxu0 0
        %3319 = vmatpush1.bf16.msra.mxu0 0
        %3320 = vmatprep.subr.bf16.mxu0 0
        %3321 = vmatpush1.bf16.msra.mxu0 0
        %3322 = vmatprep.subr.bf16.mxu0 0
        %3323 = vmatpush1.bf16.msra.mxu0 0
        %3324 = vmatprep.subr.bf16.mxu0 0
        %3325 = vmatpush1.bf16.msra.mxu0 0
        %3326 = vmatprep.subr.bf16.mxu0 0
        %3327 = vmatpush1.bf16.msra.mxu0 0
        %3328 = vmatprep.subr.bf16.mxu0 0
        %3329 = vmatpush1.bf16.msra.mxu0 0
        %3330 = vmatprep.subr.bf16.mxu0 0
        %3331 = vmatpush1.bf16.msra.mxu0 0
        %3332 = vmatprep.subr.bf16.mxu0 0
        %3333 = vmatpush1.bf16.msra.mxu0 0
        %3334 = vmatprep.subr.bf16.mxu0 0
        %3335 = vmatpush1.bf16.msra.mxu0 0
        %3336 = vmatprep.subr.bf16.mxu0 0
        %3337 = vmatpush1.bf16.msra.mxu0 0
        %3338 = vmatprep.subr.bf16.mxu0 0
        %3339 = vmatpush1.bf16.msra.mxu0 0
        %3340 = vmatprep.subr.bf16.mxu0 0
        %3341 = vmatpush1.bf16.msra.mxu0 0
        %3342 = vmatprep.subr.bf16.mxu0 0
        %3343 = vmatpush1.bf16.msra.mxu0 0
        %3344 = vmatprep.subr.bf16.mxu0 0
        %3345 = vmatpush1.bf16.msra.mxu0 0
        %3346 = vmatprep.subr.bf16.mxu0 0
        %3347 = vmatpush1.bf16.msra.mxu0 0
        %3348 = vmatprep.mubr.bf16.mxu0 0
        %3349 = vmatmul.mubr.bf16.gmra.mrb[0].mxu0 %v3311
        %v3350 = vpop.f32.mrb[0].mxu0
        %v3351 = vadd.f32 %v3304, %v3350
        %v3352 = vpop.f32.mrb[0].mxu0
        %v3353 = vpop.f32.mrb[0].mxu0
        %v3354 = vadd.f32 %v3307, %v3353
        %v3355 = vpop.f32.mrb[0].mxu0
        %3356 = vdwg.mxu0
        %s3357 = scalar_lea.vmem %s4, 96
        %v3358 = vld [vmem:[%s3357] sm:$0xf]
        %v3359 = vld [vmem:[%s3357 + $0x4] sm:$0xf]
        %v3360 = vld [vmem:[%s3357 + $0x8] sm:$0xf]
        %v3361 = vld [vmem:[%s3357 + $0xc] sm:$0xf]
        %s3362 = scalar_lea.vmem %s5, 6
        %v3363 = vld [vmem:[%s3362] sm:$0x1]
        %v3365 = vlaneseq
        %v3366 = vshrl.u32 %v3365, 7
        %v3367 = vsub.s32 0, %v3366
        %v3368 = vrot.slane %v3363, %v3367
        %v3374 = vunpack.c.l.b16 %v3358
        %v3375 = vunpack.c.l.b16 %v3359
        %v3376 = vunpack.c.l.b16 %v3360
        %v3377 = vunpack.c.l.b16 %v3361
        %v3378 = vpack.c.b16 %v3375, %v3374
        %v3379 = vpack.c.b16 %v3377, %v3376
        %3382 = vmatprep.subr.bf16.mxu0 0
        %3383 = vmatpush1.bf16.msra.mxu0 %v3378
        %3384 = vmatprep.subr.bf16.mxu0 0
        %3385 = vmatpush1.bf16.msra.mxu0 %v3379
        %3386 = vmatprep.subr.bf16.mxu0 0
        %3387 = vmatpush1.bf16.msra.mxu0 0
        %3388 = vmatprep.subr.bf16.mxu0 0
        %3389 = vmatpush1.bf16.msra.mxu0 0
        %3390 = vmatprep.subr.bf16.mxu0 0
        %3391 = vmatpush1.bf16.msra.mxu0 0
        %3392 = vmatprep.subr.bf16.mxu0 0
        %3393 = vmatpush1.bf16.msra.mxu0 0
        %3394 = vmatprep.subr.bf16.mxu0 0
        %3395 = vmatpush1.bf16.msra.mxu0 0
        %3396 = vmatprep.subr.bf16.mxu0 0
        %3397 = vmatpush1.bf16.msra.mxu0 0
        %3398 = vmatprep.subr.bf16.mxu0 0
        %3399 = vmatpush1.bf16.msra.mxu0 0
        %3400 = vmatprep.subr.bf16.mxu0 0
        %3401 = vmatpush1.bf16.msra.mxu0 0
        %3402 = vmatprep.subr.bf16.mxu0 0
        %3403 = vmatpush1.bf16.msra.mxu0 0
        %3404 = vmatprep.subr.bf16.mxu0 0
        %3405 = vmatpush1.bf16.msra.mxu0 0
        %3406 = vmatprep.subr.bf16.mxu0 0
        %3407 = vmatpush1.bf16.msra.mxu0 0
        %3408 = vmatprep.subr.bf16.mxu0 0
        %3409 = vmatpush1.bf16.msra.mxu0 0
        %3410 = vmatprep.subr.bf16.mxu0 0
        %3411 = vmatpush1.bf16.msra.mxu0 0
        %3412 = vmatprep.subr.bf16.mxu0 0
        %3413 = vmatpush1.bf16.msra.mxu0 0
        %3414 = vmatprep.mubr.bf16.mxu0 0
        %3415 = vmatmul.mubr.bf16.gmra.mrb[0].mxu0 %v2650
        %v3416 = vpop.f32.mrb[0].mxu0
        %v3417 = vadd.f32 %v3368, %v3416
        %v3418 = vpop.f32.mrb[0].mxu0
        %v3419 = vpop.f32.mrb[0].mxu0
        %v3420 = vadd.f32 %v3368, %v3419
        %v3421 = vpop.f32.mrb[0].mxu0
        %3422 = vdwg.mxu0
        %s3423 = scalar_lea.vmem %s6, 96
        %v3424 = vld [vmem:[%s3423] sm:$0xf]
        %v3425 = vld [vmem:[%s3423 + $0x4] sm:$0xf]
        %v3426 = vld [vmem:[%s3423 + $0x8] sm:$0xf]
        %v3427 = vld [vmem:[%s3423 + $0xc] sm:$0xf]
        %s3428 = scalar_lea.vmem %s7, 6
        %v3429 = vld [vmem:[%s3428] sm:$0x1]
        %v3431 = vlaneseq
        %v3432 = vshrl.u32 %v3431, 7
        %v3433 = vsub.s32 0, %v3432
        %v3434 = vrot.slane %v3429, %v3433
        %v3440 = vunpack.c.l.b16 %v3424
        %v3441 = vunpack.c.l.b16 %v3425
        %v3442 = vunpack.c.l.b16 %v3426
        %v3443 = vunpack.c.l.b16 %v3427
        %v3444 = vpack.c.b16 %v3441, %v3440
        %v3445 = vpack.c.b16 %v3443, %v3442
        %3448 = vmatprep.subr.bf16.mxu0 0
        %3449 = vmatpush1.bf16.msra.mxu0 %v3444
        %3450 = vmatprep.subr.bf16.mxu0 0
        %3451 = vmatpush1.bf16.msra.mxu0 %v3445
        %3452 = vmatprep.subr.bf16.mxu0 0
        %3453 = vmatpush1.bf16.msra.mxu0 0
        %3454 = vmatprep.subr.bf16.mxu0 0
        %3455 = vmatpush1.bf16.msra.mxu0 0
        %3456 = vmatprep.subr.bf16.mxu0 0
        %3457 = vmatpush1.bf16.msra.mxu0 0
        %3458 = vmatprep.subr.bf16.mxu0 0
        %3459 = vmatpush1.bf16.msra.mxu0 0
        %3460 = vmatprep.subr.bf16.mxu0 0
        %3461 = vmatpush1.bf16.msra.mxu0 0
        %3462 = vmatprep.subr.bf16.mxu0 0
        %3463 = vmatpush1.bf16.msra.mxu0 0
        %3464 = vmatprep.subr.bf16.mxu0 0
        %3465 = vmatpush1.bf16.msra.mxu0 0
        %3466 = vmatprep.subr.bf16.mxu0 0
        %3467 = vmatpush1.bf16.msra.mxu0 0
        %3468 = vmatprep.subr.bf16.mxu0 0
        %3469 = vmatpush1.bf16.msra.mxu0 0
        %3470 = vmatprep.subr.bf16.mxu0 0
        %3471 = vmatpush1.bf16.msra.mxu0 0
        %3472 = vmatprep.subr.bf16.mxu0 0
        %3473 = vmatpush1.bf16.msra.mxu0 0
        %3474 = vmatprep.subr.bf16.mxu0 0
        %3475 = vmatpush1.bf16.msra.mxu0 0
        %3476 = vmatprep.subr.bf16.mxu0 0
        %3477 = vmatpush1.bf16.msra.mxu0 0
        %3478 = vmatprep.subr.bf16.mxu0 0
        %3479 = vmatpush1.bf16.msra.mxu0 0
        %3480 = vmatprep.mubr.bf16.mxu0 0
        %3481 = vmatmul.mubr.bf16.gmra.mrb[0].mxu0 %v2650
        %v3482 = vpop.f32.mrb[0].mxu0
        %v3483 = vadd.f32 %v3434, %v3482
        %v3484 = vpop.f32.mrb[0].mxu0
        %v3485 = vpop.f32.mrb[0].mxu0
        %v3486 = vadd.f32 %v3434, %v3485
        %v3487 = vpop.f32.mrb[0].mxu0
        %3488 = vdwg.mxu0
        %s3489 = scalar_lea.vmem %s8, 96
        %v3490 = vld [vmem:[%s3489] sm:$0xf]
        %v3491 = vld [vmem:[%s3489 + $0x4] sm:$0xf]
        %v3492 = vld [vmem:[%s3489 + $0x8] sm:$0xf]
        %v3493 = vld [vmem:[%s3489 + $0xc] sm:$0xf]
        %s3494 = scalar_lea.vmem %s9, 6
        %v3495 = vld [vmem:[%s3494] sm:$0x1]
        %v3497 = vlaneseq
        %v3498 = vshrl.u32 %v3497, 7
        %v3499 = vsub.s32 0, %v3498
        %v3500 = vrot.slane %v3495, %v3499
        %v3506 = vunpack.c.l.b16 %v3490
        %v3507 = vunpack.c.l.b16 %v3491
        %v3508 = vunpack.c.l.b16 %v3492
        %v3509 = vunpack.c.l.b16 %v3493
        %v3510 = vpack.c.b16 %v3507, %v3506
        %v3511 = vpack.c.b16 %v3509, %v3508
        %3514 = vmatprep.subr.bf16.mxu0 0
        %3515 = vmatpush1.bf16.msra.mxu0 %v3510
        %3516 = vmatprep.subr.bf16.mxu0 0
        %3517 = vmatpush1.bf16.msra.mxu0 %v3511
        %3518 = vmatprep.subr.bf16.mxu0 0
        %3519 = vmatpush1.bf16.msra.mxu0 0
        %3520 = vmatprep.subr.bf16.mxu0 0
        %3521 = vmatpush1.bf16.msra.mxu0 0
        %3522 = vmatprep.subr.bf16.mxu0 0
        %3523 = vmatpush1.bf16.msra.mxu0 0
        %3524 = vmatprep.subr.bf16.mxu0 0
        %3525 = vmatpush1.bf16.msra.mxu0 0
        %3526 = vmatprep.subr.bf16.mxu0 0
        %3527 = vmatpush1.bf16.msra.mxu0 0
        %3528 = vmatprep.subr.bf16.mxu0 0
        %3529 = vmatpush1.bf16.msra.mxu0 0
        %3530 = vmatprep.subr.bf16.mxu0 0
        %3531 = vmatpush1.bf16.msra.mxu0 0
        %3532 = vmatprep.subr.bf16.mxu0 0
        %3533 = vmatpush1.bf16.msra.mxu0 0
        %3534 = vmatprep.subr.bf16.mxu0 0
        %3535 = vmatpush1.bf16.msra.mxu0 0
        %3536 = vmatprep.subr.bf16.mxu0 0
        %3537 = vmatpush1.bf16.msra.mxu0 0
        %3538 = vmatprep.subr.bf16.mxu0 0
        %3539 = vmatpush1.bf16.msra.mxu0 0
        %3540 = vmatprep.subr.bf16.mxu0 0
        %3541 = vmatpush1.bf16.msra.mxu0 0
        %3542 = vmatprep.subr.bf16.mxu0 0
        %3543 = vmatpush1.bf16.msra.mxu0 0
        %3544 = vmatprep.subr.bf16.mxu0 0
        %3545 = vmatpush1.bf16.msra.mxu0 0
        %3546 = vmatprep.mubr.bf16.mxu0 0
        %3547 = vmatmul.mubr.bf16.gmra.mrb[0].mxu0 %v2650
        %v3548 = vpop.f32.mrb[0].mxu0
        %v3549 = vadd.f32 %v3500, %v3548
        %v3550 = vpop.f32.mrb[0].mxu0
        %v3551 = vpop.f32.mrb[0].mxu0
        %v3552 = vadd.f32 %v3500, %v3551
        %v3553 = vpop.f32.mrb[0].mxu0
        %3554 = vdwg.mxu0
        %v3555 = vpack.c.bf16 %v3420, %v3417
        %v3556 = vpack.c.bf16 %v3486, %v3483
        %v3558 = vsel %vm1057, %v3555, 0
        %v3561 = vsel %vm1057, %v3556, 0
        %3563 = vmatprep.subr.bf16.mxu0 0
        %3564 = vmatpush1.bf16.xpose.msra.mxu0 %v3561
        %3565 = vmatprep.subr.bf16.mxu0 0
        %3566 = vmatpush1.bf16.xpose.msra.mxu0 0
        %3567 = vmatprep.subr.bf16.mxu0 0
        %3568 = vmatpush1.bf16.xpose.msra.mxu0 0
        %3569 = vmatprep.subr.bf16.mxu0 0
        %3570 = vmatpush1.bf16.xpose.msra.mxu0 0
        %3571 = vmatprep.subr.bf16.mxu0 0
        %3572 = vmatpush1.bf16.xpose.msra.mxu0 0
        %3573 = vmatprep.subr.bf16.mxu0 0
        %3574 = vmatpush1.bf16.xpose.msra.mxu0 0
        %3575 = vmatprep.subr.bf16.mxu0 0
        %3576 = vmatpush1.bf16.xpose.msra.mxu0 0
        %3577 = vmatprep.subr.bf16.mxu0 0
        %3578 = vmatpush1.bf16.xpose.msra.mxu0 0
        %3579 = vmatprep.subr.bf16.mxu0 0
        %3580 = vmatpush1.bf16.xpose.msra.mxu0 0
        %3581 = vmatprep.subr.bf16.mxu0 0
        %3582 = vmatpush1.bf16.xpose.msra.mxu0 0
        %3583 = vmatprep.subr.bf16.mxu0 0
        %3584 = vmatpush1.bf16.xpose.msra.mxu0 0
        %3585 = vmatprep.subr.bf16.mxu0 0
        %3586 = vmatpush1.bf16.xpose.msra.mxu0 0
        %3587 = vmatprep.subr.bf16.mxu0 0
        %3588 = vmatpush1.bf16.xpose.msra.mxu0 0
        %3589 = vmatprep.subr.bf16.mxu0 0
        %3590 = vmatpush1.bf16.xpose.msra.mxu0 0
        %3591 = vmatprep.subr.bf16.mxu0 0
        %3592 = vmatpush1.bf16.xpose.msra.mxu0 0
        %3593 = vmatprep.subr.bf16.mxu0 0
        %3594 = vmatpush1.bf16.xpose.msra.mxu0 0
        %3595 = vmatprep.mubr.bf16.mxu0 0
        %3596 = vmatmul.mubr.bf16.gmra.mrb[0].mxu0 %v3558
        %v3597 = vpop.f32.mrb[0].mxu0
        %v3598 = vadd.f32 %v1055, %v3597
        %v3599 = vpop.f32.mrb[0].mxu0
        %v3600 = vpop.f32.mrb[0].mxu0
        %v3601 = vadd.f32 %v1055, %v3600
        %v3602 = vpop.f32.mrb[0].mxu0
        %3603 = vdwg.mxu0
        %v3604 = vsel %vm1105, %v3598, -inf
        %3605 = vmax.xlane.f32.xlu0 %v3604
        %v3606 = vpop.xlane.xlu0 %3605
        %v3607 = vsel %vm1105, %v3601, -inf
        %3608 = vmax.xlane.f32.xlu0 %v3607
        %v3609 = vpop.xlane.xlu0 %3608
        %v3610 = vsub.f32 %v3598, %v3606
        %v3611 = vsub.f32 %v3601, %v3609
        %v3612 = vmul.f32 %v3610, 1.442695
        %v3613 = vpow.pop %v3612
        %v3614 = vmul.f32 %v3611, 1.442695
        %v3615 = vpow.pop %v3614
        %v3616 = vsel %vm1105, %v3613, 0.0
        %3617 = vadd.xlane.f32.xlu0 %v3616
        %v3618 = vpop.xlane.xlu0 %3617
        %v3619 = vsel %vm1105, %v3615, 0.0
        %3620 = vadd.xlane.f32.xlu0 %v3619
        %v3621 = vpop.xlane.xlu0 %3620
        %v3622 = vrcp.pop %v3618
        %v3623 = vrcp.pop %v3621
        %v3624 = vmul.f32 %v3613, %v3622
        %v3625 = vmul.f32 %v3615, %v3623
        %v3626 = vpack.c.bf16 %v3625, %v3624
        %v3627 = vpack.c.bf16 %v3552, %v3549
        %v3629 = vsel %vm1105, %v3626, 0
        %3631 = vmatprep.subr.bf16.mxu0 0
        %3632 = vmatpush1.bf16.msra.mxu0 %v3627
        %3633 = vmatprep.subr.bf16.mxu0 0
        %3634 = vmatpush1.bf16.msra.mxu0 0
        %3635 = vmatprep.subr.bf16.mxu0 0
        %3636 = vmatpush1.bf16.msra.mxu0 0
        %3637 = vmatprep.subr.bf16.mxu0 0
        %3638 = vmatpush1.bf16.msra.mxu0 0
        %3639 = vmatprep.subr.bf16.mxu0 0
        %3640 = vmatpush1.bf16.msra.mxu0 0
        %3641 = vmatprep.subr.bf16.mxu0 0
        %3642 = vmatpush1.bf16.msra.mxu0 0
        %3643 = vmatprep.subr.bf16.mxu0 0
        %3644 = vmatpush1.bf16.msra.mxu0 0
        %3645 = vmatprep.subr.bf16.mxu0 0
        %3646 = vmatpush1.bf16.msra.mxu0 0
        %3647 = vmatprep.subr.bf16.mxu0 0
        %3648 = vmatpush1.bf16.msra.mxu0 0
        %3649 = vmatprep.subr.bf16.mxu0 0
        %3650 = vmatpush1.bf16.msra.mxu0 0
        %3651 = vmatprep.subr.bf16.mxu0 0
        %3652 = vmatpush1.bf16.msra.mxu0 0
        %3653 = vmatprep.subr.bf16.mxu0 0
        %3654 = vmatpush1.bf16.msra.mxu0 0
        %3655 = vmatprep.subr.bf16.mxu0 0
        %3656 = vmatpush1.bf16.msra.mxu0 0
        %3657 = vmatprep.subr.bf16.mxu0 0
        %3658 = vmatpush1.bf16.msra.mxu0 0
        %3659 = vmatprep.subr.bf16.mxu0 0
        %3660 = vmatpush1.bf16.msra.mxu0 0
        %3661 = vmatprep.subr.bf16.mxu0 0
        %3662 = vmatpush1.bf16.msra.mxu0 0
        %3663 = vmatprep.mubr.bf16.mxu0 0
        %3664 = vmatmul.mubr.bf16.gmra.mrb[0].mxu0 %v3629
        %v3665 = vpop.f32.mrb[0].mxu0
        %v3666 = vadd.f32 0.0, %v3665
        %v3667 = vpop.f32.mrb[0].mxu0
        %v3668 = vpop.f32.mrb[0].mxu0
        %v3669 = vadd.f32 0.0, %v3668
        %v3670 = vpop.f32.mrb[0].mxu0
        %3671 = vdwg.mxu0
        %v3672 = vpack.c.bf16 %v3669, %v3666
        %s3673 = scalar_lea.vmem %s10, 24
        %v3674 = vld [vmem:[%s3673] sm:$0xf]
        %v3676 = vsel %vm1057, %v3672, 0
        %v3679 = vsel %vm1497, %v3674, 0
        %3681 = vmatprep.subr.bf16.mxu0 0
        %3682 = vmatpush1.bf16.msra.mxu0 %v3679
        %3683 = vmatprep.subr.bf16.mxu0 0
        %3684 = vmatpush1.bf16.msra.mxu0 0
        %3685 = vmatprep.subr.bf16.mxu0 0
        %3686 = vmatpush1.bf16.msra.mxu0 0
        %3687 = vmatprep.subr.bf16.mxu0 0
        %3688 = vmatpush1.bf16.msra.mxu0 0
        %3689 = vmatprep.subr.bf16.mxu0 0
        %3690 = vmatpush1.bf16.msra.mxu0 0
        %3691 = vmatprep.subr.bf16.mxu0 0
        %3692 = vmatpush1.bf16.msra.mxu0 0
        %3693 = vmatprep.subr.bf16.mxu0 0
        %3694 = vmatpush1.bf16.msra.mxu0 0
        %3695 = vmatprep.subr.bf16.mxu0 0
        %3696 = vmatpush1.bf16.msra.mxu0 0
        %3697 = vmatprep.subr.bf16.mxu0 0
        %3698 = vmatpush1.bf16.msra.mxu0 0
        %3699 = vmatprep.subr.bf16.mxu0 0
        %3700 = vmatpush1.bf16.msra.mxu0 0
        %3701 = vmatprep.subr.bf16.mxu0 0
        %3702 = vmatpush1.bf16.msra.mxu0 0
        %3703 = vmatprep.subr.bf16.mxu0 0
        %3704 = vmatpush1.bf16.msra.mxu0 0
        %3705 = vmatprep.subr.bf16.mxu0 0
        %3706 = vmatpush1.bf16.msra.mxu0 0
        %3707 = vmatprep.subr.bf16.mxu0 0
        %3708 = vmatpush1.bf16.msra.mxu0 0
        %3709 = vmatprep.subr.bf16.mxu0 0
        %3710 = vmatpush1.bf16.msra.mxu0 0
        %3711 = vmatprep.subr.bf16.mxu0 0
        %3712 = vmatpush1.bf16.msra.mxu0 0
        %3713 = vmatprep.mubr.bf16.mxu0 0
        %3714 = vmatmul.mubr.bf16.gmra.mrb[0].mxu0 %v3676
        %v3715 = vpop.f32.mrb[0].mxu0
        %v3716 = vadd.f32 0.0, %v3715
        %v3717 = vpop.f32.mrb[0].mxu0
        %v3718 = vpop.f32.mrb[0].mxu0
        %v3719 = vadd.f32 0.0, %v3718
        %v3720 = vpop.f32.mrb[0].mxu0
        %3721 = vdwg.mxu0
        %v3722 = vadd.f32 %v3351, %v3716
        %v3723 = vadd.f32 %v3354, %v3719
        %s3724 = scalar_lea.vmem %s4, 112
        %v3725 = vld [vmem:[%s3724] sm:$0xf]
        %v3726 = vld [vmem:[%s3724 + $0x4] sm:$0xf]
        %v3727 = vld [vmem:[%s3724 + $0x8] sm:$0xf]
        %v3728 = vld [vmem:[%s3724 + $0xc] sm:$0xf]
        %s3729 = scalar_lea.vmem %s5, 7
        %v3730 = vld [vmem:[%s3729] sm:$0x1]
        %v3732 = vlaneseq
        %v3733 = vshrl.u32 %v3732, 7
        %v3734 = vsub.s32 0, %v3733
        %v3735 = vrot.slane %v3730, %v3734
        %v3741 = vunpack.c.l.b16 %v3725
        %v3742 = vunpack.c.l.b16 %v3726
        %v3743 = vunpack.c.l.b16 %v3727
        %v3744 = vunpack.c.l.b16 %v3728
        %v3745 = vpack.c.b16 %v3742, %v3741
        %v3746 = vpack.c.b16 %v3744, %v3743
        %3749 = vmatprep.subr.bf16.mxu0 0
        %3750 = vmatpush1.bf16.msra.mxu0 %v3745
        %3751 = vmatprep.subr.bf16.mxu0 0
        %3752 = vmatpush1.bf16.msra.mxu0 %v3746
        %3753 = vmatprep.subr.bf16.mxu0 0
        %3754 = vmatpush1.bf16.msra.mxu0 0
        %3755 = vmatprep.subr.bf16.mxu0 0
        %3756 = vmatpush1.bf16.msra.mxu0 0
        %3757 = vmatprep.subr.bf16.mxu0 0
        %3758 = vmatpush1.bf16.msra.mxu0 0
        %3759 = vmatprep.subr.bf16.mxu0 0
        %3760 = vmatpush1.bf16.msra.mxu0 0
        %3761 = vmatprep.subr.bf16.mxu0 0
        %3762 = vmatpush1.bf16.msra.mxu0 0
        %3763 = vmatprep.subr.bf16.mxu0 0
        %3764 = vmatpush1.bf16.msra.mxu0 0
        %3765 = vmatprep.subr.bf16.mxu0 0
        %3766 = vmatpush1.bf16.msra.mxu0 0
        %3767 = vmatprep.subr.bf16.mxu0 0
        %3768 = vmatpush1.bf16.msra.mxu0 0
        %3769 = vmatprep.subr.bf16.mxu0 0
        %3770 = vmatpush1.bf16.msra.mxu0 0
        %3771 = vmatprep.subr.bf16.mxu0 0
        %3772 = vmatpush1.bf16.msra.mxu0 0
        %3773 = vmatprep.subr.bf16.mxu0 0
        %3774 = vmatpush1.bf16.msra.mxu0 0
        %3775 = vmatprep.subr.bf16.mxu0 0
        %3776 = vmatpush1.bf16.msra.mxu0 0
        %3777 = vmatprep.subr.bf16.mxu0 0
        %3778 = vmatpush1.bf16.msra.mxu0 0
        %3779 = vmatprep.subr.bf16.mxu0 0
        %3780 = vmatpush1.bf16.msra.mxu0 0
        %3781 = vmatprep.mubr.bf16.mxu0 0
        %3782 = vmatmul.mubr.bf16.gmra.mrb[0].mxu0 %v2650
        %v3783 = vpop.f32.mrb[0].mxu0
        %v3784 = vadd.f32 %v3735, %v3783
        %v3785 = vpop.f32.mrb[0].mxu0
        %v3786 = vpop.f32.mrb[0].mxu0
        %v3787 = vadd.f32 %v3735, %v3786
        %v3788 = vpop.f32.mrb[0].mxu0
        %3789 = vdwg.mxu0
        %s3790 = scalar_lea.vmem %s6, 112
        %v3791 = vld [vmem:[%s3790] sm:$0xf]
        %v3792 = vld [vmem:[%s3790 + $0x4] sm:$0xf]
        %v3793 = vld [vmem:[%s3790 + $0x8] sm:$0xf]
        %v3794 = vld [vmem:[%s3790 + $0xc] sm:$0xf]
        %s3795 = scalar_lea.vmem %s7, 7
        %v3796 = vld [vmem:[%s3795] sm:$0x1]
        %v3798 = vlaneseq
        %v3799 = vshrl.u32 %v3798, 7
        %v3800 = vsub.s32 0, %v3799
        %v3801 = vrot.slane %v3796, %v3800
        %v3807 = vunpack.c.l.b16 %v3791
        %v3808 = vunpack.c.l.b16 %v3792
        %v3809 = vunpack.c.l.b16 %v3793
        %v3810 = vunpack.c.l.b16 %v3794
        %v3811 = vpack.c.b16 %v3808, %v3807
        %v3812 = vpack.c.b16 %v3810, %v3809
        %3815 = vmatprep.subr.bf16.mxu0 0
        %3816 = vmatpush1.bf16.msra.mxu0 %v3811
        %3817 = vmatprep.subr.bf16.mxu0 0
        %3818 = vmatpush1.bf16.msra.mxu0 %v3812
        %3819 = vmatprep.subr.bf16.mxu0 0
        %3820 = vmatpush1.bf16.msra.mxu0 0
        %3821 = vmatprep.subr.bf16.mxu0 0
        %3822 = vmatpush1.bf16.msra.mxu0 0
        %3823 = vmatprep.subr.bf16.mxu0 0
        %3824 = vmatpush1.bf16.msra.mxu0 0
        %3825 = vmatprep.subr.bf16.mxu0 0
        %3826 = vmatpush1.bf16.msra.mxu0 0
        %3827 = vmatprep.subr.bf16.mxu0 0
        %3828 = vmatpush1.bf16.msra.mxu0 0
        %3829 = vmatprep.subr.bf16.mxu0 0
        %3830 = vmatpush1.bf16.msra.mxu0 0
        %3831 = vmatprep.subr.bf16.mxu0 0
        %3832 = vmatpush1.bf16.msra.mxu0 0
        %3833 = vmatprep.subr.bf16.mxu0 0
        %3834 = vmatpush1.bf16.msra.mxu0 0
        %3835 = vmatprep.subr.bf16.mxu0 0
        %3836 = vmatpush1.bf16.msra.mxu0 0
        %3837 = vmatprep.subr.bf16.mxu0 0
        %3838 = vmatpush1.bf16.msra.mxu0 0
        %3839 = vmatprep.subr.bf16.mxu0 0
        %3840 = vmatpush1.bf16.msra.mxu0 0
        %3841 = vmatprep.subr.bf16.mxu0 0
        %3842 = vmatpush1.bf16.msra.mxu0 0
        %3843 = vmatprep.subr.bf16.mxu0 0
        %3844 = vmatpush1.bf16.msra.mxu0 0
        %3845 = vmatprep.subr.bf16.mxu0 0
        %3846 = vmatpush1.bf16.msra.mxu0 0
        %3847 = vmatprep.mubr.bf16.mxu0 0
        %3848 = vmatmul.mubr.bf16.gmra.mrb[0].mxu0 %v2650
        %v3849 = vpop.f32.mrb[0].mxu0
        %v3850 = vadd.f32 %v3801, %v3849
        %v3851 = vpop.f32.mrb[0].mxu0
        %v3852 = vpop.f32.mrb[0].mxu0
        %v3853 = vadd.f32 %v3801, %v3852
        %v3854 = vpop.f32.mrb[0].mxu0
        %3855 = vdwg.mxu0
        %s3856 = scalar_lea.vmem %s8, 112
        %v3857 = vld [vmem:[%s3856] sm:$0xf]
        %v3858 = vld [vmem:[%s3856 + $0x4] sm:$0xf]
        %v3859 = vld [vmem:[%s3856 + $0x8] sm:$0xf]
        %v3860 = vld [vmem:[%s3856 + $0xc] sm:$0xf]
        %s3861 = scalar_lea.vmem %s9, 7
        %v3862 = vld [vmem:[%s3861] sm:$0x1]
        %v3864 = vlaneseq
        %v3865 = vshrl.u32 %v3864, 7
        %v3866 = vsub.s32 0, %v3865
        %v3867 = vrot.slane %v3862, %v3866
        %v3873 = vunpack.c.l.b16 %v3857
        %v3874 = vunpack.c.l.b16 %v3858
        %v3875 = vunpack.c.l.b16 %v3859
        %v3876 = vunpack.c.l.b16 %v3860
        %v3877 = vpack.c.b16 %v3874, %v3873
        %v3878 = vpack.c.b16 %v3876, %v3875
        %3881 = vmatprep.subr.bf16.mxu0 0
        %3882 = vmatpush1.bf16.msra.mxu0 %v3877
        %3883 = vmatprep.subr.bf16.mxu0 0
        %3884 = vmatpush1.bf16.msra.mxu0 %v3878
        %3885 = vmatprep.subr.bf16.mxu0 0
        %3886 = vmatpush1.bf16.msra.mxu0 0
        %3887 = vmatprep.subr.bf16.mxu0 0
        %3888 = vmatpush1.bf16.msra.mxu0 0
        %3889 = vmatprep.subr.bf16.mxu0 0
        %3890 = vmatpush1.bf16.msra.mxu0 0
        %3891 = vmatprep.subr.bf16.mxu0 0
        %3892 = vmatpush1.bf16.msra.mxu0 0
        %3893 = vmatprep.subr.bf16.mxu0 0
        %3894 = vmatpush1.bf16.msra.mxu0 0
        %3895 = vmatprep.subr.bf16.mxu0 0
        %3896 = vmatpush1.bf16.msra.mxu0 0
        %3897 = vmatprep.subr.bf16.mxu0 0
        %3898 = vmatpush1.bf16.msra.mxu0 0
        %3899 = vmatprep.subr.bf16.mxu0 0
        %3900 = vmatpush1.bf16.msra.mxu0 0
        %3901 = vmatprep.subr.bf16.mxu0 0
        %3902 = vmatpush1.bf16.msra.mxu0 0
        %3903 = vmatprep.subr.bf16.mxu0 0
        %3904 = vmatpush1.bf16.msra.mxu0 0
        %3905 = vmatprep.subr.bf16.mxu0 0
        %3906 = vmatpush1.bf16.msra.mxu0 0
        %3907 = vmatprep.subr.bf16.mxu0 0
        %3908 = vmatpush1.bf16.msra.mxu0 0
        %3909 = vmatprep.subr.bf16.mxu0 0
        %3910 = vmatpush1.bf16.msra.mxu0 0
        %3911 = vmatprep.subr.bf16.mxu0 0
        %3912 = vmatpush1.bf16.msra.mxu0 0
        %3913 = vmatprep.mubr.bf16.mxu0 0
        %3914 = vmatmul.mubr.bf16.gmra.mrb[0].mxu0 %v2650
        %v3915 = vpop.f32.mrb[0].mxu0
        %v3916 = vadd.f32 %v3867, %v3915
        %v3917 = vpop.f32.mrb[0].mxu0
        %v3918 = vpop.f32.mrb[0].mxu0
        %v3919 = vadd.f32 %v3867, %v3918
        %v3920 = vpop.f32.mrb[0].mxu0
        %3921 = vdwg.mxu0
        %v3922 = vpack.c.bf16 %v3787, %v3784
        %v3923 = vpack.c.bf16 %v3853, %v3850
        %v3925 = vsel %vm1057, %v3922, 0
        %v3928 = vsel %vm1057, %v3923, 0
        %3930 = vmatprep.subr.bf16.mxu0 0
        %3931 = vmatpush1.bf16.xpose.msra.mxu0 %v3928
        %3932 = vmatprep.subr.bf16.mxu0 0
        %3933 = vmatpush1.bf16.xpose.msra.mxu0 0
        %3934 = vmatprep.subr.bf16.mxu0 0
        %3935 = vmatpush1.bf16.xpose.msra.mxu0 0
        %3936 = vmatprep.subr.bf16.mxu0 0
        %3937 = vmatpush1.bf16.xpose.msra.mxu0 0
        %3938 = vmatprep.subr.bf16.mxu0 0
        %3939 = vmatpush1.bf16.xpose.msra.mxu0 0
        %3940 = vmatprep.subr.bf16.mxu0 0
        %3941 = vmatpush1.bf16.xpose.msra.mxu0 0
        %3942 = vmatprep.subr.bf16.mxu0 0
        %3943 = vmatpush1.bf16.xpose.msra.mxu0 0
        %3944 = vmatprep.subr.bf16.mxu0 0
        %3945 = vmatpush1.bf16.xpose.msra.mxu0 0
        %3946 = vmatprep.subr.bf16.mxu0 0
        %3947 = vmatpush1.bf16.xpose.msra.mxu0 0
        %3948 = vmatprep.subr.bf16.mxu0 0
        %3949 = vmatpush1.bf16.xpose.msra.mxu0 0
        %3950 = vmatprep.subr.bf16.mxu0 0
        %3951 = vmatpush1.bf16.xpose.msra.mxu0 0
        %3952 = vmatprep.subr.bf16.mxu0 0
        %3953 = vmatpush1.bf16.xpose.msra.mxu0 0
        %3954 = vmatprep.subr.bf16.mxu0 0
        %3955 = vmatpush1.bf16.xpose.msra.mxu0 0
        %3956 = vmatprep.subr.bf16.mxu0 0
        %3957 = vmatpush1.bf16.xpose.msra.mxu0 0
        %3958 = vmatprep.subr.bf16.mxu0 0
        %3959 = vmatpush1.bf16.xpose.msra.mxu0 0
        %3960 = vmatprep.subr.bf16.mxu0 0
        %3961 = vmatpush1.bf16.xpose.msra.mxu0 0
        %3962 = vmatprep.mubr.bf16.mxu0 0
        %3963 = vmatmul.mubr.bf16.gmra.mrb[0].mxu0 %v3925
        %v3964 = vpop.f32.mrb[0].mxu0
        %v3965 = vadd.f32 %v1055, %v3964
        %v3966 = vpop.f32.mrb[0].mxu0
        %v3967 = vpop.f32.mrb[0].mxu0
        %v3968 = vadd.f32 %v1055, %v3967
        %v3969 = vpop.f32.mrb[0].mxu0
        %3970 = vdwg.mxu0
        %v3971 = vsel %vm1105, %v3965, -inf
        %3972 = vmax.xlane.f32.xlu0 %v3971
        %v3973 = vpop.xlane.xlu0 %3972
        %v3974 = vsel %vm1105, %v3968, -inf
        %3975 = vmax.xlane.f32.xlu0 %v3974
        %v3976 = vpop.xlane.xlu0 %3975
        %v3977 = vsub.f32 %v3965, %v3973
        %v3978 = vsub.f32 %v3968, %v3976
        %v3979 = vmul.f32 %v3977, 1.442695
        %v3980 = vpow.pop %v3979
        %v3981 = vmul.f32 %v3978, 1.442695
        %v3982 = vpow.pop %v3981
        %v3983 = vsel %vm1105, %v3980, 0.0
        %3984 = vadd.xlane.f32.xlu0 %v3983
        %v3985 = vpop.xlane.xlu0 %3984
        %v3986 = vsel %vm1105, %v3982, 0.0
        %3987 = vadd.xlane.f32.xlu0 %v3986
        %v3988 = vpop.xlane.xlu0 %3987
        %v3989 = vrcp.pop %v3985
        %v3990 = vrcp.pop %v3988
        %v3991 = vmul.f32 %v3980, %v3989
        %v3992 = vmul.f32 %v3982, %v3990
        %v3993 = vpack.c.bf16 %v3992, %v3991
        %v3994 = vpack.c.bf16 %v3919, %v3916
        %v3996 = vsel %vm1105, %v3993, 0
        %3998 = vmatprep.subr.bf16.mxu0 0
        %3999 = vmatpush1.bf16.msra.mxu0 %v3994
        %4000 = vmatprep.subr.bf16.mxu0 0
        %4001 = vmatpush1.bf16.msra.mxu0 0
        %4002 = vmatprep.subr.bf16.mxu0 0
        %4003 = vmatpush1.bf16.msra.mxu0 0
        %4004 = vmatprep.subr.bf16.mxu0 0
        %4005 = vmatpush1.bf16.msra.mxu0 0
        %4006 = vmatprep.subr.bf16.mxu0 0
        %4007 = vmatpush1.bf16.msra.mxu0 0
        %4008 = vmatprep.subr.bf16.mxu0 0
        %4009 = vmatpush1.bf16.msra.mxu0 0
        %4010 = vmatprep.subr.bf16.mxu0 0
        %4011 = vmatpush1.bf16.msra.mxu0 0
        %4012 = vmatprep.subr.bf16.mxu0 0
        %4013 = vmatpush1.bf16.msra.mxu0 0
        %4014 = vmatprep.subr.bf16.mxu0 0
        %4015 = vmatpush1.bf16.msra.mxu0 0
        %4016 = vmatprep.subr.bf16.mxu0 0
        %4017 = vmatpush1.bf16.msra.mxu0 0
        %4018 = vmatprep.subr.bf16.mxu0 0
        %4019 = vmatpush1.bf16.msra.mxu0 0
        %4020 = vmatprep.subr.bf16.mxu0 0
        %4021 = vmatpush1.bf16.msra.mxu0 0
        %4022 = vmatprep.subr.bf16.mxu0 0
        %4023 = vmatpush1.bf16.msra.mxu0 0
        %4024 = vmatprep.subr.bf16.mxu0 0
        %4025 = vmatpush1.bf16.msra.mxu0 0
        %4026 = vmatprep.subr.bf16.mxu0 0
        %4027 = vmatpush1.bf16.msra.mxu0 0
        %4028 = vmatprep.subr.bf16.mxu0 0
        %4029 = vmatpush1.bf16.msra.mxu0 0
        %4030 = vmatprep.mubr.bf16.mxu0 0
        %4031 = vmatmul.mubr.bf16.gmra.mrb[0].mxu0 %v3996
        %v4032 = vpop.f32.mrb[0].mxu0
        %v4033 = vadd.f32 0.0, %v4032
        %v4034 = vpop.f32.mrb[0].mxu0
        %v4035 = vpop.f32.mrb[0].mxu0
        %v4036 = vadd.f32 0.0, %v4035
        %v4037 = vpop.f32.mrb[0].mxu0
        %4038 = vdwg.mxu0
        %v4039 = vpack.c.bf16 %v4036, %v4033
        %s4040 = scalar_lea.vmem %s10, 28
        %v4041 = vld [vmem:[%s4040] sm:$0xf]
        %v4043 = vsel %vm1057, %v4039, 0
        %v4046 = vsel %vm1497, %v4041, 0
        %4048 = vmatprep.subr.bf16.mxu0 0
        %4049 = vmatpush1.bf16.msra.mxu0 %v4046
        %4050 = vmatprep.subr.bf16.mxu0 0
        %4051 = vmatpush1.bf16.msra.mxu0 0
        %4052 = vmatprep.subr.bf16.mxu0 0
        %4053 = vmatpush1.bf16.msra.mxu0 0
        %4054 = vmatprep.subr.bf16.mxu0 0
        %4055 = vmatpush1.bf16.msra.mxu0 0
        %4056 = vmatprep.subr.bf16.mxu0 0
        %4057 = vmatpush1.bf16.msra.mxu0 0
        %4058 = vmatprep.subr.bf16.mxu0 0
        %4059 = vmatpush1.bf16.msra.mxu0 0
        %4060 = vmatprep.subr.bf16.mxu0 0
        %4061 = vmatpush1.bf16.msra.mxu0 0
        %4062 = vmatprep.subr.bf16.mxu0 0
        %4063 = vmatpush1.bf16.msra.mxu0 0
        %4064 = vmatprep.subr.bf16.mxu0 0
        %4065 = vmatpush1.bf16.msra.mxu0 0
        %4066 = vmatprep.subr.bf16.mxu0 0
        %4067 = vmatpush1.bf16.msra.mxu0 0
        %4068 = vmatprep.subr.bf16.mxu0 0
        %4069 = vmatpush1.bf16.msra.mxu0 0
        %4070 = vmatprep.subr.bf16.mxu0 0
        %4071 = vmatpush1.bf16.msra.mxu0 0
        %4072 = vmatprep.subr.bf16.mxu0 0
        %4073 = vmatpush1.bf16.msra.mxu0 0
        %4074 = vmatprep.subr.bf16.mxu0 0
        %4075 = vmatpush1.bf16.msra.mxu0 0
        %4076 = vmatprep.subr.bf16.mxu0 0
        %4077 = vmatpush1.bf16.msra.mxu0 0
        %4078 = vmatprep.subr.bf16.mxu0 0
        %4079 = vmatpush1.bf16.msra.mxu0 0
        %4080 = vmatprep.mubr.bf16.mxu0 0
        %4081 = vmatmul.mubr.bf16.gmra.mrb[0].mxu0 %v4043
        %v4082 = vpop.f32.mrb[0].mxu0
        %v4083 = vadd.f32 0.0, %v4082
        %v4084 = vpop.f32.mrb[0].mxu0
        %v4085 = vpop.f32.mrb[0].mxu0
        %v4086 = vadd.f32 0.0, %v4085
        %v4087 = vpop.f32.mrb[0].mxu0
        %4088 = vdwg.mxu0
        %v4089 = vadd.f32 %v3722, %v4083
        %v4090 = vadd.f32 %v3723, %v4086
        %s4091 = scalar_lea.vmem %s11, 1
        %v4092 = vld [vmem:[%s4091] sm:$0x1]
        %v4094 = vlaneseq
        %v4095 = vshrl.u32 %v4094, 7
        %v4096 = vsub.s32 0, %v4095
        %v4097 = vrot.slane %v4092, %v4096
        %v4099 = vadd.f32 %v4089, %v4097
        %v4100 = vadd.f32 %v4090, %v4097
        %v4101 = vadd.f32 %v4099, %v2621
        %v4102 = vadd.f32 %v4100, %v2622
        %s4103 = scalar_lea.vmem %s12, 1
        %v4104 = vld [vmem:[%s4103] sm:$0x1]
        %s4105 = scalar_lea.vmem %s13, 1
        %v4106 = vld [vmem:[%s4105] sm:$0x1]
        %v4107 = vsel %vm808, %v4101, 0.0
        %4108 = vadd.xlane.f32.xlu0 %v4107
        %v4109 = vpop.xlane.xlu0 %4108
        %v4110 = vsel %vm808, %v4102, 0.0
        %4111 = vadd.xlane.f32.xlu0 %v4110
        %v4112 = vpop.xlane.xlu0 %4111
        %v4113 = vmul.f32 %v4109, %v815
        %v4114 = vmul.f32 %v4112, %v815
        %v4115 = vsub.f32 %v4101, %v4113
        %v4116 = vsub.f32 %v4102, %v4114
        %v4117 = vmul.f32 %v4115, %v4115
        %v4118 = vmul.f32 %v4116, %v4116
        %v4119 = vsel %vm808, %v4117, 0.0
        %4120 = vadd.xlane.f32.xlu0 %v4119
        %v4121 = vpop.xlane.xlu0 %4120
        %v4122 = vsel %vm808, %v4118, 0.0
        %4123 = vadd.xlane.f32.xlu0 %v4122
        %v4124 = vpop.xlane.xlu0 %4123
        %v4125 = vmul.f32 %v4121, %v815
        %v4126 = vmul.f32 %v4124, %v815
        %v4127 = vadd.f32 %v4125, 1e-12
        %v4128 = vadd.f32 %v4126, 1e-12
        %v4129 = vrsqrt.pop %v4127
        %v4130 = vrsqrt.pop %v4128
        %v4131 = vmul.f32 %v4115, %v4129
        %v4132 = vmul.f32 %v4116, %v4130
        %v4134 = vlaneseq
        %v4135 = vshrl.u32 %v4134, 7
        %v4136 = vsub.s32 0, %v4135
        %v4137 = vrot.slane %v4104, %v4136
        %v4139 = vmul.f32 %v4131, %v4137
        %v4140 = vmul.f32 %v4132, %v4137
        %v4142 = vlaneseq
        %v4143 = vshrl.u32 %v4142, 7
        %v4144 = vsub.s32 0, %v4143
        %v4145 = vrot.slane %v4106, %v4144
        %v4147 = vadd.f32 %v4139, %v4145
        %v4148 = vadd.f32 %v4140, %v4145
        %v4149 = vpack.c.bf16 %v4148, %v4147
        %s4150 = scalar_lea.vmem %s14, 16
        %v4151 = vld [vmem:[%s4150] sm:$0xf]
        %v4152 = vld [vmem:[%s4150 + $0x4] sm:$0xf]
        %v4153 = vld [vmem:[%s4150 + $0x8] sm:$0xf]
        %v4154 = vld [vmem:[%s4150 + $0xc] sm:$0xf]
        %s4155 = scalar_lea.vmem %s15, 1
        %v4156 = vld [vmem:[%s4155] sm:$0x1]
        %v4158 = vlaneseq
        %v4159 = vshrl.u32 %v4158, 7
        %v4160 = vsub.s32 0, %v4159
        %v4161 = vrot.slane %v4156, %v4160
        %v4167 = vunpack.c.l.b16 %v4151
        %v4168 = vunpack.c.l.b16 %v4152
        %v4169 = vunpack.c.l.b16 %v4153
        %v4170 = vunpack.c.l.b16 %v4154
        %v4171 = vpack.c.b16 %v4168, %v4167
        %v4172 = vpack.c.b16 %v4170, %v4169
        %v4176 = vsel %vm808, %v4149, 0
        %4178 = vmatprep.subr.bf16.mxu0 0
        %4179 = vmatpush1.bf16.msra.mxu0 %v4171
        %4180 = vmatprep.subr.bf16.mxu0 0
        %4181 = vmatpush1.bf16.msra.mxu0 %v4172
        %4182 = vmatprep.subr.bf16.mxu0 0
        %4183 = vmatpush1.bf16.msra.mxu0 0
        %4184 = vmatprep.subr.bf16.mxu0 0
        %4185 = vmatpush1.bf16.msra.mxu0 0
        %4186 = vmatprep.subr.bf16.mxu0 0
        %4187 = vmatpush1.bf16.msra.mxu0 0
        %4188 = vmatprep.subr.bf16.mxu0 0
        %4189 = vmatpush1.bf16.msra.mxu0 0
        %4190 = vmatprep.subr.bf16.mxu0 0
        %4191 = vmatpush1.bf16.msra.mxu0 0
        %4192 = vmatprep.subr.bf16.mxu0 0
        %4193 = vmatpush1.bf16.msra.mxu0 0
        %4194 = vmatprep.subr.bf16.mxu0 0
        %4195 = vmatpush1.bf16.msra.mxu0 0
        %4196 = vmatprep.subr.bf16.mxu0 0
        %4197 = vmatpush1.bf16.msra.mxu0 0
        %4198 = vmatprep.subr.bf16.mxu0 0
        %4199 = vmatpush1.bf16.msra.mxu0 0
        %4200 = vmatprep.subr.bf16.mxu0 0
        %4201 = vmatpush1.bf16.msra.mxu0 0
        %4202 = vmatprep.subr.bf16.mxu0 0
        %4203 = vmatpush1.bf16.msra.mxu0 0
        %4204 = vmatprep.subr.bf16.mxu0 0
        %4205 = vmatpush1.bf16.msra.mxu0 0
        %4206 = vmatprep.subr.bf16.mxu0 0
        %4207 = vmatpush1.bf16.msra.mxu0 0
        %4208 = vmatprep.subr.bf16.mxu0 0
        %4209 = vmatpush1.bf16.msra.mxu0 0
        %4210 = vmatprep.mubr.bf16.mxu0 0
        %4211 = vmatmul.mubr.bf16.gmra.mrb[0].mxu0 %v4176
        %v4212 = vpop.f32.mrb[0].mxu0
        %v4213 = vadd.f32 %v4161, %v4212
        %v4214 = vpop.f32.mrb[0].mxu0
        %v4215 = vpop.f32.mrb[0].mxu0
        %v4216 = vadd.f32 %v4161, %v4215
        %v4217 = vpop.f32.mrb[0].mxu0
        %4218 = vdwg.mxu0
        %v4219 = vmul.f32 %v4213, 0.5
        %v4220 = vmul.f32 %v4216, 0.5
        %v4221 = vmul.f32 %v4213, 0.044715
        %v4222 = vmul.f32 %v4216, 0.044715
        %v4223 = vmul.f32 %v4221, %v4213
        %v4224 = vmul.f32 %v4222, %v4216
        %v4225 = vmul.f32 %v4223, %v4213
        %v4226 = vmul.f32 %v4224, %v4216
        %v4227 = vadd.f32 %v4213, %v4225
        %v4228 = vadd.f32 %v4216, %v4226
        %v4229 = vmul.f32 %v4227, 0.7978846
        %v4230 = vmul.f32 %v4228, 0.7978846
        %v4231 = vtanh.pop %v4229
        %v4232 = vtanh.pop %v4230
        %v4233 = vadd.f32 %v4231, 1.0
        %v4234 = vadd.f32 %v4232, 1.0
        %v4235 = vmul.f32 %v4219, %v4233
        %v4236 = vmul.f32 %v4220, %v4234
        %v4237 = vpack.c.bf16 %v4236, %v4235
        %s4238 = scalar_lea.vmem %s16, 64
        %v4239 = vld [vmem:[%s4238] sm:$0xf]
        %v4240 = vld [vmem:[%s4238 + $0x4] sm:$0xf]
        %v4241 = vld [vmem:[%s4238 + $0x8] sm:$0xf]
        %v4242 = vld [vmem:[%s4238 + $0xc] sm:$0xf]
        %v4243 = vld [vmem:[%s4238 + $0x10] sm:$0xf]
        %v4244 = vld [vmem:[%s4238 + $0x14] sm:$0xf]
        %v4245 = vld [vmem:[%s4238 + $0x18] sm:$0xf]
        %v4246 = vld [vmem:[%s4238 + $0x1c] sm:$0xf]
        %v4247 = vld [vmem:[%s4238 + $0x20] sm:$0xf]
        %v4248 = vld [vmem:[%s4238 + $0x24] sm:$0xf]
        %v4249 = vld [vmem:[%s4238 + $0x28] sm:$0xf]
        %v4250 = vld [vmem:[%s4238 + $0x2c] sm:$0xf]
        %v4251 = vld [vmem:[%s4238 + $0x30] sm:$0xf]
        %v4252 = vld [vmem:[%s4238 + $0x34] sm:$0xf]
        %v4253 = vld [vmem:[%s4238 + $0x38] sm:$0xf]
        %v4254 = vld [vmem:[%s4238 + $0x3c] sm:$0xf]
        %s4255 = scalar_lea.vmem %s17, 1
        %v4256 = vld [vmem:[%s4255] sm:$0x1]
        %v4258 = vlaneseq
        %v4259 = vshrl.u32 %v4258, 7
        %v4260 = vsub.s32 0, %v4259
        %v4261 = vrot.slane %v4256, %v4260
        %v4279 = vunpack.c.l.b16 %v4239
        %v4280 = vunpack.c.l.b16 %v4240
        %v4281 = vunpack.c.l.b16 %v4241
        %v4282 = vunpack.c.l.b16 %v4242
        %v4283 = vunpack.c.l.b16 %v4243
        %v4284 = vunpack.c.l.b16 %v4244
        %v4285 = vunpack.c.l.b16 %v4245
        %v4286 = vunpack.c.l.b16 %v4246
        %v4287 = vunpack.c.l.b16 %v4247
        %v4288 = vunpack.c.l.b16 %v4248
        %v4289 = vunpack.c.l.b16 %v4249
        %v4290 = vunpack.c.l.b16 %v4250
        %v4291 = vunpack.c.l.b16 %v4251
        %v4292 = vunpack.c.l.b16 %v4252
        %v4293 = vunpack.c.l.b16 %v4253
        %v4294 = vunpack.c.l.b16 %v4254
        %v4295 = vpack.c.b16 %v4280, %v4279
        %v4296 = vpack.c.b16 %v4282, %v4281
        %v4297 = vpack.c.b16 %v4284, %v4283
        %v4298 = vpack.c.b16 %v4286, %v4285
        %v4299 = vpack.c.b16 %v4288, %v4287
        %v4300 = vpack.c.b16 %v4290, %v4289
        %v4301 = vpack.c.b16 %v4292, %v4291
        %v4302 = vpack.c.b16 %v4294, %v4293
        %4311 = vmatprep.subr.bf16.mxu0 0
        %4312 = vmatpush1.bf16.msra.mxu0 %v4295
        %4313 = vmatprep.subr.bf16.mxu0 0
        %4314 = vmatpush1.bf16.msra.mxu0 %v4296
        %4315 = vmatprep.subr.bf16.mxu0 0
        %4316 = vmatpush1.bf16.msra.mxu0 %v4297
        %4317 = vmatprep.subr.bf16.mxu0 0
        %4318 = vmatpush1.bf16.msra.mxu0 %v4298
        %4319 = vmatprep.subr.bf16.mxu0 0
        %4320 = vmatpush1.bf16.msra.mxu0 %v4299
        %4321 = vmatprep.subr.bf16.mxu0 0
        %4322 = vmatpush1.bf16.msra.mxu0 %v4300
        %4323 = vmatprep.subr.bf16.mxu0 0
        %4324 = vmatpush1.bf16.msra.mxu0 %v4301
        %4325 = vmatprep.subr.bf16.mxu0 0
        %4326 = vmatpush1.bf16.msra.mxu0 %v4302
        %4327 = vmatprep.subr.bf16.mxu0 0
        %4328 = vmatpush1.bf16.msra.mxu0 0
        %4329 = vmatprep.subr.bf16.mxu0 0
        %4330 = vmatpush1.bf16.msra.mxu0 0
        %4331 = vmatprep.subr.bf16.mxu0 0
        %4332 = vmatpush1.bf16.msra.mxu0 0
        %4333 = vmatprep.subr.bf16.mxu0 0
        %4334 = vmatpush1.bf16.msra.mxu0 0
        %4335 = vmatprep.subr.bf16.mxu0 0
        %4336 = vmatpush1.bf16.msra.mxu0 0
        %4337 = vmatprep.subr.bf16.mxu0 0
        %4338 = vmatpush1.bf16.msra.mxu0 0
        %4339 = vmatprep.subr.bf16.mxu0 0
        %4340 = vmatpush1.bf16.msra.mxu0 0
        %4341 = vmatprep.subr.bf16.mxu0 0
        %4342 = vmatpush1.bf16.msra.mxu0 0
        %4343 = vmatprep.mubr.bf16.mxu0 0
        %4344 = vmatmul.mubr.bf16.gmra.mrb[0].mxu0 %v4237
        %v4345 = vpop.f32.mrb[0].mxu0
        %v4346 = vadd.f32 %v4261, %v4345
        %v4347 = vpop.f32.mrb[0].mxu0
        %v4348 = vpop.f32.mrb[0].mxu0
        %v4349 = vpop.f32.mrb[0].mxu0
        %4350 = vdwg.mxu0
        %v4351 = vadd.f32 %v4346, %v4147
        %s4352 = scalar_lea.vmem %s18, 1
        %v4353 = vld [vmem:[%s4352] sm:$0x1]
        %s4354 = scalar_lea.vmem %s19, 1
        %v4355 = vld [vmem:[%s4354] sm:$0x1]
        %v4356 = vsel %vm808, %v4351, 0.0
        %4357 = vadd.xlane.f32.xlu0 %v4356
        %v4358 = vpop.xlane.xlu0 %4357
        %v4359 = vmul.f32 %v4358, %v815
        %v4360 = vsub.f32 %v4351, %v4359
        %v4361 = vmul.f32 %v4360, %v4360
        %v4362 = vsel %vm808, %v4361, 0.0
        %4363 = vadd.xlane.f32.xlu0 %v4362
        %v4364 = vpop.xlane.xlu0 %4363
        %v4365 = vmul.f32 %v4364, %v815
        %v4366 = vadd.f32 %v4365, 1e-12
        %v4367 = vrsqrt.pop %v4366
        %v4368 = vmul.f32 %v4360, %v4367
        %v4370 = vlaneseq
        %v4371 = vshrl.u32 %v4370, 7
        %v4372 = vsub.s32 0, %v4371
        %v4373 = vrot.slane %v4353, %v4372
        %v4375 = vmul.f32 %v4368, %v4373
        %v4377 = vlaneseq
        %v4378 = vshrl.u32 %v4377, 7
        %v4379 = vsub.s32 0, %v4378
        %v4380 = vrot.slane %v4355, %v4379
        %v4382 = vadd.f32 %v4375, %v4380
        %v4383 = vpack.c.bf16 %v4382, %v4382
        %v4384 = vld [vmem:[%s20] sm:$0xf]
        %v4385 = vld [vmem:[%s20 + $0x4] sm:$0xf]
        %v4386 = vld [vmem:[%s20 + $0x8] sm:$0xf]
        %v4387 = vld [vmem:[%s20 + $0xc] sm:$0xf]
        %v4388 = vld [vmem:[%s21] sm:$0x1]
        %v4393 = vunpack.c.l.b16 %v4384
        %v4394 = vunpack.c.l.b16 %v4385
        %v4395 = vunpack.c.l.b16 %v4386
        %v4396 = vunpack.c.l.b16 %v4387
        %v4397 = vpack.c.b16 %v4394, %v4393
        %v4398 = vpack.c.b16 %v4396, %v4395
        %v4402 = vsel %vm808, %v4383, 0
        %4404 = vmatprep.subr.bf16.mxu0 0
        %4405 = vmatpush1.bf16.msra.mxu0 %v4397
        %4406 = vmatprep.subr.bf16.mxu0 0
        %4407 = vmatpush1.bf16.msra.mxu0 %v4398
        %4408 = vmatprep.subr.bf16.mxu0 0
        %4409 = vmatpush1.bf16.msra.mxu0 0
        %4410 = vmatprep.subr.bf16.mxu0 0
        %4411 = vmatpush1.bf16.msra.mxu0 0
        %4412 = vmatprep.subr.bf16.mxu0 0
        %4413 = vmatpush1.bf16.msra.mxu0 0
        %4414 = vmatprep.subr.bf16.mxu0 0
        %4415 = vmatpush1.bf16.msra.mxu0 0
        %4416 = vmatprep.subr.bf16.mxu0 0
        %4417 = vmatpush1.bf16.msra.mxu0 0
        %4418 = vmatprep.subr.bf16.mxu0 0
        %4419 = vmatpush1.bf16.msra.mxu0 0
        %4420 = vmatprep.subr.bf16.mxu0 0
        %4421 = vmatpush1.bf16.msra.mxu0 0
        %4422 = vmatprep.subr.bf16.mxu0 0
        %4423 = vmatpush1.bf16.msra.mxu0 0
        %4424 = vmatprep.subr.bf16.mxu0 0
        %4425 = vmatpush1.bf16.msra.mxu0 0
        %4426 = vmatprep.subr.bf16.mxu0 0
        %4427 = vmatpush1.bf16.msra.mxu0 0
        %4428 = vmatprep.subr.bf16.mxu0 0
        %4429 = vmatpush1.bf16.msra.mxu0 0
        %4430 = vmatprep.subr.bf16.mxu0 0
        %4431 = vmatpush1.bf16.msra.mxu0 0
        %4432 = vmatprep.subr.bf16.mxu0 0
        %4433 = vmatpush1.bf16.msra.mxu0 0
        %4434 = vmatprep.subr.bf16.mxu0 0
        %4435 = vmatpush1.bf16.msra.mxu0 0
        %4436 = vmatprep.mubr.bf16.mxu0 0
        %4437 = vmatmul.mubr.bf16.gmra.mrb[0].mxu0 %v4402
        %v4438 = vpop.f32.mrb[0].mxu0
        %v4439 = vadd.f32 %v4388, %v4438
        %v4440 = vpop.f32.mrb[0].mxu0
        %v4441 = vpop.f32.mrb[0].mxu0
        %v4442 = vpop.f32.mrb[0].mxu0
        %4443 = vdwg.mxu0
        %v4444 = vmul.f32 %v4439, 0.5
        %v4445 = vmul.f32 %v4439, 0.044715
        %v4446 = vmul.f32 %v4445, %v4439
        %v4447 = vmul.f32 %v4446, %v4439
        %v4448 = vadd.f32 %v4439, %v4447
        %v4449 = vmul.f32 %v4448, 0.7978846
        %v4450 = vtanh.pop %v4449
        %v4451 = vadd.f32 %v4450, 1.0
        %v4452 = vmul.f32 %v4444, %v4451
        %v4453 = vld [vmem:[%s22] sm:$0x1]
        %v4454 = vld [vmem:[%s23] sm:$0x1]
        %vm4455 = vcmask 253952
        %v4456 = vsel %vm4455, %v4452, 0.0
        %4457 = vadd.xlane.f32.xlu0 %v4456
        %v4458 = vpop.xlane.xlu0 %4457
        %v4459 = vmul.f32 %v4458, %v815
        %v4460 = vsub.f32 %v4452, %v4459
        %v4461 = vmul.f32 %v4460, %v4460
        %v4462 = vsel %vm4455, %v4461, 0.0
        %4463 = vadd.xlane.f32.xlu0 %v4462
        %v4464 = vpop.xlane.xlu0 %4463
        %v4465 = vmul.f32 %v4464, %v815
        %v4466 = vadd.f32 %v4465, 1e-12
        %v4467 = vrsqrt.pop %v4466
        %v4468 = vmul.f32 %v4460, %v4467
        %v4469 = vmul.f32 %v4468, %v4453
        %v4470 = vadd.f32 %v4469, %v4454
        %v4471 = vpack.c.bf16 %v4470, %v4470
        %v4472 = vld [vmem:[%s24] sm:$0xf]
        %v4473 = vld [vmem:[%s24 + $0x4] sm:$0xf]
        %v4474 = vld [vmem:[%s24 + $0x8] sm:$0xf]
        %v4475 = vld [vmem:[%s24 + $0xc] sm:$0xf]
        %v4476 = vld [vmem:[%s25] sm:$0x1]
        %v4481 = vunpack.c.l.b16 %v4472
        %v4482 = vunpack.c.l.b16 %v4473
        %v4483 = vunpack.c.l.b16 %v4474
        %v4484 = vunpack.c.l.b16 %v4475
        %v4485 = vpack.c.b16 %v4482, %v4481
        %v4486 = vpack.c.b16 %v4484, %v4483
        %v4490 = vsel %vm808, %v4471, 0
        %4492 = vmatprep.subr.bf16.mxu0 0
        %4493 = vmatpush1.bf16.msra.mxu0 %v4485
        %4494 = vmatprep.subr.bf16.mxu0 0
        %4495 = vmatpush1.bf16.msra.mxu0 %v4486
        %4496 = vmatprep.subr.bf16.mxu0 0
        %4497 = vmatpush1.bf16.msra.mxu0 0
        %4498 = vmatprep.subr.bf16.mxu0 0
        %4499 = vmatpush1.bf16.msra.mxu0 0
        %4500 = vmatprep.subr.bf16.mxu0 0
        %4501 = vmatpush1.bf16.msra.mxu0 0
        %4502 = vmatprep.subr.bf16.mxu0 0
        %4503 = vmatpush1.bf16.msra.mxu0 0
        %4504 = vmatprep.subr.bf16.mxu0 0
        %4505 = vmatpush1.bf16.msra.mxu0 0
        %4506 = vmatprep.subr.bf16.mxu0 0
        %4507 = vmatpush1.bf16.msra.mxu0 0
        %4508 = vmatprep.subr.bf16.mxu0 0
        %4509 = vmatpush1.bf16.msra.mxu0 0
        %4510 = vmatprep.subr.bf16.mxu0 0
        %4511 = vmatpush1.bf16.msra.mxu0 0
        %4512 = vmatprep.subr.bf16.mxu0 0
        %4513 = vmatpush1.bf16.msra.mxu0 0
        %4514 = vmatprep.subr.bf16.mxu0 0
        %4515 = vmatpush1.bf16.msra.mxu0 0
        %4516 = vmatprep.subr.bf16.mxu0 0
        %4517 = vmatpush1.bf16.msra.mxu0 0
        %4518 = vmatprep.subr.bf16.mxu0 0
        %4519 = vmatpush1.bf16.msra.mxu0 0
        %4520 = vmatprep.subr.bf16.mxu0 0
        %4521 = vmatpush1.bf16.msra.mxu0 0
        %4522 = vmatprep.subr.bf16.mxu0 0
        %4523 = vmatpush1.bf16.msra.mxu0 0
        %4524 = vmatprep.mubr.bf16.mxu0 0
        %4525 = vmatmul.mubr.bf16.gmra.mrb[0].mxu0 %v4490
        %v4526 = vpop.f32.mrb[0].mxu0
        %v4527 = vadd.f32 %v4476, %v4526
        %v4528 = vpop.f32.mrb[0].mxu0
        %v4529 = vpop.f32.mrb[0].mxu0
        %v4530 = vpop.f32.mrb[0].mxu0
        %4531 = vdwg.mxu0
        %4532 = vst.msk [vmem:[%s794] sm:$0x1] %vm4455, %v4527
        %s4533 = sand.u32 %s604, 1
        %s4534 = scalar_lea.sflag [#allocation3], %s4533
        %s4535 = sand.u32 %s604, 1
        %s4536 = scalar_lea.vmem [#allocation2], %s4535
        // Predicated region
        $region125: #{mode_encoder.1} parent=123 // pred_check
          %p4537 = pneg %p614
        $region126: #{mode_encoder.1} parent=123 // pred_check_branch
          %4539 = sbr.rel (%p4537) target = $region128
        $region127: #{mode_encoder.1} parent=123 // pred_region
          %s4541 = ssub.s32 16, 16
          %4542 = vsyncadd %s4534, %s4541
          %s4543 = smul.addr %s40, 16
          %s4544 = scalar_lea.hbm %s26, %s4543
          %s4546 = sshll.u32 %s4536, 4
          %s4547 = int_to_ptr.vmem [resolvable:$true] %s4546
          %4549 = dma.vmem_to_hbm [thread:$0]  %s4547, 16, %s4544, %s4534
        $region128: #{mode_encoder.1} parent=123 // pred_fallthru
          _
      $region124: #{mode_encoder.1} parent=5 // pred_fallthru
        _
      %p4550 = scmp.le.s32.totalorder 2, %s35
      // Predicated region
      $region129: #{mode_encoder.1} parent=5 // pred_check
        %p4551 = pneg %p4550
      $region130: #{mode_encoder.1} parent=5 // pred_check_branch
        %4553 = sbr.rel (%p4551) target = $region132
      $region131: #{mode_encoder.1} parent=5 // pred_region
        %s4554 = ssub.s32 %s35, 2
        // Predicated region
        $region133: #{mode_encoder.1} parent=131 // pred_check
          %p4555 = pneg %p620
        $region134: #{mode_encoder.1} parent=131 // pred_check_branch
          %4557 = sbr.rel (%p4555) target = $region136
        $region135: #{mode_encoder.1} parent=131 // pred_region
          %s4558 = sand.u32 %s605, 1
          %s4559 = scalar_lea.sflag [#allocation3], %s4558
          %s4560 = sand.u32 %s605, 1
          %s4561 = scalar_lea.vmem [#allocation2], %s4560
          %4562 = dma.done %s4559, 16
        $region136: #{mode_encoder.1} parent=131 // pred_fallthru
          _
      $region132: #{mode_encoder.1} parent=5 // pred_fallthru
        _
    $region6: #{mode_encoder.1} parent=1 // loop_footer
      %s39 = sadd.s32 1, %s35
    $region7: #{mode_encoder.1} parent=1 // loop_footer_branch
      %34 = sbr.rel target = $region3
    $region8: #{mode_encoder.1} parent=1 // loop_exit
      _
    %4563 = vsyncpa [#allocation3], 1
    %s4564 = scalar_lea.sflag [#allocation3], 1
    %4565 = vsyncpa %s4564, 1

</llo_original>
